<compile_context>
chip_gen: v5e
topology: v5e:2x2
jax: 0.10.0
libtpu: 0.0.40
codegen_flags: <defaults>
</compile_context>

<pallas_src>
import functools

import jax
import jax.numpy as jnp
from jax.experimental import pallas as pl
from jax.experimental.pallas import tpu as pltpu


_INV_SQRT2 = 0.7071067811865476
_SQRT_2_OVER_PI = 0.7978845608028654

# Abramowitz & Stegun 7.1.26 erf coefficients (max abs error 1.5e-7).
_ERF_P = 0.3275911
_ERF_A1 = 0.254829592
_ERF_A2 = -0.284496736
_ERF_A3 = 1.421413741
_ERF_A4 = -1.453152027
_ERF_A5 = 1.061405429

# Flipped to False at runtime if this jax/Mosaic build rejects pl.Buffered(1).
_WEIGHT_SINGLE_BUFFERING = True


def _round_up(x: int, m: int) -> int:
    return ((x + m - 1) // m) * m


@functools.lru_cache(maxsize=None)
def _vmem_budget_bytes() -> int:
    """Per-generation VMEM budget with headroom (v7x has only 64 MiB physical)."""
    try:
        cap = pltpu.get_tpu_info().vmem_capacity_bytes
    except Exception:  # conservative (v7x-sized) fallback
        cap = 64 << 20
    return min(int(cap * 0.75), 96 << 20)


@functools.lru_cache(maxsize=None)
def _has_bf16_valu() -> bool:
    """True on chips whose VPU/EUP handle bf16 natively (v6e / v7x); False on
    v5e and older, where bf16 elementwise math buys no throughput."""
    try:
        kind = jax.devices()[0].device_kind.lower()
    except Exception:
        return False
    return not any(tag in kind for tag in ("v2", "v3", "v4", "v5"))


def _erf(x):
    """erf via A&S 7.1.26: only mul/add/abs/where (VPU) plus one exp (EUP).

    |error| <= 1.5e-7 (f32 round-off class) -- numerically equivalent to the
    exact erf used by torch.nn.GELU(), and the single transcendental (exp)
    lands on the otherwise-idle EUP slot instead of a long VPU polynomial.
    """
    ax = jnp.abs(x)
    t = 1.0 / (1.0 + _ERF_P * ax)
    poly = ((((_ERF_A5 * t + _ERF_A4) * t + _ERF_A3) * t + _ERF_A2) * t + _ERF_A1) * t
    e = 1.0 - poly * jnp.exp(-(ax * ax))
    return jnp.where(x < 0, -e, e)


def _gelu(h, approximate: bool):
    if approximate:
        # tanh formulation (true EUP tanh).  Slightly different numerics than
        # the torch.nn.GELU() default, so only used when explicitly requested.
        return 0.5 * h * (1.0 + jnp.tanh(_SQRT_2_OVER_PI * (h + 0.044715 * (h * h * h))))
    return 0.5 * h * (1.0 + _erf(h * _INV_SQRT2))


def _make_kernel(gelu_dtype, approximate):
    def kernel(x_ref, w1_ref, b1_ref, w2_ref, b2_ref, o_ref, *scratch):
        def epilogue(h32):
            # Bias add in f32, then GELU in `gelu_dtype` (bf16 on v6e/v7x when
            # the weights are bf16 -> 2x VALU throughput and half the vreg/VMEM
            # pressure of the [tb, 2048] intermediate; f32 otherwise).
            h = (h32 + b1_ref[...].astype(jnp.float32)).astype(gelu_dtype)
            g = _gelu(h, approximate)
            # Dropout(p=0.5): identity in eval/inference mode.
            # TODO(synk): training-mode dropout via pltpu.prng_random_bits mask + 2x scale.
            g = g.astype(w2_ref.dtype)
            out = jnp.dot(g, w2_ref[...], preferred_element_type=jnp.float32)
            out = out + b2_ref[...].astype(jnp.float32)
            o_ref[...] = out.astype(o_ref.dtype)

        partial = jnp.dot(x_ref[...], w1_ref[...], preferred_element_type=jnp.float32)

        if not scratch:
            # Resident-W1 path (single K step): no scratch round trip.
            epilogue(partial)
        else:
            # K-tiled path: accumulate h in an f32 VMEM scratch across the
            # reduction axis; GELU + second matmul only on the last K step.
            acc_ref, = scratch
            k = pl.program_id(1)

            @pl.when(k == 0)
            def _():
                acc_ref[...] = partial

            @pl.when(k > 0)
            def _():
                acc_ref[...] += partial

            @pl.when(k == pl.num_programs(1) - 1)
            def _():
                epilogue(acc_ref[...])

    return kernel


def prepare_mlp_head_params(w1, b1, w2, b2):
    """One-time parameter prep (hoisted out of the per-forward hot path).

    Biases are reshaped to (1, dim) and the class dim of W2/b2 is zero-padded
    to a lane-dense multiple of 128 so output rows use full, unmasked vector
    stores.  Cast weights to bf16 *before* calling this to get the native bf16
    MXU path on v6e/v7x (tolerances change accordingly).
    """
    num_classes = int(w2.shape[-1])
    b1 = jnp.asarray(b1).reshape(1, -1)
    b2 = jnp.asarray(b2).reshape(1, -1)
    c_pad = max(128, _round_up(num_classes, 128))
    if c_pad != num_classes:
        w2 = jnp.pad(jnp.asarray(w2), ((0, 0), (0, c_pad - num_classes)))
        b2 = jnp.pad(b2, ((0, 0), (0, c_pad - num_classes)))
    return {"w1": jnp.asarray(w1), "b1": b1, "w2": jnp.asarray(w2), "b2": b2,
            "num_classes": num_classes}


def mlp_head(x, params, *, block_b=512, block_f=None,
             approximate_gelu=False, gelu_in_weight_dtype=True):
    """Forward pass of MLPHead.  x: [B, in_features] -> [B, num_classes]."""
    global _WEIGHT_SINGLE_BUFFERING

    w1, b1, w2, b2 = params["w1"], params["b1"], params["w2"], params["b2"]
    C = params["num_classes"]

    B, F = x.shape
    H = w1.shape[1]
    c_pad = w2.shape[1]
    out_dtype = x.dtype
    budget = _vmem_budget_bytes()

    # Stream activations in the weight dtype (bf16 weights -> native MXU path).
    x = x.astype(w1.dtype)
    itemsize = jnp.dtype(w1.dtype).itemsize

    # GELU compute dtype: bf16 when the weights are bf16 and the chip's VPU/EUP
    # are bf16-native (v6e/v7x); f32 otherwise (v5e, f32 weights).
    use_bf16_gelu = (gelu_in_weight_dtype
                     and jnp.dtype(w1.dtype) == jnp.dtype(jnp.bfloat16)
                     and _has_bf16_valu())
    gelu_dtype = jnp.bfloat16 if use_bf16_gelu else jnp.float32

    # ---- Reduction (in_features) tiling: keep W1 resident unless it would
    # blow the VMEM budget, else stream (tk, H) slabs along a K grid axis.
    if block_f is None:
        if F * H * itemsize > budget // 3:
            block_f = max(128, ((budget // 3) // (2 * H * itemsize)) // 128 * 128)
        else:
            block_f = F
    tk = min(_round_up(block_f, 128), _round_up(F, 128))
    if tk >= F:
        tk, nk, f_pad = F, 1, F
    else:
        nk = pl.cdiv(F, tk)
        f_pad = nk * tk
    if f_pad != F:
        # Zero padding along the reduction dim contributes nothing to the dot.
        # (For a long-lived model, pad W1 once at prep time instead.)
        x = jnp.pad(x, ((0, 0), (0, f_pad - F)))
        w1 = jnp.pad(w1, ((0, f_pad - F), (0, 0)))

    # ---- Batch tiling: never collapse to a single grid step for B >= 16 and
    # keep the number of "parallel" steps even, so both v7x TensorCores work.
    nb = max(1, pl.cdiv(B, block_b))
    if nb == 1 and B >= 16:
        nb = 2
    if nb > 1 and nb % 2:
        nb += 1
    tb = _round_up(pl.cdiv(B, nb), 8) if B >= 8 else B
    nb = pl.cdiv(B, tb)
    b_pad = nb * tb
    if b_pad != B:
        x = jnp.pad(x, ((0, b_pad - B), (0, 0)))

    kernel = _make_kernel(gelu_dtype, approximate_gelu)

    def build(single_buffer):
        # Grid-invariant operands: single-buffer them (double-buffering a block
        # whose index_map is constant only doubles its VMEM footprint).
        def const_spec(shape):
            if single_buffer:
                return pl.BlockSpec(shape, lambda i, k: (0, 0),
                                    pipeline_mode=pl.Buffered(1))
            return pl.BlockSpec(shape, lambda i, k: (0, 0))

        w1_spec = (const_spec((tk, H)) if nk == 1
                   else pl.BlockSpec((tk, H), lambda i, k: (k, 0)))
        in_specs = [
            pl.BlockSpec((tb, tk), lambda i, k: (i, k)),   # x tile (pipelined)
            w1_spec,                                       # W1 (resident or K-streamed)
            const_spec((1, H)),                            # b1 (resident)
            const_spec((H, c_pad)),                        # W2 (lane-dense, resident)
            const_spec((1, c_pad)),                        # b2 (resident)
        ]
        scratch = [pltpu.VMEM((tb, H), jnp.float32)] if nk > 1 else []
        # TODO(synk): add an N grid axis over class tiles if H * c_pad ever
        # exceeds the VMEM budget (not the case for classification heads).
        return pl.pallas_call(
            kernel,
            out_shape=jax.ShapeDtypeStruct((b_pad, c_pad), out_dtype),
            grid_spec=pltpu.PrefetchScalarGridSpec(
                num_scalar_prefetch=0,
                grid=(nb, nk),
                in_specs=in_specs,
                out_specs=pl.BlockSpec((tb, c_pad), lambda i, k: (i, 0)),
                scratch_shapes=scratch,
            ),
            compiler_params=pltpu.CompilerParams(
                dimension_semantics=("parallel", "arbitrary"),
                vmem_limit_bytes=budget,
            ),
        )

    result = None
    if _WEIGHT_SINGLE_BUFFERING:
        try:
            result = build(True)(x, w1, b1, w2, b2)
        except Exception:
            # This jax/Mosaic build rejects pl.Buffered(1); fall back (and
            # remember) to default double buffering of the resident weights.
            _WEIGHT_SINGLE_BUFFERING = False
    if result is None:
        result = build(False)(x, w1, b1, w2, b2)

    return result[:B, :C]


def _reference(x, w1, b1, w2, b2):
    h = x.astype(jnp.float32) @ w1.astype(jnp.float32) + b1.astype(jnp.float32).reshape(1, -1)
    g = 0.5 * h * (1.0 + jax.lax.erf(h * _INV_SQRT2))
    return g @ w2.astype(jnp.float32) + b2.astype(jnp.float32).reshape(1, -1)


if __name__ == "__main__":
    # Small deterministic setup consistent with MLPHead(in_features=32, num_output_classes=16).
    batch = 8
    in_features = 32
    hidden = 2048
    num_classes = 16

    key = jax.random.PRNGKey(0)
    kx, k1, kb1, k2, kb2 = jax.random.split(key, 5)
    bound1 = 1.0 / (in_features ** 0.5)
    bound2 = 1.0 / (hidden ** 0.5)
    x = jax.random.normal(kx, (batch, in_features), dtype=jnp.float32)
    w1 = jax.random.uniform(k1, (in_features, hidden), jnp.float32, -bound1, bound1)
    b1 = jax.random.uniform(kb1, (hidden,), jnp.float32, -bound1, bound1)
    w2 = jax.random.uniform(k2, (hidden, num_classes), jnp.float32, -bound2, bound2)
    b2 = jax.random.uniform(kb2, (num_classes,), jnp.float32, -bound2, bound2)

    # 1) f32 path, resident weights, single tiny batch tile.
    params_f32 = prepare_mlp_head_params(w1, b1, w2, b2)
    out = jax.block_until_ready(mlp_head(x, params_f32))
    ref = _reference(x, w1, b1, w2, b2)
    assert out.shape == (batch, num_classes)
    assert jnp.allclose(out, ref, atol=1e-4, rtol=1e-4), "f32 mismatch vs reference"

    # 2) bf16 weights + larger batch: multi-step parallel grid (2 x 256 rows),
    #    native bf16 MXU path, bf16 GELU on v6e/v7x.
    big_batch = 512
    xb = jax.random.normal(jax.random.PRNGKey(1), (big_batch, in_features), dtype=jnp.bfloat16)
    params_bf16 = prepare_mlp_head_params(
        w1.astype(jnp.bfloat16), b1.astype(jnp.bfloat16),
        w2.astype(jnp.bfloat16), b2.astype(jnp.bfloat16))
    out_bf16 = jax.block_until_ready(mlp_head(xb, params_bf16))
    ref_bf16 = _reference(xb, w1, b1, w2, b2)
    assert out_bf16.shape == (big_batch, num_classes)
    assert jnp.allclose(out_bf16.astype(jnp.float32), ref_bf16, atol=5e-2, rtol=5e-2), \
        "bf16 mismatch vs reference"

    # 3) K-tiled fallback path (forced via block_f) for large in_features:
    #    W1 streamed in (128, 2048) slabs with an f32 scratch accumulator.
    f_big = 384
    k3x, k3w = jax.random.split(jax.random.PRNGKey(2))
    bound3 = 1.0 / (f_big ** 0.5)
    x3 = jax.random.normal(k3x, (batch, f_big), dtype=jnp.float32)
    w1_big = jax.random.uniform(k3w, (f_big, hidden), jnp.float32, -bound3, bound3)
    params3 = prepare_mlp_head_params(w1_big, b1, w2, b2)
    out3 = jax.block_until_ready(mlp_head(x3, params3, block_f=128))
    ref3 = _reference(x3, w1_big, b1, w2, b2)
    assert out3.shape == (batch, num_classes)
    assert jnp.allclose(out3, ref3, atol=1e-4, rtol=1e-4), "K-tiled mismatch vs reference"

    print("KERNEL_OK")
</pallas_src>

<mosaic_0001>
module attributes {stable_mosaic.version = 11 : i64} {
  func.func @kernel(%arg0: i32, %arg1: i32, %arg2: memref<8x32xf32, #tpu.memory_space<vmem>>, %arg3: memref<32x2048xf32, #tpu.memory_space<vmem>>, %arg4: memref<1x2048xf32, #tpu.memory_space<vmem>>, %arg5: memref<2048x128xf32, #tpu.memory_space<vmem>>, %arg6: memref<1x128xf32, #tpu.memory_space<vmem>>, %arg7: memref<8x128xf32, #tpu.memory_space<vmem>>) attributes {dimension_semantics = [#tpu.dimension_semantics<parallel>, #tpu.dimension_semantics<arbitrary>], iteration_bounds = array<i64: 1, 1>, scalar_prefetch = 0 : i64, scratch_operands = 0 : i64, tpu.core_type = #tpu.core_type<tc>, window_params = [{transform_indices = @transform_0, window_bounds = array<i64: 8, 32>}, {pipeline_mode = #tpu.pipeline_mode<synchronous>, transform_indices = @transform_1, window_bounds = array<i64: 32, 2048>}, {pipeline_mode = #tpu.pipeline_mode<synchronous>, transform_indices = @transform_2, window_bounds = array<i64: 1, 2048>}, {pipeline_mode = #tpu.pipeline_mode<synchronous>, transform_indices = @transform_3, window_bounds = array<i64: 2048, 128>}, {pipeline_mode = #tpu.pipeline_mode<synchronous>, transform_indices = @transform_4, window_bounds = array<i64: 1, 128>}, {transform_indices = @transform_5, window_bounds = array<i64: 8, 128>}]} {
    %c0 = arith.constant 0 : index
    %c0_0 = arith.constant 0 : index
    %0 = vector.load %arg2[%c0, %c0_0] : memref<8x32xf32, #tpu.memory_space<vmem>>, vector<8x32xf32>
    %c0_1 = arith.constant 0 : index
    %c0_2 = arith.constant 0 : index
    %1 = vector.load %arg3[%c0_1, %c0_2] : memref<32x2048xf32, #tpu.memory_space<vmem>>, vector<32x2048xf32>
    %cst = arith.constant dense<0.000000e+00> : vector<8x2048xf32>
    %2 = tpu.matmul %0, %1, %cst {dimension_numbers = #tpu.dot_dimension_numbers<[1], [0], [0], [1], [0, 0, 1, 1], [], []>} : vector<8x32xf32>, vector<32x2048xf32>, vector<8x2048xf32> -> vector<8x2048xf32>
    %c0_3 = arith.constant 0 : index
    %c0_4 = arith.constant 0 : index
    %3 = vector.load %arg4[%c0_3, %c0_4] : memref<1x2048xf32, #tpu.memory_space<vmem>>, vector<1x2048xf32>
    %4 = vector.broadcast %3 : vector<1x2048xf32> to vector<8x2048xf32>
    %5 = arith.addf %2, %4 : vector<8x2048xf32>
    %cst_5 = arith.constant 5.000000e-01 : f32
    %6 = vector.broadcast %cst_5 : f32 to vector<8x2048xf32>
    %7 = arith.mulf %6, %5 : vector<8x2048xf32>
    %cst_6 = arith.constant 0.707106769 : f32
    %8 = vector.broadcast %cst_6 : f32 to vector<8x2048xf32>
    %9 = arith.mulf %5, %8 : vector<8x2048xf32>
    %10 = math.absf %9 : vector<8x2048xf32>
    %cst_7 = arith.constant 0.327591091 : f32
    %11 = vector.broadcast %cst_7 : f32 to vector<8x2048xf32>
    %12 = arith.mulf %11, %10 : vector<8x2048xf32>
    %cst_8 = arith.constant 1.000000e+00 : f32
    %13 = vector.broadcast %cst_8 : f32 to vector<8x2048xf32>
    %14 = arith.addf %13, %12 : vector<8x2048xf32>
    %cst_9 = arith.constant 1.000000e+00 : f32
    %15 = vector.broadcast %cst_9 : f32 to vector<8x2048xf32>
    %16 = arith.divf %15, %14 : vector<8x2048xf32>
    %cst_10 = arith.constant 1.06140542 : f32
    %17 = vector.broadcast %cst_10 : f32 to vector<8x2048xf32>
    %18 = arith.mulf %17, %16 : vector<8x2048xf32>
    %cst_11 = arith.constant -1.45315206 : f32
    %19 = vector.broadcast %cst_11 : f32 to vector<8x2048xf32>
    %20 = arith.addf %18, %19 : vector<8x2048xf32>
    %21 = arith.mulf %20, %16 : vector<8x2048xf32>
    %cst_12 = arith.constant 1.42141378 : f32
    %22 = vector.broadcast %cst_12 : f32 to vector<8x2048xf32>
    %23 = arith.addf %21, %22 : vector<8x2048xf32>
    %24 = arith.mulf %23, %16 : vector<8x2048xf32>
    %cst_13 = arith.constant -0.284496725 : f32
    %25 = vector.broadcast %cst_13 : f32 to vector<8x2048xf32>
    %26 = arith.addf %24, %25 : vector<8x2048xf32>
    %27 = arith.mulf %26, %16 : vector<8x2048xf32>
    %cst_14 = arith.constant 0.254829586 : f32
    %28 = vector.broadcast %cst_14 : f32 to vector<8x2048xf32>
    %29 = arith.addf %27, %28 : vector<8x2048xf32>
    %30 = arith.mulf %29, %16 : vector<8x2048xf32>
    %31 = arith.mulf %10, %10 : vector<8x2048xf32>
    %cst_15 = arith.constant 0.000000e+00 : f32
    %32 = vector.broadcast %cst_15 : f32 to vector<8x2048xf32>
    %33 = arith.subf %32, %31 : vector<8x2048xf32>
    %34 = math.exp %33 : vector<8x2048xf32>
    %35 = arith.mulf %30, %34 : vector<8x2048xf32>
    %cst_16 = arith.constant 1.000000e+00 : f32
    %36 = vector.broadcast %cst_16 : f32 to vector<8x2048xf32>
    %37 = arith.subf %36, %35 : vector<8x2048xf32>
    %cst_17 = arith.constant 0.000000e+00 : f32
    %38 = vector.broadcast %cst_17 : f32 to vector<8x2048xf32>
    %39 = arith.cmpf olt, %9, %38 : vector<8x2048xf32>
    %cst_18 = arith.constant 0.000000e+00 : f32
    %40 = vector.broadcast %cst_18 : f32 to vector<8x2048xf32>
    %41 = arith.subf %40, %37 : vector<8x2048xf32>
    %42 = arith.select %39, %41, %37 : vector<8x2048xi1>, vector<8x2048xf32>
    %cst_19 = arith.constant 1.000000e+00 : f32
    %43 = vector.broadcast %cst_19 : f32 to vector<8x2048xf32>
    %44 = arith.addf %43, %42 : vector<8x2048xf32>
    %45 = arith.mulf %7, %44 : vector<8x2048xf32>
    %c0_20 = arith.constant 0 : index
    %c0_21 = arith.constant 0 : index
    %46 = vector.load %arg5[%c0_20, %c0_21] : memref<2048x128xf32, #tpu.memory_space<vmem>>, vector<2048x128xf32>
    %cst_22 = arith.constant dense<0.000000e+00> : vector<8x128xf32>
    %47 = tpu.matmul %45, %46, %cst_22 {dimension_numbers = #tpu.dot_dimension_numbers<[1], [0], [0], [1], [0, 0, 1, 1], [], []>} : vector<8x2048xf32>, vector<2048x128xf32>, vector<8x128xf32> -> vector<8x128xf32>
    %c0_23 = arith.constant 0 : index
    %c0_24 = arith.constant 0 : index
    %48 = vector.load %arg6[%c0_23, %c0_24] : memref<1x128xf32, #tpu.memory_space<vmem>>, vector<1x128xf32>
    %49 = vector.broadcast %48 : vector<1x128xf32> to vector<8x128xf32>
    %50 = arith.addf %47, %49 : vector<8x128xf32>
    %c0_25 = arith.constant 0 : index
    %c0_26 = arith.constant 0 : index
    %51 = vector.load %arg7[%c0_25, %c0_26] : memref<8x128xf32, #tpu.memory_space<vmem>>, vector<8x128xf32>
    tpu.vector_store %arg7[%c0_25, %c0_26], %50 {strides = array<i32>} : memref<8x128xf32, #tpu.memory_space<vmem>>, vector<8x128xf32>,
    return
  }
  func.func @transform_0(%arg0: i32, %arg1: i32) -> (i32, i32) {
    %c0_i32 = arith.constant 0 : i32
    return %arg0, %arg1 : i32, i32
  }
  func.func @transform_1(%arg0: i32, %arg1: i32) -> (i32, i32) {
    %c0_i32 = arith.constant 0 : i32
    %c0_i32_0 = arith.constant 0 : i32
    %c0_i32_1 = arith.constant 0 : i32
    return %c0_i32, %c0_i32_0 : i32, i32
  }
  func.func @transform_2(%arg0: i32, %arg1: i32) -> (i32, i32) {
    %c0_i32 = arith.constant 0 : i32
    %c0_i32_0 = arith.constant 0 : i32
    %c0_i32_1 = arith.constant 0 : i32
    return %c0_i32, %c0_i32_0 : i32, i32
  }
  func.func @transform_3(%arg0: i32, %arg1: i32) -> (i32, i32) {
    %c0_i32 = arith.constant 0 : i32
    %c0_i32_0 = arith.constant 0 : i32
    %c0_i32_1 = arith.constant 0 : i32
    return %c0_i32, %c0_i32_0 : i32, i32
  }
  func.func @transform_4(%arg0: i32, %arg1: i32) -> (i32, i32) {
    %c0_i32 = arith.constant 0 : i32
    %c0_i32_0 = arith.constant 0 : i32
    %c0_i32_1 = arith.constant 0 : i32
    return %c0_i32, %c0_i32_0 : i32, i32
  }
  func.func @transform_5(%arg0: i32, %arg1: i32) -> (i32, i32) {
    %c0_i32 = arith.constant 0 : i32
    %c0_i32_0 = arith.constant 0 : i32
    return %arg0, %c0_i32 : i32, i32
  }
}

module attributes {stable_mosaic.version = 11 : i64} {
  func.func @kernel(%arg0: i32, %arg1: i32, %arg2: memref<8x32xf32, #tpu.memory_space<vmem>>, %arg3: memref<32x2048xf32, #tpu.memory_space<vmem>>, %arg4: memref<1x2048xf32, #tpu.memory_space<vmem>>, %arg5: memref<2048x128xf32, #tpu.memory_space<vmem>>, %arg6: memref<1x128xf32, #tpu.memory_space<vmem>>, %arg7: memref<8x128xf32, #tpu.memory_space<vmem>>) attributes {dimension_semantics = [#tpu.dimension_semantics<parallel>, #tpu.dimension_semantics<arbitrary>], iteration_bounds = array<i64: 1, 1>, scalar_prefetch = 0 : i64, scratch_operands = 0 : i64, tpu.core_type = #tpu.core_type<tc>, window_params = [{transform_indices = @transform_0, window_bounds = array<i64: 8, 32>}, {pipeline_mode = #tpu.pipeline_mode<synchronous>, transform_indices = @transform_1, window_bounds = array<i64: 32, 2048>}, {pipeline_mode = #tpu.pipeline_mode<synchronous>, transform_indices = @transform_2, window_bounds = array<i64: 1, 2048>}, {pipeline_mode = #tpu.pipeline_mode<synchronous>, transform_indices = @transform_3, window_bounds = array<i64: 2048, 128>}, {pipeline_mode = #tpu.pipeline_mode<synchronous>, transform_indices = @transform_4, window_bounds = array<i64: 1, 128>}, {transform_indices = @transform_5, window_bounds = array<i64: 8, 128>}]} {
    %c0 = arith.constant 0 : index
    %c0_0 = arith.constant 0 : index
    %0 = vector.load %arg2[%c0, %c0_0] : memref<8x32xf32, #tpu.memory_space<vmem>>, vector<8x32xf32>
    %c0_1 = arith.constant 0 : index
    %c0_2 = arith.constant 0 : index
    %1 = vector.load %arg3[%c0_1, %c0_2] : memref<32x2048xf32, #tpu.memory_space<vmem>>, vector<32x2048xf32>
    %cst = arith.constant dense<0.000000e+00> : vector<8x2048xf32>
    %2 = tpu.matmul %0, %1, %cst {dimension_numbers = #tpu.dot_dimension_numbers<[1], [0], [0], [1], [0, 0, 1, 1], [], []>} : vector<8x32xf32>, vector<32x2048xf32>, vector<8x2048xf32> -> vector<8x2048xf32>
    %c0_3 = arith.constant 0 : index
    %c0_4 = arith.constant 0 : index
    %3 = vector.load %arg4[%c0_3, %c0_4] : memref<1x2048xf32, #tpu.memory_space<vmem>>, vector<1x2048xf32>
    %4 = vector.broadcast %3 : vector<1x2048xf32> to vector<8x2048xf32>
    %5 = arith.addf %2, %4 : vector<8x2048xf32>
    %cst_5 = arith.constant 5.000000e-01 : f32
    %6 = vector.broadcast %cst_5 : f32 to vector<8x2048xf32>
    %7 = arith.mulf %6, %5 : vector<8x2048xf32>
    %cst_6 = arith.constant 0.707106769 : f32
    %8 = vector.broadcast %cst_6 : f32 to vector<8x2048xf32>
    %9 = arith.mulf %5, %8 : vector<8x2048xf32>
    %10 = math.absf %9 : vector<8x2048xf32>
    %cst_7 = arith.constant 0.327591091 : f32
    %11 = vector.broadcast %cst_7 : f32 to vector<8x2048xf32>
    %12 = arith.mulf %11, %10 : vector<8x2048xf32>
    %cst_8 = arith.constant 1.000000e+00 : f32
    %13 = vector.broadcast %cst_8 : f32 to vector<8x2048xf32>
    %14 = arith.addf %13, %12 : vector<8x2048xf32>
    %cst_9 = arith.constant 1.000000e+00 : f32
    %15 = vector.broadcast %cst_9 : f32 to vector<8x2048xf32>
    %16 = arith.divf %15, %14 : vector<8x2048xf32>
    %cst_10 = arith.constant 1.06140542 : f32
    %17 = vector.broadcast %cst_10 : f32 to vector<8x2048xf32>
    %18 = arith.mulf %17, %16 : vector<8x2048xf32>
    %cst_11 = arith.constant -1.45315206 : f32
    %19 = vector.broadcast %cst_11 : f32 to vector<8x2048xf32>
    %20 = arith.addf %18, %19 : vector<8x2048xf32>
    %21 = arith.mulf %20, %16 : vector<8x2048xf32>
    %cst_12 = arith.constant 1.42141378 : f32
    %22 = vector.broadcast %cst_12 : f32 to vector<8x2048xf32>
    %23 = arith.addf %21, %22 : vector<8x2048xf32>
    %24 = arith.mulf %23, %16 : vector<8x2048xf32>
    %cst_13 = arith.constant -0.284496725 : f32
    %25 = vector.broadcast %cst_13 : f32 to vector<8x2048xf32>
    %26 = arith.addf %24, %25 : vector<8x2048xf32>
    %27 = arith.mulf %26, %16 : vector<8x2048xf32>
    %cst_14 = arith.constant 0.254829586 : f32
    %28 = vector.broadcast %cst_14 : f32 to vector<8x2048xf32>
    %29 = arith.addf %27, %28 : vector<8x2048xf32>
    %30 = arith.mulf %29, %16 : vector<8x2048xf32>
    %31 = arith.mulf %10, %10 : vector<8x2048xf32>
    %cst_15 = arith.constant 0.000000e+00 : f32
    %32 = vector.broadcast %cst_15 : f32 to vector<8x2048xf32>
    %33 = arith.subf %32, %31 : vector<8x2048xf32>
    %34 = math.exp %33 : vector<8x2048xf32>
    %35 = arith.mulf %30, %34 : vector<8x2048xf32>
    %cst_16 = arith.constant 1.000000e+00 : f32
    %36 = vector.broadcast %cst_16 : f32 to vector<8x2048xf32>
    %37 = arith.subf %36, %35 : vector<8x2048xf32>
    %cst_17 = arith.constant 0.000000e+00 : f32
    %38 = vector.broadcast %cst_17 : f32 to vector<8x2048xf32>
    %39 = arith.cmpf olt, %9, %38 : vector<8x2048xf32>
    %cst_18 = arith.constant 0.000000e+00 : f32
    %40 = vector.broadcast %cst_18 : f32 to vector<8x2048xf32>
    %41 = arith.subf %40, %37 : vector<8x2048xf32>
    %42 = arith.select %39, %41, %37 : vector<8x2048xi1>, vector<8x2048xf32>
    %cst_19 = arith.constant 1.000000e+00 : f32
    %43 = vector.broadcast %cst_19 : f32 to vector<8x2048xf32>
    %44 = arith.addf %43, %42 : vector<8x2048xf32>
    %45 = arith.mulf %7, %44 : vector<8x2048xf32>
    %c0_20 = arith.constant 0 : index
    %c0_21 = arith.constant 0 : index
    %46 = vector.load %arg5[%c0_20, %c0_21] : memref<2048x128xf32, #tpu.memory_space<vmem>>, vector<2048x128xf32>
    %cst_22 = arith.constant dense<0.000000e+00> : vector<8x128xf32>
    %47 = tpu.matmul %45, %46, %cst_22 {dimension_numbers = #tpu.dot_dimension_numbers<[1], [0], [0], [1], [0, 0, 1, 1], [], []>} : vector<8x2048xf32>, vector<2048x128xf32>, vector<8x128xf32> -> vector<8x128xf32>
    %c0_23 = arith.constant 0 : index
    %c0_24 = arith.constant 0 : index
    %48 = vector.load %arg6[%c0_23, %c0_24] : memref<1x128xf32, #tpu.memory_space<vmem>>, vector<1x128xf32>
    %49 = vector.broadcast %48 : vector<1x128xf32> to vector<8x128xf32>
    %50 = arith.addf %47, %49 : vector<8x128xf32>
    %c0_25 = arith.constant 0 : index
    %c0_26 = arith.constant 0 : index
    %51 = vector.load %arg7[%c0_25, %c0_26] : memref<8x128xf32, #tpu.memory_space<vmem>>, vector<8x128xf32>
    tpu.vector_store %arg7[%c0_25, %c0_26], %50 {strides = array<i32>} : memref<8x128xf32, #tpu.memory_space<vmem>>, vector<8x128xf32>,
    return
  }
  func.func @transform_0(%arg0: i32, %arg1: i32) -> (i32, i32) {
    %c0_i32 = arith.constant 0 : i32
    return %arg0, %arg1 : i32, i32
  }
  func.func @transform_1(%arg0: i32, %arg1: i32) -> (i32, i32) {
    %c0_i32 = arith.constant 0 : i32
    %c0_i32_0 = arith.constant 0 : i32
    %c0_i32_1 = arith.constant 0 : i32
    return %c0_i32, %c0_i32_0 : i32, i32
  }
  func.func @transform_2(%arg0: i32, %arg1: i32) -> (i32, i32) {
    %c0_i32 = arith.constant 0 : i32
    %c0_i32_0 = arith.constant 0 : i32
    %c0_i32_1 = arith.constant 0 : i32
    return %c0_i32, %c0_i32_0 : i32, i32
  }
  func.func @transform_3(%arg0: i32, %arg1: i32) -> (i32, i32) {
    %c0_i32 = arith.constant 0 : i32
    %c0_i32_0 = arith.constant 0 : i32
    %c0_i32_1 = arith.constant 0 : i32
    return %c0_i32, %c0_i32_0 : i32, i32
  }
  func.func @transform_4(%arg0: i32, %arg1: i32) -> (i32, i32) {
    %c0_i32 = arith.constant 0 : i32
    %c0_i32_0 = arith.constant 0 : i32
    %c0_i32_1 = arith.constant 0 : i32
    return %c0_i32, %c0_i32_0 : i32, i32
  }
  func.func @transform_5(%arg0: i32, %arg1: i32) -> (i32, i32) {
    %c0_i32 = arith.constant 0 : i32
    %c0_i32_0 = arith.constant 0 : i32
    return %arg0, %c0_i32 : i32, i32
  }
}

</mosaic_0001>

<llo_original>
// kernel: tpu_custom_call.1
$region0: #{tpu_custom_call.1}
  #allocation0 [shape = 'u32[]', space=smem, size = 0x4, offset = 0x4, fixed_abs, tag = 'smem constant byte address 0x4 - core index']
  #allocation1 [shape = 'u32[72,128]{1,0:T(1,128)}', space=vmem, size = 0x9000, scoped, tag = 'internal scratch']
  %s0 = inlined_call_operand.hbm [shape: f32[8,32], index: 0, kind: input, shape index: {}]
  %s1 = inlined_call_operand.hbm [shape: f32[32,2048], index: 1, kind: input, shape index: {}]
  %s2 = inlined_call_operand.hbm [shape: f32[1,2048], index: 2, kind: input, shape index: {}]
  %s3 = inlined_call_operand.hbm [shape: f32[2048,128], index: 3, kind: input, shape index: {}]
  %s4 = inlined_call_operand.vmem [shape: f32[1,128], index: 4, kind: input, shape index: {}]
  %s5 = inlined_call_operand.hbm [shape: f32[8,128], index: 5, kind: output, shape index: {}]
  %s6 = sld [smem:[#allocation0]]
  $region46: #{tpu_custom_call.1} parent=0
    _
  %s8 = ssub.s32 1, %s6
  %s9 = scalar_select 0, %s8, %s6
  $region1: #{tpu_custom_call.1} parent=0
    #allocation2 [shape = 'u8[4096]{0}', space=vmem, size = 0x1000, scoped, tag = 'input window, operand 0, single buffered']
    #allocation3 [shape = 's32[1]{0}', space=sflag, size = 0x4, scoped, tag = 'scoped memory for tpu_custom_call.1']
    #allocation4 [shape = 's32[1]{0}', space=sflag, size = 0x4, scoped, tag = 'scoped memory for tpu_custom_call.1']
    #allocation5 [shape = 'u8[262144]{0}', space=vmem, size = 0x40000, scoped, tag = 'input window, operand 1, single buffered']
    #allocation6 [shape = 's32[1]{0}', space=sflag, size = 0x4, scoped, tag = 'scoped memory for tpu_custom_call.1']
    #allocation7 [shape = 'u8[8192]{0}', space=vmem, size = 0x2000, scoped, tag = 'input window, operand 2, single buffered']
    #allocation8 [shape = 'u8[1048576]{0}', space=vmem, size = 0x100000, scoped, tag = 'input window, operand 3, single buffered']
    #allocation9 [shape = 's32[1]{0}', space=sflag, size = 0x4, scoped, tag = 'scoped memory for tpu_custom_call.1']
    #allocation10 [shape = 'u8[4096]{0}', space=vmem, size = 0x1000, scoped, tag = 'output window, operand 0, single buffered']
    %10 = vsyncpa [#allocation3], 0
    %11 = vsyncpa [#allocation6], 0
    %12 = vsyncpa [#allocation9], 0
    %13 = vsyncpa [#allocation4], 0
    // Predicated region
    $region2: #{tpu_custom_call.1} parent=1 // pred_check
      _
    $region3: #{tpu_custom_call.1} parent=1 // pred_check_branch
      %15 = sbr.rel (0) target = $region5
    $region4: #{tpu_custom_call.1} parent=1 // pred_region
      %17 = vsyncadd [#allocation3], 0
      %s19 = sshll.u32 %s0, 4
      %s20 = int_to_ptr.hbm [resolvable:$true] %s19
      %s21 = sshll.u32 [#allocation2], 4
      %s22 = int_to_ptr.vmem [resolvable:$true] %s21
      %24 = dma.hbm_to_vmem [thread:$0]  %s20, 128, %s22, [#allocation3]
    $region5: #{tpu_custom_call.1} parent=1 // pred_fallthru
      _
    // Predicated region
    $region6: #{tpu_custom_call.1} parent=1 // pred_check
      _
    $region7: #{tpu_custom_call.1} parent=1 // pred_check_branch
      %26 = sbr.rel (0) target = $region9
    $region8: #{tpu_custom_call.1} parent=1 // pred_region
      %28 = vsyncadd [#allocation6], 0
      %s29 = sshll.u32 %s1, 4
      %s30 = int_to_ptr.hbm [resolvable:$true] %s29
      %s31 = sshll.u32 [#allocation5], 4
      %s32 = int_to_ptr.vmem [resolvable:$true] %s31
      %37 = dma.hbm_to_vmem [thread:$0]  %s30, 8192, %s32, [#allocation6], 2048, 2048, 128
    $region9: #{tpu_custom_call.1} parent=1 // pred_fallthru
      _
    // Predicated region
    $region10: #{tpu_custom_call.1} parent=1 // pred_check
      _
    $region11: #{tpu_custom_call.1} parent=1 // pred_check_branch
      %39 = sbr.rel (0) target = $region13
    $region12: #{tpu_custom_call.1} parent=1 // pred_region
      %41 = vsyncadd [#allocation6], 0
      %s43 = sshll.u32 %s2, 4
      %s44 = int_to_ptr.hbm [resolvable:$true] %s43
      %s45 = sshll.u32 [#allocation7], 4
      %s46 = int_to_ptr.vmem [resolvable:$true] %s45
      %48 = dma.hbm_to_vmem [thread:$0]  %s44, 256, %s46, [#allocation6]
    $region13: #{tpu_custom_call.1} parent=1 // pred_fallthru
      _
    // Predicated region
    $region14: #{tpu_custom_call.1} parent=1 // pred_check
      _
    $region15: #{tpu_custom_call.1} parent=1 // pred_check_branch
      %50 = sbr.rel (0) target = $region17
    $region16: #{tpu_custom_call.1} parent=1 // pred_region
      %52 = vsyncadd [#allocation9], 0
      %s53 = sshll.u32 %s3, 4
      %s54 = int_to_ptr.hbm [resolvable:$true] %s53
      %s55 = sshll.u32 [#allocation8], 4
      %s56 = int_to_ptr.vmem [resolvable:$true] %s55
      %61 = dma.hbm_to_vmem [thread:$0]  %s54, 32768, %s56, [#allocation9], 128, 128, 8
    $region17: #{tpu_custom_call.1} parent=1 // pred_fallthru
      _
    // Predicated region
    $region18: #{tpu_custom_call.1} parent=1 // pred_check
      _
    $region19: #{tpu_custom_call.1} parent=1 // pred_check_branch
      %63 = sbr.rel (0) target = $region21
    $region20: #{tpu_custom_call.1} parent=1 // pred_region
      _
    $region21: #{tpu_custom_call.1} parent=1 // pred_fallthru
      _
    // Predicated region
    $region22: #{tpu_custom_call.1} parent=1 // pred_check
      _
    $region23: #{tpu_custom_call.1} parent=1 // pred_check_branch
      %65 = sbr.rel (0) target = $region25
    $region24: #{tpu_custom_call.1} parent=1 // pred_region
      %67 = dma.done [#allocation3], 128
    $region25: #{tpu_custom_call.1} parent=1 // pred_fallthru
      _
    // Predicated region
    $region26: #{tpu_custom_call.1} parent=1 // pred_check
      _
    $region27: #{tpu_custom_call.1} parent=1 // pred_check_branch
      %69 = sbr.rel (0) target = $region29
    $region28: #{tpu_custom_call.1} parent=1 // pred_region
      %71 = dma.done [#allocation6], 8192
    $region29: #{tpu_custom_call.1} parent=1 // pred_fallthru
      _
    // Predicated region
    $region30: #{tpu_custom_call.1} parent=1 // pred_check
      _
    $region31: #{tpu_custom_call.1} parent=1 // pred_check_branch
      %73 = sbr.rel (0) target = $region33
    $region32: #{tpu_custom_call.1} parent=1 // pred_region
      %75 = dma.done [#allocation6], 256
    $region33: #{tpu_custom_call.1} parent=1 // pred_fallthru
      _
    // Predicated region
    $region34: #{tpu_custom_call.1} parent=1 // pred_check
      _
    $region35: #{tpu_custom_call.1} parent=1 // pred_check_branch
      %77 = sbr.rel (0) target = $region37
    $region36: #{tpu_custom_call.1} parent=1 // pred_region
      %79 = dma.done [#allocation9], 32768
    $region37: #{tpu_custom_call.1} parent=1 // pred_fallthru
      _
    %v80 = vld [vmem:[#allocation2] sm:$0xff]
    %v81 = vld [vmem:[#allocation5] sm:$0xff]
    %v82 = vld [vmem:[#allocation5 + $0x8] sm:$0xff]
    %v83 = vld [vmem:[#allocation5 + $0x10] sm:$0xff]
    %v84 = vld [vmem:[#allocation5 + $0x18] sm:$0xff]
    %v85 = vld [vmem:[#allocation5 + $0x20] sm:$0xff]
    %v86 = vld [vmem:[#allocation5 + $0x28] sm:$0xff]
    %v87 = vld [vmem:[#allocation5 + $0x30] sm:$0xff]
    %v88 = vld [vmem:[#allocation5 + $0x38] sm:$0xff]
    %v89 = vld [vmem:[#allocation5 + $0x40] sm:$0xff]
    %v90 = vld [vmem:[#allocation5 + $0x48] sm:$0xff]
    %v91 = vld [vmem:[#allocation5 + $0x50] sm:$0xff]
    %v92 = vld [vmem:[#allocation5 + $0x58] sm:$0xff]
    %v93 = vld [vmem:[#allocation5 + $0x60] sm:$0xff]
    %v94 = vld [vmem:[#allocation5 + $0x68] sm:$0xff]
    %v95 = vld [vmem:[#allocation5 + $0x70] sm:$0xff]
    %v96 = vld [vmem:[#allocation5 + $0x78] sm:$0xff]
    %v97 = vld [vmem:[#allocation5 + $0x80] sm:$0xff]
    %v98 = vld [vmem:[#allocation5 + $0x88] sm:$0xff]
    %v99 = vld [vmem:[#allocation5 + $0x90] sm:$0xff]
    %v100 = vld [vmem:[#allocation5 + $0x98] sm:$0xff]
    %v101 = vld [vmem:[#allocation5 + $0xa0] sm:$0xff]
    %v102 = vld [vmem:[#allocation5 + $0xa8] sm:$0xff]
    %v103 = vld [vmem:[#allocation5 + $0xb0] sm:$0xff]
    %v104 = vld [vmem:[#allocation5 + $0xb8] sm:$0xff]
    %v105 = vld [vmem:[#allocation5 + $0xc0] sm:$0xff]
    %v106 = vld [vmem:[#allocation5 + $0xc8] sm:$0xff]
    %v107 = vld [vmem:[#allocation5 + $0xd0] sm:$0xff]
    %v108 = vld [vmem:[#allocation5 + $0xd8] sm:$0xff]
    %v109 = vld [vmem:[#allocation5 + $0xe0] sm:$0xff]
    %v110 = vld [vmem:[#allocation5 + $0xe8] sm:$0xff]
    %v111 = vld [vmem:[#allocation5 + $0xf0] sm:$0xff]
    %v112 = vld [vmem:[#allocation5 + $0xf8] sm:$0xff]
    %v113 = vld [vmem:[#allocation5 + $0x100] sm:$0xff]
    %v114 = vld [vmem:[#allocation5 + $0x108] sm:$0xff]
    %v115 = vld [vmem:[#allocation5 + $0x110] sm:$0xff]
    %v116 = vld [vmem:[#allocation5 + $0x118] sm:$0xff]
    %v117 = vld [vmem:[#allocation5 + $0x120] sm:$0xff]
    %v118 = vld [vmem:[#allocation5 + $0x128] sm:$0xff]
    %v119 = vld [vmem:[#allocation5 + $0x130] sm:$0xff]
    %v120 = vld [vmem:[#allocation5 + $0x138] sm:$0xff]
    %v121 = vld [vmem:[#allocation5 + $0x140] sm:$0xff]
    %v122 = vld [vmem:[#allocation5 + $0x148] sm:$0xff]
    %v123 = vld [vmem:[#allocation5 + $0x150] sm:$0xff]
    %v124 = vld [vmem:[#allocation5 + $0x158] sm:$0xff]
    %v125 = vld [vmem:[#allocation5 + $0x160] sm:$0xff]
    %v126 = vld [vmem:[#allocation5 + $0x168] sm:$0xff]
    %v127 = vld [vmem:[#allocation5 + $0x170] sm:$0xff]
    %v128 = vld [vmem:[#allocation5 + $0x178] sm:$0xff]
    %v129 = vld [vmem:[#allocation5 + $0x180] sm:$0xff]
    %v130 = vld [vmem:[#allocation5 + $0x188] sm:$0xff]
    %v131 = vld [vmem:[#allocation5 + $0x190] sm:$0xff]
    %v132 = vld [vmem:[#allocation5 + $0x198] sm:$0xff]
    %v133 = vld [vmem:[#allocation5 + $0x1a0] sm:$0xff]
    %v134 = vld [vmem:[#allocation5 + $0x1a8] sm:$0xff]
    %v135 = vld [vmem:[#allocation5 + $0x1b0] sm:$0xff]
    %v136 = vld [vmem:[#allocation5 + $0x1b8] sm:$0xff]
    %v137 = vld [vmem:[#allocation5 + $0x1c0] sm:$0xff]
    %v138 = vld [vmem:[#allocation5 + $0x1c8] sm:$0xff]
    %v139 = vld [vmem:[#allocation5 + $0x1d0] sm:$0xff]
    %v140 = vld [vmem:[#allocation5 + $0x1d8] sm:$0xff]
    %v141 = vld [vmem:[#allocation5 + $0x1e0] sm:$0xff]
    %v142 = vld [vmem:[#allocation5 + $0x1e8] sm:$0xff]
    %v143 = vld [vmem:[#allocation5 + $0x1f0] sm:$0xff]
    %v144 = vld [vmem:[#allocation5 + $0x1f8] sm:$0xff]
    %v145 = vld [vmem:[#allocation7] sm:$0xff]
    %v146 = vld [vmem:[#allocation7 + $0x8] sm:$0xff]
    %v149 = vperm.slane %v145, 0
    %v150 = vperm.slane %v145, 1
    %v151 = vperm.slane %v145, 2
    %v152 = vperm.slane %v145, 3
    %v153 = vperm.slane %v145, 4
    %v154 = vperm.slane %v145, 5
    %v155 = vperm.slane %v145, 6
    %v156 = vperm.slane %v145, 7
    %v157 = vperm.slane %v146, 0
    %v158 = vperm.slane %v146, 1
    %v159 = vperm.slane %v146, 2
    %v160 = vperm.slane %v146, 3
    %v161 = vperm.slane %v146, 4
    %v162 = vperm.slane %v146, 5
    %v163 = vperm.slane %v146, 6
    %v164 = vperm.slane %v146, 7
    %vm181 = vcmask 261120
    %v183 = vsel %vm181, %v80, 0
    %185 = vmatpush.msra.mxu0 0.0
    %186 = vmatpush.msra.mxu0 0.0
    %187 = vmatpush.msra.mxu0 0.0
    %188 = vmatpush.msra.mxu0 0.0
    %189 = vmatpush.msra.mxu0 0.0
    %190 = vmatpush.msra.mxu0 0.0
    %191 = vmatpush.msra.mxu0 0.0
    %192 = vmatpush.msra.mxu0 0.0
    %193 = vmatpush.msra.mxu0 0.0
    %194 = vmatpush.msra.mxu0 0.0
    %195 = vmatpush.msra.mxu0 0.0
    %196 = vmatpush.msra.mxu0 0.0
    %197 = vmatpush.msra.mxu0 %v129
    %198 = vmatpush.msra.mxu0 %v113
    %199 = vmatpush.msra.mxu0 %v97
    %200 = vmatpush.msra.mxu0 %v81
    %201 = vmatmul.f32.gmra.mxu0 %v183
    %v202 = vpop.f32.mrf.mxu0
    %v203 = vadd.f32 %v149, %v202
    %204 = vdwg.mxu0
    %205 = vmatpush.msra.mxu0 0.0
    %206 = vmatpush.msra.mxu0 0.0
    %207 = vmatpush.msra.mxu0 0.0
    %208 = vmatpush.msra.mxu0 0.0
    %209 = vmatpush.msra.mxu0 0.0
    %210 = vmatpush.msra.mxu0 0.0
    %211 = vmatpush.msra.mxu0 0.0
    %212 = vmatpush.msra.mxu0 0.0
    %213 = vmatpush.msra.mxu0 0.0
    %214 = vmatpush.msra.mxu0 0.0
    %215 = vmatpush.msra.mxu0 0.0
    %216 = vmatpush.msra.mxu0 0.0
    %217 = vmatpush.msra.mxu0 %v130
    %218 = vmatpush.msra.mxu0 %v114
    %219 = vmatpush.msra.mxu0 %v98
    %220 = vmatpush.msra.mxu0 %v82
    %221 = vmatmul.f32.gmra.mxu0 %v183
    %v222 = vpop.f32.mrf.mxu0
    %v223 = vadd.f32 %v150, %v222
    %224 = vdwg.mxu0
    %225 = vmatpush.msra.mxu0 0.0
    %226 = vmatpush.msra.mxu0 0.0
    %227 = vmatpush.msra.mxu0 0.0
    %228 = vmatpush.msra.mxu0 0.0
    %229 = vmatpush.msra.mxu0 0.0
    %230 = vmatpush.msra.mxu0 0.0
    %231 = vmatpush.msra.mxu0 0.0
    %232 = vmatpush.msra.mxu0 0.0
    %233 = vmatpush.msra.mxu0 0.0
    %234 = vmatpush.msra.mxu0 0.0
    %235 = vmatpush.msra.mxu0 0.0
    %236 = vmatpush.msra.mxu0 0.0
    %237 = vmatpush.msra.mxu0 %v131
    %238 = vmatpush.msra.mxu0 %v115
    %239 = vmatpush.msra.mxu0 %v99
    %240 = vmatpush.msra.mxu0 %v83
    %241 = vmatmul.f32.gmra.mxu0 %v183
    %v242 = vpop.f32.mrf.mxu0
    %v243 = vadd.f32 %v151, %v242
    %244 = vdwg.mxu0
    %245 = vmatpush.msra.mxu0 0.0
    %246 = vmatpush.msra.mxu0 0.0
    %247 = vmatpush.msra.mxu0 0.0
    %248 = vmatpush.msra.mxu0 0.0
    %249 = vmatpush.msra.mxu0 0.0
    %250 = vmatpush.msra.mxu0 0.0
    %251 = vmatpush.msra.mxu0 0.0
    %252 = vmatpush.msra.mxu0 0.0
    %253 = vmatpush.msra.mxu0 0.0
    %254 = vmatpush.msra.mxu0 0.0
    %255 = vmatpush.msra.mxu0 0.0
    %256 = vmatpush.msra.mxu0 0.0
    %257 = vmatpush.msra.mxu0 %v132
    %258 = vmatpush.msra.mxu0 %v116
    %259 = vmatpush.msra.mxu0 %v100
    %260 = vmatpush.msra.mxu0 %v84
    %261 = vmatmul.f32.gmra.mxu0 %v183
    %v262 = vpop.f32.mrf.mxu0
    %v263 = vadd.f32 %v152, %v262
    %264 = vdwg.mxu0
    %265 = vmatpush.msra.mxu0 0.0
    %266 = vmatpush.msra.mxu0 0.0
    %267 = vmatpush.msra.mxu0 0.0
    %268 = vmatpush.msra.mxu0 0.0
    %269 = vmatpush.msra.mxu0 0.0
    %270 = vmatpush.msra.mxu0 0.0
    %271 = vmatpush.msra.mxu0 0.0
    %272 = vmatpush.msra.mxu0 0.0
    %273 = vmatpush.msra.mxu0 0.0
    %274 = vmatpush.msra.mxu0 0.0
    %275 = vmatpush.msra.mxu0 0.0
    %276 = vmatpush.msra.mxu0 0.0
    %277 = vmatpush.msra.mxu0 %v133
    %278 = vmatpush.msra.mxu0 %v117
    %279 = vmatpush.msra.mxu0 %v101
    %280 = vmatpush.msra.mxu0 %v85
    %281 = vmatmul.f32.gmra.mxu0 %v183
    %v282 = vpop.f32.mrf.mxu0
    %v283 = vadd.f32 %v153, %v282
    %284 = vdwg.mxu0
    %285 = vmatpush.msra.mxu0 0.0
    %286 = vmatpush.msra.mxu0 0.0
    %287 = vmatpush.msra.mxu0 0.0
    %288 = vmatpush.msra.mxu0 0.0
    %289 = vmatpush.msra.mxu0 0.0
    %290 = vmatpush.msra.mxu0 0.0
    %291 = vmatpush.msra.mxu0 0.0
    %292 = vmatpush.msra.mxu0 0.0
    %293 = vmatpush.msra.mxu0 0.0
    %294 = vmatpush.msra.mxu0 0.0
    %295 = vmatpush.msra.mxu0 0.0
    %296 = vmatpush.msra.mxu0 0.0
    %297 = vmatpush.msra.mxu0 %v134
    %298 = vmatpush.msra.mxu0 %v118
    %299 = vmatpush.msra.mxu0 %v102
    %300 = vmatpush.msra.mxu0 %v86
    %301 = vmatmul.f32.gmra.mxu0 %v183
    %v302 = vpop.f32.mrf.mxu0
    %v303 = vadd.f32 %v154, %v302
    %304 = vdwg.mxu0
    %305 = vmatpush.msra.mxu0 0.0
    %306 = vmatpush.msra.mxu0 0.0
    %307 = vmatpush.msra.mxu0 0.0
    %308 = vmatpush.msra.mxu0 0.0
    %309 = vmatpush.msra.mxu0 0.0
    %310 = vmatpush.msra.mxu0 0.0
    %311 = vmatpush.msra.mxu0 0.0
    %312 = vmatpush.msra.mxu0 0.0
    %313 = vmatpush.msra.mxu0 0.0
    %314 = vmatpush.msra.mxu0 0.0
    %315 = vmatpush.msra.mxu0 0.0
    %316 = vmatpush.msra.mxu0 0.0
    %317 = vmatpush.msra.mxu0 %v135
    %318 = vmatpush.msra.mxu0 %v119
    %319 = vmatpush.msra.mxu0 %v103
    %320 = vmatpush.msra.mxu0 %v87
    %321 = vmatmul.f32.gmra.mxu0 %v183
    %v322 = vpop.f32.mrf.mxu0
    %v323 = vadd.f32 %v155, %v322
    %324 = vdwg.mxu0
    %325 = vmatpush.msra.mxu0 0.0
    %326 = vmatpush.msra.mxu0 0.0
    %327 = vmatpush.msra.mxu0 0.0
    %328 = vmatpush.msra.mxu0 0.0
    %329 = vmatpush.msra.mxu0 0.0
    %330 = vmatpush.msra.mxu0 0.0
    %331 = vmatpush.msra.mxu0 0.0
    %332 = vmatpush.msra.mxu0 0.0
    %333 = vmatpush.msra.mxu0 0.0
    %334 = vmatpush.msra.mxu0 0.0
    %335 = vmatpush.msra.mxu0 0.0
    %336 = vmatpush.msra.mxu0 0.0
    %337 = vmatpush.msra.mxu0 %v136
    %338 = vmatpush.msra.mxu0 %v120
    %339 = vmatpush.msra.mxu0 %v104
    %340 = vmatpush.msra.mxu0 %v88
    %341 = vmatmul.f32.gmra.mxu0 %v183
    %v342 = vpop.f32.mrf.mxu0
    %v343 = vadd.f32 %v156, %v342
    %344 = vdwg.mxu0
    %345 = vmatpush.msra.mxu0 0.0
    %346 = vmatpush.msra.mxu0 0.0
    %347 = vmatpush.msra.mxu0 0.0
    %348 = vmatpush.msra.mxu0 0.0
    %349 = vmatpush.msra.mxu0 0.0
    %350 = vmatpush.msra.mxu0 0.0
    %351 = vmatpush.msra.mxu0 0.0
    %352 = vmatpush.msra.mxu0 0.0
    %353 = vmatpush.msra.mxu0 0.0
    %354 = vmatpush.msra.mxu0 0.0
    %355 = vmatpush.msra.mxu0 0.0
    %356 = vmatpush.msra.mxu0 0.0
    %357 = vmatpush.msra.mxu0 %v137
    %358 = vmatpush.msra.mxu0 %v121
    %359 = vmatpush.msra.mxu0 %v105
    %360 = vmatpush.msra.mxu0 %v89
    %361 = vmatmul.f32.gmra.mxu0 %v183
    %v362 = vpop.f32.mrf.mxu0
    %v363 = vadd.f32 %v157, %v362
    %364 = vdwg.mxu0
    %365 = vmatpush.msra.mxu0 0.0
    %366 = vmatpush.msra.mxu0 0.0
    %367 = vmatpush.msra.mxu0 0.0
    %368 = vmatpush.msra.mxu0 0.0
    %369 = vmatpush.msra.mxu0 0.0
    %370 = vmatpush.msra.mxu0 0.0
    %371 = vmatpush.msra.mxu0 0.0
    %372 = vmatpush.msra.mxu0 0.0
    %373 = vmatpush.msra.mxu0 0.0
    %374 = vmatpush.msra.mxu0 0.0
    %375 = vmatpush.msra.mxu0 0.0
    %376 = vmatpush.msra.mxu0 0.0
    %377 = vmatpush.msra.mxu0 %v138
    %378 = vmatpush.msra.mxu0 %v122
    %379 = vmatpush.msra.mxu0 %v106
    %380 = vmatpush.msra.mxu0 %v90
    %381 = vmatmul.f32.gmra.mxu0 %v183
    %v382 = vpop.f32.mrf.mxu0
    %v383 = vadd.f32 %v158, %v382
    %384 = vdwg.mxu0
    %385 = vmatpush.msra.mxu0 0.0
    %386 = vmatpush.msra.mxu0 0.0
    %387 = vmatpush.msra.mxu0 0.0
    %388 = vmatpush.msra.mxu0 0.0
    %389 = vmatpush.msra.mxu0 0.0
    %390 = vmatpush.msra.mxu0 0.0
    %391 = vmatpush.msra.mxu0 0.0
    %392 = vmatpush.msra.mxu0 0.0
    %393 = vmatpush.msra.mxu0 0.0
    %394 = vmatpush.msra.mxu0 0.0
    %395 = vmatpush.msra.mxu0 0.0
    %396 = vmatpush.msra.mxu0 0.0
    %397 = vmatpush.msra.mxu0 %v139
    %398 = vmatpush.msra.mxu0 %v123
    %399 = vmatpush.msra.mxu0 %v107
    %400 = vmatpush.msra.mxu0 %v91
    %401 = vmatmul.f32.gmra.mxu0 %v183
    %v402 = vpop.f32.mrf.mxu0
    %v403 = vadd.f32 %v159, %v402
    %404 = vdwg.mxu0
    %405 = vmatpush.msra.mxu0 0.0
    %406 = vmatpush.msra.mxu0 0.0
    %407 = vmatpush.msra.mxu0 0.0
    %408 = vmatpush.msra.mxu0 0.0
    %409 = vmatpush.msra.mxu0 0.0
    %410 = vmatpush.msra.mxu0 0.0
    %411 = vmatpush.msra.mxu0 0.0
    %412 = vmatpush.msra.mxu0 0.0
    %413 = vmatpush.msra.mxu0 0.0
    %414 = vmatpush.msra.mxu0 0.0
    %415 = vmatpush.msra.mxu0 0.0
    %416 = vmatpush.msra.mxu0 0.0
    %417 = vmatpush.msra.mxu0 %v140
    %418 = vmatpush.msra.mxu0 %v124
    %419 = vmatpush.msra.mxu0 %v108
    %420 = vmatpush.msra.mxu0 %v92
    %421 = vmatmul.f32.gmra.mxu0 %v183
    %v422 = vpop.f32.mrf.mxu0
    %v423 = vadd.f32 %v160, %v422
    %424 = vdwg.mxu0
    %425 = vmatpush.msra.mxu0 0.0
    %426 = vmatpush.msra.mxu0 0.0
    %427 = vmatpush.msra.mxu0 0.0
    %428 = vmatpush.msra.mxu0 0.0
    %429 = vmatpush.msra.mxu0 0.0
    %430 = vmatpush.msra.mxu0 0.0
    %431 = vmatpush.msra.mxu0 0.0
    %432 = vmatpush.msra.mxu0 0.0
    %433 = vmatpush.msra.mxu0 0.0
    %434 = vmatpush.msra.mxu0 0.0
    %435 = vmatpush.msra.mxu0 0.0
    %436 = vmatpush.msra.mxu0 0.0
    %437 = vmatpush.msra.mxu0 %v141
    %438 = vmatpush.msra.mxu0 %v125
    %439 = vmatpush.msra.mxu0 %v109
    %440 = vmatpush.msra.mxu0 %v93
    %441 = vmatmul.f32.gmra.mxu0 %v183
    %v442 = vpop.f32.mrf.mxu0
    %v443 = vadd.f32 %v161, %v442
    %444 = vdwg.mxu0
    %445 = vmatpush.msra.mxu0 0.0
    %446 = vmatpush.msra.mxu0 0.0
    %447 = vmatpush.msra.mxu0 0.0
    %448 = vmatpush.msra.mxu0 0.0
    %449 = vmatpush.msra.mxu0 0.0
    %450 = vmatpush.msra.mxu0 0.0
    %451 = vmatpush.msra.mxu0 0.0
    %452 = vmatpush.msra.mxu0 0.0
    %453 = vmatpush.msra.mxu0 0.0
    %454 = vmatpush.msra.mxu0 0.0
    %455 = vmatpush.msra.mxu0 0.0
    %456 = vmatpush.msra.mxu0 0.0
    %457 = vmatpush.msra.mxu0 %v142
    %458 = vmatpush.msra.mxu0 %v126
    %459 = vmatpush.msra.mxu0 %v110
    %460 = vmatpush.msra.mxu0 %v94
    %461 = vmatmul.f32.gmra.mxu0 %v183
    %v462 = vpop.f32.mrf.mxu0
    %v463 = vadd.f32 %v162, %v462
    %464 = vdwg.mxu0
    %465 = vmatpush.msra.mxu0 0.0
    %466 = vmatpush.msra.mxu0 0.0
    %467 = vmatpush.msra.mxu0 0.0
    %468 = vmatpush.msra.mxu0 0.0
    %469 = vmatpush.msra.mxu0 0.0
    %470 = vmatpush.msra.mxu0 0.0
    %471 = vmatpush.msra.mxu0 0.0
    %472 = vmatpush.msra.mxu0 0.0
    %473 = vmatpush.msra.mxu0 0.0
    %474 = vmatpush.msra.mxu0 0.0
    %475 = vmatpush.msra.mxu0 0.0
    %476 = vmatpush.msra.mxu0 0.0
    %477 = vmatpush.msra.mxu0 %v143
    %478 = vmatpush.msra.mxu0 %v127
    %479 = vmatpush.msra.mxu0 %v111
    %480 = vmatpush.msra.mxu0 %v95
    %481 = vmatmul.f32.gmra.mxu0 %v183
    %v482 = vpop.f32.mrf.mxu0
    %v483 = vadd.f32 %v163, %v482
    %484 = vdwg.mxu0
    %485 = vmatpush.msra.mxu0 0.0
    %486 = vmatpush.msra.mxu0 0.0
    %487 = vmatpush.msra.mxu0 0.0
    %488 = vmatpush.msra.mxu0 0.0
    %489 = vmatpush.msra.mxu0 0.0
    %490 = vmatpush.msra.mxu0 0.0
    %491 = vmatpush.msra.mxu0 0.0
    %492 = vmatpush.msra.mxu0 0.0
    %493 = vmatpush.msra.mxu0 0.0
    %494 = vmatpush.msra.mxu0 0.0
    %495 = vmatpush.msra.mxu0 0.0
    %496 = vmatpush.msra.mxu0 0.0
    %497 = vmatpush.msra.mxu0 %v144
    %498 = vmatpush.msra.mxu0 %v128
    %499 = vmatpush.msra.mxu0 %v112
    %500 = vmatpush.msra.mxu0 %v96
    %501 = vmatmul.f32.gmra.mxu0 %v183
    %v502 = vpop.f32.mrf.mxu0
    %v503 = vadd.f32 %v164, %v502
    %504 = vdwg.mxu0
    %v505 = vmul.f32 %v203, 0.5
    %v506 = vmul.f32 %v223, 0.5
    %v507 = vmul.f32 %v243, 0.5
    %v508 = vmul.f32 %v263, 0.5
    %v509 = vmul.f32 %v283, 0.5
    %v510 = vmul.f32 %v303, 0.5
    %v511 = vmul.f32 %v323, 0.5
    %v512 = vmul.f32 %v343, 0.5
    %v513 = vmul.f32 %v363, 0.5
    %v514 = vmul.f32 %v383, 0.5
    %v515 = vmul.f32 %v403, 0.5
    %v516 = vmul.f32 %v423, 0.5
    %v517 = vmul.f32 %v443, 0.5
    %v518 = vmul.f32 %v463, 0.5
    %v519 = vmul.f32 %v483, 0.5
    %v520 = vmul.f32 %v503, 0.5
    %v521 = vmul.f32 %v203, 0.70710677
    %v522 = vmul.f32 %v223, 0.70710677
    %v523 = vmul.f32 %v243, 0.70710677
    %v524 = vmul.f32 %v263, 0.70710677
    %v525 = vmul.f32 %v283, 0.70710677
    %v526 = vmul.f32 %v303, 0.70710677
    %v527 = vmul.f32 %v323, 0.70710677
    %v528 = vmul.f32 %v343, 0.70710677
    %v529 = vmul.f32 %v363, 0.70710677
    %v530 = vmul.f32 %v383, 0.70710677
    %v531 = vmul.f32 %v403, 0.70710677
    %v532 = vmul.f32 %v423, 0.70710677
    %v533 = vmul.f32 %v443, 0.70710677
    %v534 = vmul.f32 %v463, 0.70710677
    %v535 = vmul.f32 %v483, 0.70710677
    %v536 = vmul.f32 %v503, 0.70710677
    %v537 = vand.u32 2147483647, %v521
    %v538 = vand.u32 2147483647, %v522
    %v539 = vand.u32 2147483647, %v523
    %v540 = vand.u32 2147483647, %v524
    %v541 = vand.u32 2147483647, %v525
    %v542 = vand.u32 2147483647, %v526
    %v543 = vand.u32 2147483647, %v527
    %v544 = vand.u32 2147483647, %v528
    %v545 = vand.u32 2147483647, %v529
    %v546 = vand.u32 2147483647, %v530
    %v547 = vand.u32 2147483647, %v531
    %v548 = vand.u32 2147483647, %v532
    %v549 = vand.u32 2147483647, %v533
    %v550 = vand.u32 2147483647, %v534
    %v551 = vand.u32 2147483647, %v535
    %v552 = vand.u32 2147483647, %v536
    %v553 = vmul.f32 %v537, 0.3275911
    %v554 = vmul.f32 %v538, 0.3275911
    %v555 = vmul.f32 %v539, 0.3275911
    %v556 = vmul.f32 %v540, 0.3275911
    %v557 = vmul.f32 %v541, 0.3275911
    %v558 = vmul.f32 %v542, 0.3275911
    %v559 = vmul.f32 %v543, 0.3275911
    %v560 = vmul.f32 %v544, 0.3275911
    %v561 = vmul.f32 %v545, 0.3275911
    %v562 = vmul.f32 %v546, 0.3275911
    %v563 = vmul.f32 %v547, 0.3275911
    %v564 = vmul.f32 %v548, 0.3275911
    %v565 = vmul.f32 %v549, 0.3275911
    %v566 = vmul.f32 %v550, 0.3275911
    %v567 = vmul.f32 %v551, 0.3275911
    %v568 = vmul.f32 %v552, 0.3275911
    %v569 = vadd.f32 %v553, 1.0
    %v570 = vadd.f32 %v554, 1.0
    %v571 = vadd.f32 %v555, 1.0
    %v572 = vadd.f32 %v556, 1.0
    %v573 = vadd.f32 %v557, 1.0
    %v574 = vadd.f32 %v558, 1.0
    %v575 = vadd.f32 %v559, 1.0
    %v576 = vadd.f32 %v560, 1.0
    %v577 = vadd.f32 %v561, 1.0
    %v578 = vadd.f32 %v562, 1.0
    %v579 = vadd.f32 %v563, 1.0
    %v580 = vadd.f32 %v564, 1.0
    %v581 = vadd.f32 %v565, 1.0
    %v582 = vadd.f32 %v566, 1.0
    %v583 = vadd.f32 %v567, 1.0
    %v584 = vadd.f32 %v568, 1.0
    %v585 = vrcp.pop %v569
    %v586 = vmul.f32 %v569, %v585
    %v587 = vsub.f32 1.0, %v586
    %v588 = vmul.f32 %v585, %v587
    %v589 = vadd.f32 %v585, %v588
    %vm590 = vweird.f32 %v569
    %vm591 = vweird.f32 %v585
    %vm592 = vmor %vm590, %vm591
    %v593 = vsel %vm592, %v585, %v589
    %v594 = vand.u32 2147483647, %v569
    %vm595 = vcmp.eq.f32.partialorder %v594, 8.507059e+37
    %v596 = vand.u32 %v569, 2147483648
    %v597 = vor.u32 1.1754944e-38, %v596
    %v598 = vsel %vm595, %v597, %v593
    %v599 = vmul.f32 1.0, %v598
    %v600 = vrcp.pop %v570
    %v601 = vmul.f32 %v570, %v600
    %v602 = vsub.f32 1.0, %v601
    %v603 = vmul.f32 %v600, %v602
    %v604 = vadd.f32 %v600, %v603
    %vm605 = vweird.f32 %v570
    %vm606 = vweird.f32 %v600
    %vm607 = vmor %vm605, %vm606
    %v608 = vsel %vm607, %v600, %v604
    %v609 = vand.u32 2147483647, %v570
    %vm610 = vcmp.eq.f32.partialorder %v609, 8.507059e+37
    %v611 = vand.u32 %v570, 2147483648
    %v612 = vor.u32 1.1754944e-38, %v611
    %v613 = vsel %vm610, %v612, %v608
    %v614 = vmul.f32 1.0, %v613
    %v615 = vrcp.pop %v571
    %v616 = vmul.f32 %v571, %v615
    %v617 = vsub.f32 1.0, %v616
    %v618 = vmul.f32 %v615, %v617
    %v619 = vadd.f32 %v615, %v618
    %vm620 = vweird.f32 %v571
    %vm621 = vweird.f32 %v615
    %vm622 = vmor %vm620, %vm621
    %v623 = vsel %vm622, %v615, %v619
    %v624 = vand.u32 2147483647, %v571
    %vm625 = vcmp.eq.f32.partialorder %v624, 8.507059e+37
    %v626 = vand.u32 %v571, 2147483648
    %v627 = vor.u32 1.1754944e-38, %v626
    %v628 = vsel %vm625, %v627, %v623
    %v629 = vmul.f32 1.0, %v628
    %v630 = vrcp.pop %v572
    %v631 = vmul.f32 %v572, %v630
    %v632 = vsub.f32 1.0, %v631
    %v633 = vmul.f32 %v630, %v632
    %v634 = vadd.f32 %v630, %v633
    %vm635 = vweird.f32 %v572
    %vm636 = vweird.f32 %v630
    %vm637 = vmor %vm635, %vm636
    %v638 = vsel %vm637, %v630, %v634
    %v639 = vand.u32 2147483647, %v572
    %vm640 = vcmp.eq.f32.partialorder %v639, 8.507059e+37
    %v641 = vand.u32 %v572, 2147483648
    %v642 = vor.u32 1.1754944e-38, %v641
    %v643 = vsel %vm640, %v642, %v638
    %v644 = vmul.f32 1.0, %v643
    %v645 = vrcp.pop %v573
    %v646 = vmul.f32 %v573, %v645
    %v647 = vsub.f32 1.0, %v646
    %v648 = vmul.f32 %v645, %v647
    %v649 = vadd.f32 %v645, %v648
    %vm650 = vweird.f32 %v573
    %vm651 = vweird.f32 %v645
    %vm652 = vmor %vm650, %vm651
    %v653 = vsel %vm652, %v645, %v649
    %v654 = vand.u32 2147483647, %v573
    %vm655 = vcmp.eq.f32.partialorder %v654, 8.507059e+37
    %v656 = vand.u32 %v573, 2147483648
    %v657 = vor.u32 1.1754944e-38, %v656
    %v658 = vsel %vm655, %v657, %v653
    %v659 = vmul.f32 1.0, %v658
    %v660 = vrcp.pop %v574
    %v661 = vmul.f32 %v574, %v660
    %v662 = vsub.f32 1.0, %v661
    %v663 = vmul.f32 %v660, %v662
    %v664 = vadd.f32 %v660, %v663
    %vm665 = vweird.f32 %v574
    %vm666 = vweird.f32 %v660
    %vm667 = vmor %vm665, %vm666
    %v668 = vsel %vm667, %v660, %v664
    %v669 = vand.u32 2147483647, %v574
    %vm670 = vcmp.eq.f32.partialorder %v669, 8.507059e+37
    %v671 = vand.u32 %v574, 2147483648
    %v672 = vor.u32 1.1754944e-38, %v671
    %v673 = vsel %vm670, %v672, %v668
    %v674 = vmul.f32 1.0, %v673
    %v675 = vrcp.pop %v575
    %v676 = vmul.f32 %v575, %v675
    %v677 = vsub.f32 1.0, %v676
    %v678 = vmul.f32 %v675, %v677
    %v679 = vadd.f32 %v675, %v678
    %vm680 = vweird.f32 %v575
    %vm681 = vweird.f32 %v675
    %vm682 = vmor %vm680, %vm681
    %v683 = vsel %vm682, %v675, %v679
    %v684 = vand.u32 2147483647, %v575
    %vm685 = vcmp.eq.f32.partialorder %v684, 8.507059e+37
    %v686 = vand.u32 %v575, 2147483648
    %v687 = vor.u32 1.1754944e-38, %v686
    %v688 = vsel %vm685, %v687, %v683
    %v689 = vmul.f32 1.0, %v688
    %v690 = vrcp.pop %v576
    %v691 = vmul.f32 %v576, %v690
    %v692 = vsub.f32 1.0, %v691
    %v693 = vmul.f32 %v690, %v692
    %v694 = vadd.f32 %v690, %v693
    %vm695 = vweird.f32 %v576
    %vm696 = vweird.f32 %v690
    %vm697 = vmor %vm695, %vm696
    %v698 = vsel %vm697, %v690, %v694
    %v699 = vand.u32 2147483647, %v576
    %vm700 = vcmp.eq.f32.partialorder %v699, 8.507059e+37
    %v701 = vand.u32 %v576, 2147483648
    %v702 = vor.u32 1.1754944e-38, %v701
    %v703 = vsel %vm700, %v702, %v698
    %v704 = vmul.f32 1.0, %v703
    %v705 = vrcp.pop %v577
    %v706 = vmul.f32 %v577, %v705
    %v707 = vsub.f32 1.0, %v706
    %v708 = vmul.f32 %v705, %v707
    %v709 = vadd.f32 %v705, %v708
    %vm710 = vweird.f32 %v577
    %vm711 = vweird.f32 %v705
    %vm712 = vmor %vm710, %vm711
    %v713 = vsel %vm712, %v705, %v709
    %v714 = vand.u32 2147483647, %v577
    %vm715 = vcmp.eq.f32.partialorder %v714, 8.507059e+37
    %v716 = vand.u32 %v577, 2147483648
    %v717 = vor.u32 1.1754944e-38, %v716
    %v718 = vsel %vm715, %v717, %v713
    %v719 = vmul.f32 1.0, %v718
    %v720 = vrcp.pop %v578
    %v721 = vmul.f32 %v578, %v720
    %v722 = vsub.f32 1.0, %v721
    %v723 = vmul.f32 %v720, %v722
    %v724 = vadd.f32 %v720, %v723
    %vm725 = vweird.f32 %v578
    %vm726 = vweird.f32 %v720
    %vm727 = vmor %vm725, %vm726
    %v728 = vsel %vm727, %v720, %v724
    %v729 = vand.u32 2147483647, %v578
    %vm730 = vcmp.eq.f32.partialorder %v729, 8.507059e+37
    %v731 = vand.u32 %v578, 2147483648
    %v732 = vor.u32 1.1754944e-38, %v731
    %v733 = vsel %vm730, %v732, %v728
    %v734 = vmul.f32 1.0, %v733
    %v735 = vrcp.pop %v579
    %v736 = vmul.f32 %v579, %v735
    %v737 = vsub.f32 1.0, %v736
    %v738 = vmul.f32 %v735, %v737
    %v739 = vadd.f32 %v735, %v738
    %vm740 = vweird.f32 %v579
    %vm741 = vweird.f32 %v735
    %vm742 = vmor %vm740, %vm741
    %v743 = vsel %vm742, %v735, %v739
    %v744 = vand.u32 2147483647, %v579
    %vm745 = vcmp.eq.f32.partialorder %v744, 8.507059e+37
    %v746 = vand.u32 %v579, 2147483648
    %v747 = vor.u32 1.1754944e-38, %v746
    %v748 = vsel %vm745, %v747, %v743
    %v749 = vmul.f32 1.0, %v748
    %v750 = vrcp.pop %v580
    %v751 = vmul.f32 %v580, %v750
    %v752 = vsub.f32 1.0, %v751
    %v753 = vmul.f32 %v750, %v752
    %v754 = vadd.f32 %v750, %v753
    %vm755 = vweird.f32 %v580
    %vm756 = vweird.f32 %v750
    %vm757 = vmor %vm755, %vm756
    %v758 = vsel %vm757, %v750, %v754
    %v759 = vand.u32 2147483647, %v580
    %vm760 = vcmp.eq.f32.partialorder %v759, 8.507059e+37
    %v761 = vand.u32 %v580, 2147483648
    %v762 = vor.u32 1.1754944e-38, %v761
    %v763 = vsel %vm760, %v762, %v758
    %v764 = vmul.f32 1.0, %v763
    %v765 = vrcp.pop %v581
    %v766 = vmul.f32 %v581, %v765
    %v767 = vsub.f32 1.0, %v766
    %v768 = vmul.f32 %v765, %v767
    %v769 = vadd.f32 %v765, %v768
    %vm770 = vweird.f32 %v581
    %vm771 = vweird.f32 %v765
    %vm772 = vmor %vm770, %vm771
    %v773 = vsel %vm772, %v765, %v769
    %v774 = vand.u32 2147483647, %v581
    %vm775 = vcmp.eq.f32.partialorder %v774, 8.507059e+37
    %v776 = vand.u32 %v581, 2147483648
    %v777 = vor.u32 1.1754944e-38, %v776
    %v778 = vsel %vm775, %v777, %v773
    %v779 = vmul.f32 1.0, %v778
    %v780 = vrcp.pop %v582
    %v781 = vmul.f32 %v582, %v780
    %v782 = vsub.f32 1.0, %v781
    %v783 = vmul.f32 %v780, %v782
    %v784 = vadd.f32 %v780, %v783
    %vm785 = vweird.f32 %v582
    %vm786 = vweird.f32 %v780
    %vm787 = vmor %vm785, %vm786
    %v788 = vsel %vm787, %v780, %v784
    %v789 = vand.u32 2147483647, %v582
    %vm790 = vcmp.eq.f32.partialorder %v789, 8.507059e+37
    %v791 = vand.u32 %v582, 2147483648
    %v792 = vor.u32 1.1754944e-38, %v791
    %v793 = vsel %vm790, %v792, %v788
    %v794 = vmul.f32 1.0, %v793
    %v795 = vrcp.pop %v583
    %v796 = vmul.f32 %v583, %v795
    %v797 = vsub.f32 1.0, %v796
    %v798 = vmul.f32 %v795, %v797
    %v799 = vadd.f32 %v795, %v798
    %vm800 = vweird.f32 %v583
    %vm801 = vweird.f32 %v795
    %vm802 = vmor %vm800, %vm801
    %v803 = vsel %vm802, %v795, %v799
    %v804 = vand.u32 2147483647, %v583
    %vm805 = vcmp.eq.f32.partialorder %v804, 8.507059e+37
    %v806 = vand.u32 %v583, 2147483648
    %v807 = vor.u32 1.1754944e-38, %v806
    %v808 = vsel %vm805, %v807, %v803
    %v809 = vmul.f32 1.0, %v808
    %v810 = vrcp.pop %v584
    %v811 = vmul.f32 %v584, %v810
    %v812 = vsub.f32 1.0, %v811
    %v813 = vmul.f32 %v810, %v812
    %v814 = vadd.f32 %v810, %v813
    %vm815 = vweird.f32 %v584
    %vm816 = vweird.f32 %v810
    %vm817 = vmor %vm815, %vm816
    %v818 = vsel %vm817, %v810, %v814
    %v819 = vand.u32 2147483647, %v584
    %vm820 = vcmp.eq.f32.partialorder %v819, 8.507059e+37
    %v821 = vand.u32 %v584, 2147483648
    %v822 = vor.u32 1.1754944e-38, %v821
    %v823 = vsel %vm820, %v822, %v818
    %v824 = vmul.f32 1.0, %v823
    %v825 = vmul.f32 %v599, 1.0614054
    %v826 = vmul.f32 %v614, 1.0614054
    %v827 = vmul.f32 %v629, 1.0614054
    %v828 = vmul.f32 %v644, 1.0614054
    %v829 = vmul.f32 %v659, 1.0614054
    %v830 = vmul.f32 %v674, 1.0614054
    %v831 = vmul.f32 %v689, 1.0614054
    %v832 = vmul.f32 %v704, 1.0614054
    %v833 = vmul.f32 %v719, 1.0614054
    %v834 = vmul.f32 %v734, 1.0614054
    %v835 = vmul.f32 %v749, 1.0614054
    %v836 = vmul.f32 %v764, 1.0614054
    %v837 = vmul.f32 %v779, 1.0614054
    %v838 = vmul.f32 %v794, 1.0614054
    %v839 = vmul.f32 %v809, 1.0614054
    %v840 = vmul.f32 %v824, 1.0614054
    %v841 = vadd.f32 %v825, -1.4531521
    %v842 = vadd.f32 %v826, -1.4531521
    %v843 = vadd.f32 %v827, -1.4531521
    %v844 = vadd.f32 %v828, -1.4531521
    %v845 = vadd.f32 %v829, -1.4531521
    %v846 = vadd.f32 %v830, -1.4531521
    %v847 = vadd.f32 %v831, -1.4531521
    %v848 = vadd.f32 %v832, -1.4531521
    %v849 = vadd.f32 %v833, -1.4531521
    %v850 = vadd.f32 %v834, -1.4531521
    %v851 = vadd.f32 %v835, -1.4531521
    %v852 = vadd.f32 %v836, -1.4531521
    %v853 = vadd.f32 %v837, -1.4531521
    %v854 = vadd.f32 %v838, -1.4531521
    %v855 = vadd.f32 %v839, -1.4531521
    %v856 = vadd.f32 %v840, -1.4531521
    %v857 = vmul.f32 %v841, %v599
    %v858 = vmul.f32 %v842, %v614
    %v859 = vmul.f32 %v843, %v629
    %v860 = vmul.f32 %v844, %v644
    %v861 = vmul.f32 %v845, %v659
    %v862 = vmul.f32 %v846, %v674
    %v863 = vmul.f32 %v847, %v689
    %v864 = vmul.f32 %v848, %v704
    %v865 = vmul.f32 %v849, %v719
    %v866 = vmul.f32 %v850, %v734
    %v867 = vmul.f32 %v851, %v749
    %v868 = vmul.f32 %v852, %v764
    %v869 = vmul.f32 %v853, %v779
    %v870 = vmul.f32 %v854, %v794
    %v871 = vmul.f32 %v855, %v809
    %v872 = vmul.f32 %v856, %v824
    %v873 = vadd.f32 %v857, 1.4214138
    %v874 = vadd.f32 %v858, 1.4214138
    %v875 = vadd.f32 %v859, 1.4214138
    %v876 = vadd.f32 %v860, 1.4214138
    %v877 = vadd.f32 %v861, 1.4214138
    %v878 = vadd.f32 %v862, 1.4214138
    %v879 = vadd.f32 %v863, 1.4214138
    %v880 = vadd.f32 %v864, 1.4214138
    %v881 = vadd.f32 %v865, 1.4214138
    %v882 = vadd.f32 %v866, 1.4214138
    %v883 = vadd.f32 %v867, 1.4214138
    %v884 = vadd.f32 %v868, 1.4214138
    %v885 = vadd.f32 %v869, 1.4214138
    %v886 = vadd.f32 %v870, 1.4214138
    %v887 = vadd.f32 %v871, 1.4214138
    %v888 = vadd.f32 %v872, 1.4214138
    %v889 = vmul.f32 %v873, %v599
    %v890 = vmul.f32 %v874, %v614
    %v891 = vmul.f32 %v875, %v629
    %v892 = vmul.f32 %v876, %v644
    %v893 = vmul.f32 %v877, %v659
    %v894 = vmul.f32 %v878, %v674
    %v895 = vmul.f32 %v879, %v689
    %v896 = vmul.f32 %v880, %v704
    %v897 = vmul.f32 %v881, %v719
    %v898 = vmul.f32 %v882, %v734
    %v899 = vmul.f32 %v883, %v749
    %v900 = vmul.f32 %v884, %v764
    %v901 = vmul.f32 %v885, %v779
    %v902 = vmul.f32 %v886, %v794
    %v903 = vmul.f32 %v887, %v809
    %v904 = vmul.f32 %v888, %v824
    %v905 = vadd.f32 %v889, -0.28449672
    %v906 = vadd.f32 %v890, -0.28449672
    %v907 = vadd.f32 %v891, -0.28449672
    %v908 = vadd.f32 %v892, -0.28449672
    %v909 = vadd.f32 %v893, -0.28449672
    %v910 = vadd.f32 %v894, -0.28449672
    %v911 = vadd.f32 %v895, -0.28449672
    %v912 = vadd.f32 %v896, -0.28449672
    %v913 = vadd.f32 %v897, -0.28449672
    %v914 = vadd.f32 %v898, -0.28449672
    %v915 = vadd.f32 %v899, -0.28449672
    %v916 = vadd.f32 %v900, -0.28449672
    %v917 = vadd.f32 %v901, -0.28449672
    %v918 = vadd.f32 %v902, -0.28449672
    %v919 = vadd.f32 %v903, -0.28449672
    %v920 = vadd.f32 %v904, -0.28449672
    %v921 = vmul.f32 %v905, %v599
    %v922 = vmul.f32 %v906, %v614
    %v923 = vmul.f32 %v907, %v629
    %v924 = vmul.f32 %v908, %v644
    %v925 = vmul.f32 %v909, %v659
    %v926 = vmul.f32 %v910, %v674
    %v927 = vmul.f32 %v911, %v689
    %v928 = vmul.f32 %v912, %v704
    %v929 = vmul.f32 %v913, %v719
    %v930 = vmul.f32 %v914, %v734
    %v931 = vmul.f32 %v915, %v749
    %v932 = vmul.f32 %v916, %v764
    %v933 = vmul.f32 %v917, %v779
    %v934 = vmul.f32 %v918, %v794
    %v935 = vmul.f32 %v919, %v809
    %v936 = vmul.f32 %v920, %v824
    %v937 = vadd.f32 %v921, 0.2548296
    %v938 = vadd.f32 %v922, 0.2548296
    %v939 = vadd.f32 %v923, 0.2548296
    %v940 = vadd.f32 %v924, 0.2548296
    %v941 = vadd.f32 %v925, 0.2548296
    %v942 = vadd.f32 %v926, 0.2548296
    %v943 = vadd.f32 %v927, 0.2548296
    %v944 = vadd.f32 %v928, 0.2548296
    %v945 = vadd.f32 %v929, 0.2548296
    %v946 = vadd.f32 %v930, 0.2548296
    %v947 = vadd.f32 %v931, 0.2548296
    %v948 = vadd.f32 %v932, 0.2548296
    %v949 = vadd.f32 %v933, 0.2548296
    %v950 = vadd.f32 %v934, 0.2548296
    %v951 = vadd.f32 %v935, 0.2548296
    %v952 = vadd.f32 %v936, 0.2548296
    %v953 = vmul.f32 %v937, %v599
    %v954 = vmul.f32 %v938, %v614
    %v955 = vmul.f32 %v939, %v629
    %v956 = vmul.f32 %v940, %v644
    %v957 = vmul.f32 %v941, %v659
    %v958 = vmul.f32 %v942, %v674
    %v959 = vmul.f32 %v943, %v689
    %v960 = vmul.f32 %v944, %v704
    %v961 = vmul.f32 %v945, %v719
    %v962 = vmul.f32 %v946, %v734
    %v963 = vmul.f32 %v947, %v749
    %v964 = vmul.f32 %v948, %v764
    %v965 = vmul.f32 %v949, %v779
    %v966 = vmul.f32 %v950, %v794
    %v967 = vmul.f32 %v951, %v809
    %v968 = vmul.f32 %v952, %v824
    %v969 = vmul.f32 %v537, %v537
    %v970 = vmul.f32 %v538, %v538
    %v971 = vmul.f32 %v539, %v539
    %v972 = vmul.f32 %v540, %v540
    %v973 = vmul.f32 %v541, %v541
    %v974 = vmul.f32 %v542, %v542
    %v975 = vmul.f32 %v543, %v543
    %v976 = vmul.f32 %v544, %v544
    %v977 = vmul.f32 %v545, %v545
    %v978 = vmul.f32 %v546, %v546
    %v979 = vmul.f32 %v547, %v547
    %v980 = vmul.f32 %v548, %v548
    %v981 = vmul.f32 %v549, %v549
    %v982 = vmul.f32 %v550, %v550
    %v983 = vmul.f32 %v551, %v551
    %v984 = vmul.f32 %v552, %v552
    %v985 = vsub.f32 0.0, %v969
    %v986 = vsub.f32 0.0, %v970
    %v987 = vsub.f32 0.0, %v971
    %v988 = vsub.f32 0.0, %v972
    %v989 = vsub.f32 0.0, %v973
    %v990 = vsub.f32 0.0, %v974
    %v991 = vsub.f32 0.0, %v975
    %v992 = vsub.f32 0.0, %v976
    %v993 = vsub.f32 0.0, %v977
    %v994 = vsub.f32 0.0, %v978
    %v995 = vsub.f32 0.0, %v979
    %v996 = vsub.f32 0.0, %v980
    %v997 = vsub.f32 0.0, %v981
    %v998 = vsub.f32 0.0, %v982
    %v999 = vsub.f32 0.0, %v983
    %v1000 = vsub.f32 0.0, %v984
    %v1001 = vmul.f32 %v985, 1.442695
    %v1002 = vpow.pop %v1001
    %v1003 = vmul.f32 %v986, 1.442695
    %v1004 = vpow.pop %v1003
    %v1005 = vmul.f32 %v987, 1.442695
    %v1006 = vpow.pop %v1005
    %v1007 = vmul.f32 %v988, 1.442695
    %v1008 = vpow.pop %v1007
    %v1009 = vmul.f32 %v989, 1.442695
    %v1010 = vpow.pop %v1009
    %v1011 = vmul.f32 %v990, 1.442695
    %v1012 = vpow.pop %v1011
    %v1013 = vmul.f32 %v991, 1.442695
    %v1014 = vpow.pop %v1013
    %v1015 = vmul.f32 %v992, 1.442695
    %v1016 = vpow.pop %v1015
    %v1017 = vmul.f32 %v993, 1.442695
    %v1018 = vpow.pop %v1017
    %v1019 = vmul.f32 %v994, 1.442695
    %v1020 = vpow.pop %v1019
    %v1021 = vmul.f32 %v995, 1.442695
    %v1022 = vpow.pop %v1021
    %v1023 = vmul.f32 %v996, 1.442695
    %v1024 = vpow.pop %v1023
    %v1025 = vmul.f32 %v997, 1.442695
    %v1026 = vpow.pop %v1025
    %v1027 = vmul.f32 %v998, 1.442695
    %v1028 = vpow.pop %v1027
    %v1029 = vmul.f32 %v999, 1.442695
    %v1030 = vpow.pop %v1029
    %v1031 = vmul.f32 %v1000, 1.442695
    %v1032 = vpow.pop %v1031
    %v1033 = vmul.f32 %v953, %v1002
    %v1034 = vmul.f32 %v954, %v1004
    %v1035 = vmul.f32 %v955, %v1006
    %v1036 = vmul.f32 %v956, %v1008
    %v1037 = vmul.f32 %v957, %v1010
    %v1038 = vmul.f32 %v958, %v1012
    %v1039 = vmul.f32 %v959, %v1014
    %v1040 = vmul.f32 %v960, %v1016
    %v1041 = vmul.f32 %v961, %v1018
    %v1042 = vmul.f32 %v962, %v1020
    %v1043 = vmul.f32 %v963, %v1022
    %v1044 = vmul.f32 %v964, %v1024
    %v1045 = vmul.f32 %v965, %v1026
    %v1046 = vmul.f32 %v966, %v1028
    %v1047 = vmul.f32 %v967, %v1030
    %v1048 = vmul.f32 %v968, %v1032
    %v1049 = vsub.f32 1.0, %v1033
    %v1050 = vsub.f32 1.0, %v1034
    %v1051 = vsub.f32 1.0, %v1035
    %v1052 = vsub.f32 1.0, %v1036
    %v1053 = vsub.f32 1.0, %v1037
    %v1054 = vsub.f32 1.0, %v1038
    %v1055 = vsub.f32 1.0, %v1039
    %v1056 = vsub.f32 1.0, %v1040
    %v1057 = vsub.f32 1.0, %v1041
    %v1058 = vsub.f32 1.0, %v1042
    %v1059 = vsub.f32 1.0, %v1043
    %v1060 = vsub.f32 1.0, %v1044
    %v1061 = vsub.f32 1.0, %v1045
    %v1062 = vsub.f32 1.0, %v1046
    %v1063 = vsub.f32 1.0, %v1047
    %v1064 = vsub.f32 1.0, %v1048
    %vm1065 = vcmp.lt.f32.partialorder %v521, 0.0
    %vm1066 = vcmp.lt.f32.partialorder %v522, 0.0
    %vm1067 = vcmp.lt.f32.partialorder %v523, 0.0
    %vm1068 = vcmp.lt.f32.partialorder %v524, 0.0
    %vm1069 = vcmp.lt.f32.partialorder %v525, 0.0
    %vm1070 = vcmp.lt.f32.partialorder %v526, 0.0
    %vm1071 = vcmp.lt.f32.partialorder %v527, 0.0
    %vm1072 = vcmp.lt.f32.partialorder %v528, 0.0
    %vm1073 = vcmp.lt.f32.partialorder %v529, 0.0
    %vm1074 = vcmp.lt.f32.partialorder %v530, 0.0
    %vm1075 = vcmp.lt.f32.partialorder %v531, 0.0
    %vm1076 = vcmp.lt.f32.partialorder %v532, 0.0
    %vm1077 = vcmp.lt.f32.partialorder %v533, 0.0
    %vm1078 = vcmp.lt.f32.partialorder %v534, 0.0
    %vm1079 = vcmp.lt.f32.partialorder %v535, 0.0
    %vm1080 = vcmp.lt.f32.partialorder %v536, 0.0
    %v1081 = vsub.f32 0.0, %v1049
    %v1082 = vsub.f32 0.0, %v1050
    %v1083 = vsub.f32 0.0, %v1051
    %v1084 = vsub.f32 0.0, %v1052
    %v1085 = vsub.f32 0.0, %v1053
    %v1086 = vsub.f32 0.0, %v1054
    %v1087 = vsub.f32 0.0, %v1055
    %v1088 = vsub.f32 0.0, %v1056
    %v1089 = vsub.f32 0.0, %v1057
    %v1090 = vsub.f32 0.0, %v1058
    %v1091 = vsub.f32 0.0, %v1059
    %v1092 = vsub.f32 0.0, %v1060
    %v1093 = vsub.f32 0.0, %v1061
    %v1094 = vsub.f32 0.0, %v1062
    %v1095 = vsub.f32 0.0, %v1063
    %v1096 = vsub.f32 0.0, %v1064
    %v1097 = vsel %vm1065, %v1081, %v1049
    %v1098 = vsel %vm1066, %v1082, %v1050
    %v1099 = vsel %vm1067, %v1083, %v1051
    %v1100 = vsel %vm1068, %v1084, %v1052
    %v1101 = vsel %vm1069, %v1085, %v1053
    %v1102 = vsel %vm1070, %v1086, %v1054
    %v1103 = vsel %vm1071, %v1087, %v1055
    %v1104 = vsel %vm1072, %v1088, %v1056
    %v1105 = vsel %vm1073, %v1089, %v1057
    %v1106 = vsel %vm1074, %v1090, %v1058
    %v1107 = vsel %vm1075, %v1091, %v1059
    %v1108 = vsel %vm1076, %v1092, %v1060
    %v1109 = vsel %vm1077, %v1093, %v1061
    %v1110 = vsel %vm1078, %v1094, %v1062
    %v1111 = vsel %vm1079, %v1095, %v1063
    %v1112 = vsel %vm1080, %v1096, %v1064
    %v1113 = vadd.f32 %v1097, 1.0
    %v1114 = vadd.f32 %v1098, 1.0
    %v1115 = vadd.f32 %v1099, 1.0
    %v1116 = vadd.f32 %v1100, 1.0
    %v1117 = vadd.f32 %v1101, 1.0
    %v1118 = vadd.f32 %v1102, 1.0
    %v1119 = vadd.f32 %v1103, 1.0
    %v1120 = vadd.f32 %v1104, 1.0
    %v1121 = vadd.f32 %v1105, 1.0
    %v1122 = vadd.f32 %v1106, 1.0
    %v1123 = vadd.f32 %v1107, 1.0
    %v1124 = vadd.f32 %v1108, 1.0
    %v1125 = vadd.f32 %v1109, 1.0
    %v1126 = vadd.f32 %v1110, 1.0
    %v1127 = vadd.f32 %v1111, 1.0
    %v1128 = vadd.f32 %v1112, 1.0
    %v1129 = vmul.f32 %v505, %v1113
    %v1130 = vmul.f32 %v506, %v1114
    %v1131 = vmul.f32 %v507, %v1115
    %v1132 = vmul.f32 %v508, %v1116
    %v1133 = vmul.f32 %v509, %v1117
    %v1134 = vmul.f32 %v510, %v1118
    %v1135 = vmul.f32 %v511, %v1119
    %v1136 = vmul.f32 %v512, %v1120
    %v1137 = vmul.f32 %v513, %v1121
    %v1138 = vmul.f32 %v514, %v1122
    %v1139 = vmul.f32 %v515, %v1123
    %v1140 = vmul.f32 %v516, %v1124
    %v1141 = vmul.f32 %v517, %v1125
    %v1142 = vmul.f32 %v518, %v1126
    %v1143 = vmul.f32 %v519, %v1127
    %v1144 = vmul.f32 %v520, %v1128
    %v1145 = vld [vmem:[#allocation8] sm:$0xff]
    %v1146 = vld [vmem:[#allocation8 + $0x8] sm:$0xff]
    %v1147 = vld [vmem:[#allocation8 + $0x10] sm:$0xff]
    %v1148 = vld [vmem:[#allocation8 + $0x18] sm:$0xff]
    %v1149 = vld [vmem:[#allocation8 + $0x20] sm:$0xff]
    %v1150 = vld [vmem:[#allocation8 + $0x28] sm:$0xff]
    %v1151 = vld [vmem:[#allocation8 + $0x30] sm:$0xff]
    %v1152 = vld [vmem:[#allocation8 + $0x38] sm:$0xff]
    %v1153 = vld [vmem:[#allocation8 + $0x40] sm:$0xff]
    %v1154 = vld [vmem:[#allocation8 + $0x48] sm:$0xff]
    %v1155 = vld [vmem:[#allocation8 + $0x50] sm:$0xff]
    %v1156 = vld [vmem:[#allocation8 + $0x58] sm:$0xff]
    %v1157 = vld [vmem:[#allocation8 + $0x60] sm:$0xff]
    %v1158 = vld [vmem:[#allocation8 + $0x68] sm:$0xff]
    %v1159 = vld [vmem:[#allocation8 + $0x70] sm:$0xff]
    %v1160 = vld [vmem:[#allocation8 + $0x78] sm:$0xff]
    %v1161 = vld [vmem:[#allocation8 + $0x80] sm:$0xff]
    %v1162 = vld [vmem:[#allocation8 + $0x88] sm:$0xff]
    %v1163 = vld [vmem:[#allocation8 + $0x90] sm:$0xff]
    %v1164 = vld [vmem:[#allocation8 + $0x98] sm:$0xff]
    %v1165 = vld [vmem:[#allocation8 + $0xa0] sm:$0xff]
    %v1166 = vld [vmem:[#allocation8 + $0xa8] sm:$0xff]
    %v1167 = vld [vmem:[#allocation8 + $0xb0] sm:$0xff]
    %v1168 = vld [vmem:[#allocation8 + $0xb8] sm:$0xff]
    %v1169 = vld [vmem:[#allocation8 + $0xc0] sm:$0xff]
    %v1170 = vld [vmem:[#allocation8 + $0xc8] sm:$0xff]
    %v1171 = vld [vmem:[#allocation8 + $0xd0] sm:$0xff]
    %v1172 = vld [vmem:[#allocation8 + $0xd8] sm:$0xff]
    %v1173 = vld [vmem:[#allocation8 + $0xe0] sm:$0xff]
    %v1174 = vld [vmem:[#allocation8 + $0xe8] sm:$0xff]
    %v1175 = vld [vmem:[#allocation8 + $0xf0] sm:$0xff]
    %v1176 = vld [vmem:[#allocation8 + $0xf8] sm:$0xff]
    %v1177 = vld [vmem:[#allocation8 + $0x100] sm:$0xff]
    %v1178 = vld [vmem:[#allocation8 + $0x108] sm:$0xff]
    %v1179 = vld [vmem:[#allocation8 + $0x110] sm:$0xff]
    %v1180 = vld [vmem:[#allocation8 + $0x118] sm:$0xff]
    %v1181 = vld [vmem:[#allocation8 + $0x120] sm:$0xff]
    %v1182 = vld [vmem:[#allocation8 + $0x128] sm:$0xff]
    %v1183 = vld [vmem:[#allocation8 + $0x130] sm:$0xff]
    %v1184 = vld [vmem:[#allocation8 + $0x138] sm:$0xff]
    %v1185 = vld [vmem:[#allocation8 + $0x140] sm:$0xff]
    %v1186 = vld [vmem:[#allocation8 + $0x148] sm:$0xff]
    %v1187 = vld [vmem:[#allocation8 + $0x150] sm:$0xff]
    %v1188 = vld [vmem:[#allocation8 + $0x158] sm:$0xff]
    %v1189 = vld [vmem:[#allocation8 + $0x160] sm:$0xff]
    %v1190 = vld [vmem:[#allocation8 + $0x168] sm:$0xff]
    %v1191 = vld [vmem:[#allocation8 + $0x170] sm:$0xff]
    %v1192 = vld [vmem:[#allocation8 + $0x178] sm:$0xff]
    %v1193 = vld [vmem:[#allocation8 + $0x180] sm:$0xff]
    %v1194 = vld [vmem:[#allocation8 + $0x188] sm:$0xff]
    %v1195 = vld [vmem:[#allocation8 + $0x190] sm:$0xff]
    %v1196 = vld [vmem:[#allocation8 + $0x198] sm:$0xff]
    %v1197 = vld [vmem:[#allocation8 + $0x1a0] sm:$0xff]
    %v1198 = vld [vmem:[#allocation8 + $0x1a8] sm:$0xff]
    %v1199 = vld [vmem:[#allocation8 + $0x1b0] sm:$0xff]
    %v1200 = vld [vmem:[#allocation8 + $0x1b8] sm:$0xff]
    %v1201 = vld [vmem:[#allocation8 + $0x1c0] sm:$0xff]
    %v1202 = vld [vmem:[#allocation8 + $0x1c8] sm:$0xff]
    %v1203 = vld [vmem:[#allocation8 + $0x1d0] sm:$0xff]
    %v1204 = vld [vmem:[#allocation8 + $0x1d8] sm:$0xff]
    %v1205 = vld [vmem:[#allocation8 + $0x1e0] sm:$0xff]
    %v1206 = vld [vmem:[#allocation8 + $0x1e8] sm:$0xff]
    %v1207 = vld [vmem:[#allocation8 + $0x1f0] sm:$0xff]
    %v1208 = vld [vmem:[#allocation8 + $0x1f8] sm:$0xff]
    %v1209 = vld [vmem:[#allocation8 + $0x200] sm:$0xff]
    %v1210 = vld [vmem:[#allocation8 + $0x208] sm:$0xff]
    %v1211 = vld [vmem:[#allocation8 + $0x210] sm:$0xff]
    %v1212 = vld [vmem:[#allocation8 + $0x218] sm:$0xff]
    %v1213 = vld [vmem:[#allocation8 + $0x220] sm:$0xff]
    %v1214 = vld [vmem:[#allocation8 + $0x228] sm:$0xff]
    %v1215 = vld [vmem:[#allocation8 + $0x230] sm:$0xff]
    %v1216 = vld [vmem:[#allocation8 + $0x238] sm:$0xff]
    %v1217 = vld [vmem:[#allocation8 + $0x240] sm:$0xff]
    %v1218 = vld [vmem:[#allocation8 + $0x248] sm:$0xff]
    %v1219 = vld [vmem:[#allocation8 + $0x250] sm:$0xff]
    %v1220 = vld [vmem:[#allocation8 + $0x258] sm:$0xff]
    %v1221 = vld [vmem:[#allocation8 + $0x260] sm:$0xff]
    %v1222 = vld [vmem:[#allocation8 + $0x268] sm:$0xff]
    %v1223 = vld [vmem:[#allocation8 + $0x270] sm:$0xff]
    %v1224 = vld [vmem:[#allocation8 + $0x278] sm:$0xff]
    %v1225 = vld [vmem:[#allocation8 + $0x280] sm:$0xff]
    %v1226 = vld [vmem:[#allocation8 + $0x288] sm:$0xff]
    %v1227 = vld [vmem:[#allocation8 + $0x290] sm:$0xff]
    %v1228 = vld [vmem:[#allocation8 + $0x298] sm:$0xff]
    %v1229 = vld [vmem:[#allocation8 + $0x2a0] sm:$0xff]
    %v1230 = vld [vmem:[#allocation8 + $0x2a8] sm:$0xff]
    %v1231 = vld [vmem:[#allocation8 + $0x2b0] sm:$0xff]
    %v1232 = vld [vmem:[#allocation8 + $0x2b8] sm:$0xff]
    %v1233 = vld [vmem:[#allocation8 + $0x2c0] sm:$0xff]
    %v1234 = vld [vmem:[#allocation8 + $0x2c8] sm:$0xff]
    %v1235 = vld [vmem:[#allocation8 + $0x2d0] sm:$0xff]
    %v1236 = vld [vmem:[#allocation8 + $0x2d8] sm:$0xff]
    %v1237 = vld [vmem:[#allocation8 + $0x2e0] sm:$0xff]
    %v1238 = vld [vmem:[#allocation8 + $0x2e8] sm:$0xff]
    %v1239 = vld [vmem:[#allocation8 + $0x2f0] sm:$0xff]
    %v1240 = vld [vmem:[#allocation8 + $0x2f8] sm:$0xff]
    %v1241 = vld [vmem:[#allocation8 + $0x300] sm:$0xff]
    %v1242 = vld [vmem:[#allocation8 + $0x308] sm:$0xff]
    %v1243 = vld [vmem:[#allocation8 + $0x310] sm:$0xff]
    %v1244 = vld [vmem:[#allocation8 + $0x318] sm:$0xff]
    %v1245 = vld [vmem:[#allocation8 + $0x320] sm:$0xff]
    %v1246 = vld [vmem:[#allocation8 + $0x328] sm:$0xff]
    %v1247 = vld [vmem:[#allocation8 + $0x330] sm:$0xff]
    %v1248 = vld [vmem:[#allocation8 + $0x338] sm:$0xff]
    %v1249 = vld [vmem:[#allocation8 + $0x340] sm:$0xff]
    %v1250 = vld [vmem:[#allocation8 + $0x348] sm:$0xff]
    %v1251 = vld [vmem:[#allocation8 + $0x350] sm:$0xff]
    %v1252 = vld [vmem:[#allocation8 + $0x358] sm:$0xff]
    %v1253 = vld [vmem:[#allocation8 + $0x360] sm:$0xff]
    %v1254 = vld [vmem:[#allocation8 + $0x368] sm:$0xff]
    %v1255 = vld [vmem:[#allocation8 + $0x370] sm:$0xff]
    %v1256 = vld [vmem:[#allocation8 + $0x378] sm:$0xff]
    %v1257 = vld [vmem:[#allocation8 + $0x380] sm:$0xff]
    %v1258 = vld [vmem:[#allocation8 + $0x388] sm:$0xff]
    %v1259 = vld [vmem:[#allocation8 + $0x390] sm:$0xff]
    %v1260 = vld [vmem:[#allocation8 + $0x398] sm:$0xff]
    %v1261 = vld [vmem:[#allocation8 + $0x3a0] sm:$0xff]
    %v1262 = vld [vmem:[#allocation8 + $0x3a8] sm:$0xff]
    %v1263 = vld [vmem:[#allocation8 + $0x3b0] sm:$0xff]
    %v1264 = vld [vmem:[#allocation8 + $0x3b8] sm:$0xff]
    %v1265 = vld [vmem:[#allocation8 + $0x3c0] sm:$0xff]
    %v1266 = vld [vmem:[#allocation8 + $0x3c8] sm:$0xff]
    %v1267 = vld [vmem:[#allocation8 + $0x3d0] sm:$0xff]
    %v1268 = vld [vmem:[#allocation8 + $0x3d8] sm:$0xff]
    %v1269 = vld [vmem:[#allocation8 + $0x3e0] sm:$0xff]
    %v1270 = vld [vmem:[#allocation8 + $0x3e8] sm:$0xff]
    %v1271 = vld [vmem:[#allocation8 + $0x3f0] sm:$0xff]
    %v1272 = vld [vmem:[#allocation8 + $0x3f8] sm:$0xff]
    %v1273 = vld [vmem:[#allocation8 + $0x400] sm:$0xff]
    %v1274 = vld [vmem:[#allocation8 + $0x408] sm:$0xff]
    %v1275 = vld [vmem:[#allocation8 + $0x410] sm:$0xff]
    %v1276 = vld [vmem:[#allocation8 + $0x418] sm:$0xff]
    %v1277 = vld [vmem:[#allocation8 + $0x420] sm:$0xff]
    %v1278 = vld [vmem:[#allocation8 + $0x428] sm:$0xff]
    %v1279 = vld [vmem:[#allocation8 + $0x430] sm:$0xff]
    %v1280 = vld [vmem:[#allocation8 + $0x438] sm:$0xff]
    %v1281 = vld [vmem:[#allocation8 + $0x440] sm:$0xff]
    %v1282 = vld [vmem:[#allocation8 + $0x448] sm:$0xff]
    %v1283 = vld [vmem:[#allocation8 + $0x450] sm:$0xff]
    %v1284 = vld [vmem:[#allocation8 + $0x458] sm:$0xff]
    %v1285 = vld [vmem:[#allocation8 + $0x460] sm:$0xff]
    %v1286 = vld [vmem:[#allocation8 + $0x468] sm:$0xff]
    %v1287 = vld [vmem:[#allocation8 + $0x470] sm:$0xff]
    %v1288 = vld [vmem:[#allocation8 + $0x478] sm:$0xff]
    %v1289 = vld [vmem:[#allocation8 + $0x480] sm:$0xff]
    %v1290 = vld [vmem:[#allocation8 + $0x488] sm:$0xff]
    %v1291 = vld [vmem:[#allocation8 + $0x490] sm:$0xff]
    %v1292 = vld [vmem:[#allocation8 + $0x498] sm:$0xff]
    %v1293 = vld [vmem:[#allocation8 + $0x4a0] sm:$0xff]
    %v1294 = vld [vmem:[#allocation8 + $0x4a8] sm:$0xff]
    %v1295 = vld [vmem:[#allocation8 + $0x4b0] sm:$0xff]
    %v1296 = vld [vmem:[#allocation8 + $0x4b8] sm:$0xff]
    %v1297 = vld [vmem:[#allocation8 + $0x4c0] sm:$0xff]
    %v1298 = vld [vmem:[#allocation8 + $0x4c8] sm:$0xff]
    %v1299 = vld [vmem:[#allocation8 + $0x4d0] sm:$0xff]
    %v1300 = vld [vmem:[#allocation8 + $0x4d8] sm:$0xff]
    %v1301 = vld [vmem:[#allocation8 + $0x4e0] sm:$0xff]
    %v1302 = vld [vmem:[#allocation8 + $0x4e8] sm:$0xff]
    %v1303 = vld [vmem:[#allocation8 + $0x4f0] sm:$0xff]
    %v1304 = vld [vmem:[#allocation8 + $0x4f8] sm:$0xff]
    %v1305 = vld [vmem:[#allocation8 + $0x500] sm:$0xff]
    %v1306 = vld [vmem:[#allocation8 + $0x508] sm:$0xff]
    %v1307 = vld [vmem:[#allocation8 + $0x510] sm:$0xff]
    %v1308 = vld [vmem:[#allocation8 + $0x518] sm:$0xff]
    %v1309 = vld [vmem:[#allocation8 + $0x520] sm:$0xff]
    %v1310 = vld [vmem:[#allocation8 + $0x528] sm:$0xff]
    %v1311 = vld [vmem:[#allocation8 + $0x530] sm:$0xff]
    %v1312 = vld [vmem:[#allocation8 + $0x538] sm:$0xff]
    %v1313 = vld [vmem:[#allocation8 + $0x540] sm:$0xff]
    %v1314 = vld [vmem:[#allocation8 + $0x548] sm:$0xff]
    %v1315 = vld [vmem:[#allocation8 + $0x550] sm:$0xff]
    %v1316 = vld [vmem:[#allocation8 + $0x558] sm:$0xff]
    %v1317 = vld [vmem:[#allocation8 + $0x560] sm:$0xff]
    %v1318 = vld [vmem:[#allocation8 + $0x568] sm:$0xff]
    %v1319 = vld [vmem:[#allocation8 + $0x570] sm:$0xff]
    %v1320 = vld [vmem:[#allocation8 + $0x578] sm:$0xff]
    %v1321 = vld [vmem:[#allocation8 + $0x580] sm:$0xff]
    %v1322 = vld [vmem:[#allocation8 + $0x588] sm:$0xff]
    %v1323 = vld [vmem:[#allocation8 + $0x590] sm:$0xff]
    %v1324 = vld [vmem:[#allocation8 + $0x598] sm:$0xff]
    %v1325 = vld [vmem:[#allocation8 + $0x5a0] sm:$0xff]
    %v1326 = vld [vmem:[#allocation8 + $0x5a8] sm:$0xff]
    %v1327 = vld [vmem:[#allocation8 + $0x5b0] sm:$0xff]
    %v1328 = vld [vmem:[#allocation8 + $0x5b8] sm:$0xff]
    %v1329 = vld [vmem:[#allocation8 + $0x5c0] sm:$0xff]
    %v1330 = vld [vmem:[#allocation8 + $0x5c8] sm:$0xff]
    %v1331 = vld [vmem:[#allocation8 + $0x5d0] sm:$0xff]
    %v1332 = vld [vmem:[#allocation8 + $0x5d8] sm:$0xff]
    %v1333 = vld [vmem:[#allocation8 + $0x5e0] sm:$0xff]
    %v1334 = vld [vmem:[#allocation8 + $0x5e8] sm:$0xff]
    %v1335 = vld [vmem:[#allocation8 + $0x5f0] sm:$0xff]
    %v1336 = vld [vmem:[#allocation8 + $0x5f8] sm:$0xff]
    %v1337 = vld [vmem:[#allocation8 + $0x600] sm:$0xff]
    %v1338 = vld [vmem:[#allocation8 + $0x608] sm:$0xff]
    %v1339 = vld [vmem:[#allocation8 + $0x610] sm:$0xff]
    %v1340 = vld [vmem:[#allocation8 + $0x618] sm:$0xff]
    %v1341 = vld [vmem:[#allocation8 + $0x620] sm:$0xff]
    %v1342 = vld [vmem:[#allocation8 + $0x628] sm:$0xff]
    %v1343 = vld [vmem:[#allocation8 + $0x630] sm:$0xff]
    %v1344 = vld [vmem:[#allocation8 + $0x638] sm:$0xff]
    %v1345 = vld [vmem:[#allocation8 + $0x640] sm:$0xff]
    %v1346 = vld [vmem:[#allocation8 + $0x648] sm:$0xff]
    %v1347 = vld [vmem:[#allocation8 + $0x650] sm:$0xff]
    %v1348 = vld [vmem:[#allocation8 + $0x658] sm:$0xff]
    %v1349 = vld [vmem:[#allocation8 + $0x660] sm:$0xff]
    %v1350 = vld [vmem:[#allocation8 + $0x668] sm:$0xff]
    %v1351 = vld [vmem:[#allocation8 + $0x670] sm:$0xff]
    %v1352 = vld [vmem:[#allocation8 + $0x678] sm:$0xff]
    %v1353 = vld [vmem:[#allocation8 + $0x680] sm:$0xff]
    %v1354 = vld [vmem:[#allocation8 + $0x688] sm:$0xff]
    %v1355 = vld [vmem:[#allocation8 + $0x690] sm:$0xff]
    %v1356 = vld [vmem:[#allocation8 + $0x698] sm:$0xff]
    %v1357 = vld [vmem:[#allocation8 + $0x6a0] sm:$0xff]
    %v1358 = vld [vmem:[#allocation8 + $0x6a8] sm:$0xff]
    %v1359 = vld [vmem:[#allocation8 + $0x6b0] sm:$0xff]
    %v1360 = vld [vmem:[#allocation8 + $0x6b8] sm:$0xff]
    %v1361 = vld [vmem:[#allocation8 + $0x6c0] sm:$0xff]
    %v1362 = vld [vmem:[#allocation8 + $0x6c8] sm:$0xff]
    %v1363 = vld [vmem:[#allocation8 + $0x6d0] sm:$0xff]
    %v1364 = vld [vmem:[#allocation8 + $0x6d8] sm:$0xff]
    %v1365 = vld [vmem:[#allocation8 + $0x6e0] sm:$0xff]
    %v1366 = vld [vmem:[#allocation8 + $0x6e8] sm:$0xff]
    %v1367 = vld [vmem:[#allocation8 + $0x6f0] sm:$0xff]
    %v1368 = vld [vmem:[#allocation8 + $0x6f8] sm:$0xff]
    %v1369 = vld [vmem:[#allocation8 + $0x700] sm:$0xff]
    %v1370 = vld [vmem:[#allocation8 + $0x708] sm:$0xff]
    %v1371 = vld [vmem:[#allocation8 + $0x710] sm:$0xff]
    %v1372 = vld [vmem:[#allocation8 + $0x718] sm:$0xff]
    %v1373 = vld [vmem:[#allocation8 + $0x720] sm:$0xff]
    %v1374 = vld [vmem:[#allocation8 + $0x728] sm:$0xff]
    %v1375 = vld [vmem:[#allocation8 + $0x730] sm:$0xff]
    %v1376 = vld [vmem:[#allocation8 + $0x738] sm:$0xff]
    %v1377 = vld [vmem:[#allocation8 + $0x740] sm:$0xff]
    %v1378 = vld [vmem:[#allocation8 + $0x748] sm:$0xff]
    %v1379 = vld [vmem:[#allocation8 + $0x750] sm:$0xff]
    %v1380 = vld [vmem:[#allocation8 + $0x758] sm:$0xff]
    %v1381 = vld [vmem:[#allocation8 + $0x760] sm:$0xff]
    %v1382 = vld [vmem:[#allocation8 + $0x768] sm:$0xff]
    %v1383 = vld [vmem:[#allocation8 + $0x770] sm:$0xff]
    %v1384 = vld [vmem:[#allocation8 + $0x778] sm:$0xff]
    %v1385 = vld [vmem:[#allocation8 + $0x780] sm:$0xff]
    %v1386 = vld [vmem:[#allocation8 + $0x788] sm:$0xff]
    %v1387 = vld [vmem:[#allocation8 + $0x790] sm:$0xff]
    %v1388 = vld [vmem:[#allocation8 + $0x798] sm:$0xff]
    %v1389 = vld [vmem:[#allocation8 + $0x7a0] sm:$0xff]
    %v1390 = vld [vmem:[#allocation8 + $0x7a8] sm:$0xff]
    %v1391 = vld [vmem:[#allocation8 + $0x7b0] sm:$0xff]
    %v1392 = vld [vmem:[#allocation8 + $0x7b8] sm:$0xff]
    %v1393 = vld [vmem:[#allocation8 + $0x7c0] sm:$0xff]
    %v1394 = vld [vmem:[#allocation8 + $0x7c8] sm:$0xff]
    %v1395 = vld [vmem:[#allocation8 + $0x7d0] sm:$0xff]
    %v1396 = vld [vmem:[#allocation8 + $0x7d8] sm:$0xff]
    %v1397 = vld [vmem:[#allocation8 + $0x7e0] sm:$0xff]
    %v1398 = vld [vmem:[#allocation8 + $0x7e8] sm:$0xff]
    %v1399 = vld [vmem:[#allocation8 + $0x7f0] sm:$0xff]
    %v1400 = vld [vmem:[#allocation8 + $0x7f8] sm:$0xff]
    %v1401 = vld [vmem:[%s4] sm:$0x1]
    %v1403 = vperm.slane %v1401, 0
    %1405 = vmatpush.msra.mxu0 %v1160
    %1406 = vmatpush.msra.mxu0 %v1159
    %1407 = vmatpush.msra.mxu0 %v1158
    %1408 = vmatpush.msra.mxu0 %v1157
    %1409 = vmatpush.msra.mxu0 %v1156
    %1410 = vmatpush.msra.mxu0 %v1155
    %1411 = vmatpush.msra.mxu0 %v1154
    %1412 = vmatpush.msra.mxu0 %v1153
    %1413 = vmatpush.msra.mxu0 %v1152
    %1414 = vmatpush.msra.mxu0 %v1151
    %1415 = vmatpush.msra.mxu0 %v1150
    %1416 = vmatpush.msra.mxu0 %v1149
    %1417 = vmatpush.msra.mxu0 %v1148
    %1418 = vmatpush.msra.mxu0 %v1147
    %1419 = vmatpush.msra.mxu0 %v1146
    %1420 = vmatpush.msra.mxu0 %v1145
    %1421 = vmatmul.f32.gmra.mxu0 %v1129
    %v1422 = vpop.f32.mrf.mxu0
    %v1423 = vadd.f32 %v1403, %v1422
    %1424 = vdwg.mxu0
    %1425 = vmatpush.msra.mxu0 %v1176
    %1426 = vmatpush.msra.mxu0 %v1175
    %1427 = vmatpush.msra.mxu0 %v1174
    %1428 = vmatpush.msra.mxu0 %v1173
    %1429 = vmatpush.msra.mxu0 %v1172
    %1430 = vmatpush.msra.mxu0 %v1171
    %1431 = vmatpush.msra.mxu0 %v1170
    %1432 = vmatpush.msra.mxu0 %v1169
    %1433 = vmatpush.msra.mxu0 %v1168
    %1434 = vmatpush.msra.mxu0 %v1167
    %1435 = vmatpush.msra.mxu0 %v1166
    %1436 = vmatpush.msra.mxu0 %v1165
    %1437 = vmatpush.msra.mxu0 %v1164
    %1438 = vmatpush.msra.mxu0 %v1163
    %1439 = vmatpush.msra.mxu0 %v1162
    %1440 = vmatpush.msra.mxu0 %v1161
    %1441 = vmatmul.f32.gmra.mxu0 %v1130
    %v1442 = vpop.f32.mrf.mxu0
    %v1443 = vadd.f32 %v1423, %v1442
    %1444 = vdwg.mxu0
    %1445 = vmatpush.msra.mxu0 %v1192
    %1446 = vmatpush.msra.mxu0 %v1191
    %1447 = vmatpush.msra.mxu0 %v1190
    %1448 = vmatpush.msra.mxu0 %v1189
    %1449 = vmatpush.msra.mxu0 %v1188
    %1450 = vmatpush.msra.mxu0 %v1187
    %1451 = vmatpush.msra.mxu0 %v1186
    %1452 = vmatpush.msra.mxu0 %v1185
    %1453 = vmatpush.msra.mxu0 %v1184
    %1454 = vmatpush.msra.mxu0 %v1183
    %1455 = vmatpush.msra.mxu0 %v1182
    %1456 = vmatpush.msra.mxu0 %v1181
    %1457 = vmatpush.msra.mxu0 %v1180
    %1458 = vmatpush.msra.mxu0 %v1179
    %1459 = vmatpush.msra.mxu0 %v1178
    %1460 = vmatpush.msra.mxu0 %v1177
    %1461 = vmatmul.f32.gmra.mxu0 %v1131
    %v1462 = vpop.f32.mrf.mxu0
    %v1463 = vadd.f32 %v1443, %v1462
    %1464 = vdwg.mxu0
    %1465 = vmatpush.msra.mxu0 %v1208
    %1466 = vmatpush.msra.mxu0 %v1207
    %1467 = vmatpush.msra.mxu0 %v1206
    %1468 = vmatpush.msra.mxu0 %v1205
    %1469 = vmatpush.msra.mxu0 %v1204
    %1470 = vmatpush.msra.mxu0 %v1203
    %1471 = vmatpush.msra.mxu0 %v1202
    %1472 = vmatpush.msra.mxu0 %v1201
    %1473 = vmatpush.msra.mxu0 %v1200
    %1474 = vmatpush.msra.mxu0 %v1199
    %1475 = vmatpush.msra.mxu0 %v1198
    %1476 = vmatpush.msra.mxu0 %v1197
    %1477 = vmatpush.msra.mxu0 %v1196
    %1478 = vmatpush.msra.mxu0 %v1195
    %1479 = vmatpush.msra.mxu0 %v1194
    %1480 = vmatpush.msra.mxu0 %v1193
    %1481 = vmatmul.f32.gmra.mxu0 %v1132
    %v1482 = vpop.f32.mrf.mxu0
    %v1483 = vadd.f32 %v1463, %v1482
    %1484 = vdwg.mxu0
    %1485 = vmatpush.msra.mxu0 %v1224
    %1486 = vmatpush.msra.mxu0 %v1223
    %1487 = vmatpush.msra.mxu0 %v1222
    %1488 = vmatpush.msra.mxu0 %v1221
    %1489 = vmatpush.msra.mxu0 %v1220
    %1490 = vmatpush.msra.mxu0 %v1219
    %1491 = vmatpush.msra.mxu0 %v1218
    %1492 = vmatpush.msra.mxu0 %v1217
    %1493 = vmatpush.msra.mxu0 %v1216
    %1494 = vmatpush.msra.mxu0 %v1215
    %1495 = vmatpush.msra.mxu0 %v1214
    %1496 = vmatpush.msra.mxu0 %v1213
    %1497 = vmatpush.msra.mxu0 %v1212
    %1498 = vmatpush.msra.mxu0 %v1211
    %1499 = vmatpush.msra.mxu0 %v1210
    %1500 = vmatpush.msra.mxu0 %v1209
    %1501 = vmatmul.f32.gmra.mxu0 %v1133
    %v1502 = vpop.f32.mrf.mxu0
    %v1503 = vadd.f32 %v1483, %v1502
    %1504 = vdwg.mxu0
    %1505 = vmatpush.msra.mxu0 %v1240
    %1506 = vmatpush.msra.mxu0 %v1239
    %1507 = vmatpush.msra.mxu0 %v1238
    %1508 = vmatpush.msra.mxu0 %v1237
    %1509 = vmatpush.msra.mxu0 %v1236
    %1510 = vmatpush.msra.mxu0 %v1235
    %1511 = vmatpush.msra.mxu0 %v1234
    %1512 = vmatpush.msra.mxu0 %v1233
    %1513 = vmatpush.msra.mxu0 %v1232
    %1514 = vmatpush.msra.mxu0 %v1231
    %1515 = vmatpush.msra.mxu0 %v1230
    %1516 = vmatpush.msra.mxu0 %v1229
    %1517 = vmatpush.msra.mxu0 %v1228
    %1518 = vmatpush.msra.mxu0 %v1227
    %1519 = vmatpush.msra.mxu0 %v1226
    %1520 = vmatpush.msra.mxu0 %v1225
    %1521 = vmatmul.f32.gmra.mxu0 %v1134
    %v1522 = vpop.f32.mrf.mxu0
    %v1523 = vadd.f32 %v1503, %v1522
    %1524 = vdwg.mxu0
    %1525 = vmatpush.msra.mxu0 %v1256
    %1526 = vmatpush.msra.mxu0 %v1255
    %1527 = vmatpush.msra.mxu0 %v1254
    %1528 = vmatpush.msra.mxu0 %v1253
    %1529 = vmatpush.msra.mxu0 %v1252
    %1530 = vmatpush.msra.mxu0 %v1251
    %1531 = vmatpush.msra.mxu0 %v1250
    %1532 = vmatpush.msra.mxu0 %v1249
    %1533 = vmatpush.msra.mxu0 %v1248
    %1534 = vmatpush.msra.mxu0 %v1247
    %1535 = vmatpush.msra.mxu0 %v1246
    %1536 = vmatpush.msra.mxu0 %v1245
    %1537 = vmatpush.msra.mxu0 %v1244
    %1538 = vmatpush.msra.mxu0 %v1243
    %1539 = vmatpush.msra.mxu0 %v1242
    %1540 = vmatpush.msra.mxu0 %v1241
    %1541 = vmatmul.f32.gmra.mxu0 %v1135
    %v1542 = vpop.f32.mrf.mxu0
    %v1543 = vadd.f32 %v1523, %v1542
    %1544 = vdwg.mxu0
    %1545 = vmatpush.msra.mxu0 %v1272
    %1546 = vmatpush.msra.mxu0 %v1271
    %1547 = vmatpush.msra.mxu0 %v1270
    %1548 = vmatpush.msra.mxu0 %v1269
    %1549 = vmatpush.msra.mxu0 %v1268
    %1550 = vmatpush.msra.mxu0 %v1267
    %1551 = vmatpush.msra.mxu0 %v1266
    %1552 = vmatpush.msra.mxu0 %v1265
    %1553 = vmatpush.msra.mxu0 %v1264
    %1554 = vmatpush.msra.mxu0 %v1263
    %1555 = vmatpush.msra.mxu0 %v1262
    %1556 = vmatpush.msra.mxu0 %v1261
    %1557 = vmatpush.msra.mxu0 %v1260
    %1558 = vmatpush.msra.mxu0 %v1259
    %1559 = vmatpush.msra.mxu0 %v1258
    %1560 = vmatpush.msra.mxu0 %v1257
    %1561 = vmatmul.f32.gmra.mxu0 %v1136
    %v1562 = vpop.f32.mrf.mxu0
    %v1563 = vadd.f32 %v1543, %v1562
    %1564 = vdwg.mxu0
    %1565 = vmatpush.msra.mxu0 %v1288
    %1566 = vmatpush.msra.mxu0 %v1287
    %1567 = vmatpush.msra.mxu0 %v1286
    %1568 = vmatpush.msra.mxu0 %v1285
    %1569 = vmatpush.msra.mxu0 %v1284
    %1570 = vmatpush.msra.mxu0 %v1283
    %1571 = vmatpush.msra.mxu0 %v1282
    %1572 = vmatpush.msra.mxu0 %v1281
    %1573 = vmatpush.msra.mxu0 %v1280
    %1574 = vmatpush.msra.mxu0 %v1279
    %1575 = vmatpush.msra.mxu0 %v1278
    %1576 = vmatpush.msra.mxu0 %v1277
    %1577 = vmatpush.msra.mxu0 %v1276
    %1578 = vmatpush.msra.mxu0 %v1275
    %1579 = vmatpush.msra.mxu0 %v1274
    %1580 = vmatpush.msra.mxu0 %v1273
    %1581 = vmatmul.f32.gmra.mxu0 %v1137
    %v1582 = vpop.f32.mrf.mxu0
    %v1583 = vadd.f32 %v1563, %v1582
    %1584 = vdwg.mxu0
    %1585 = vmatpush.msra.mxu0 %v1304
    %1586 = vmatpush.msra.mxu0 %v1303
    %1587 = vmatpush.msra.mxu0 %v1302
    %1588 = vmatpush.msra.mxu0 %v1301
    %1589 = vmatpush.msra.mxu0 %v1300
    %1590 = vmatpush.msra.mxu0 %v1299
    %1591 = vmatpush.msra.mxu0 %v1298
    %1592 = vmatpush.msra.mxu0 %v1297
    %1593 = vmatpush.msra.mxu0 %v1296
    %1594 = vmatpush.msra.mxu0 %v1295
    %1595 = vmatpush.msra.mxu0 %v1294
    %1596 = vmatpush.msra.mxu0 %v1293
    %1597 = vmatpush.msra.mxu0 %v1292
    %1598 = vmatpush.msra.mxu0 %v1291
    %1599 = vmatpush.msra.mxu0 %v1290
    %1600 = vmatpush.msra.mxu0 %v1289
    %1601 = vmatmul.f32.gmra.mxu0 %v1138
    %v1602 = vpop.f32.mrf.mxu0
    %v1603 = vadd.f32 %v1583, %v1602
    %1604 = vdwg.mxu0
    %1605 = vmatpush.msra.mxu0 %v1320
    %1606 = vmatpush.msra.mxu0 %v1319
    %1607 = vmatpush.msra.mxu0 %v1318
    %1608 = vmatpush.msra.mxu0 %v1317
    %1609 = vmatpush.msra.mxu0 %v1316
    %1610 = vmatpush.msra.mxu0 %v1315
    %1611 = vmatpush.msra.mxu0 %v1314
    %1612 = vmatpush.msra.mxu0 %v1313
    %1613 = vmatpush.msra.mxu0 %v1312
    %1614 = vmatpush.msra.mxu0 %v1311
    %1615 = vmatpush.msra.mxu0 %v1310
    %1616 = vmatpush.msra.mxu0 %v1309
    %1617 = vmatpush.msra.mxu0 %v1308
    %1618 = vmatpush.msra.mxu0 %v1307
    %1619 = vmatpush.msra.mxu0 %v1306
    %1620 = vmatpush.msra.mxu0 %v1305
    %1621 = vmatmul.f32.gmra.mxu0 %v1139
    %v1622 = vpop.f32.mrf.mxu0
    %v1623 = vadd.f32 %v1603, %v1622
    %1624 = vdwg.mxu0
    %1625 = vmatpush.msra.mxu0 %v1336
    %1626 = vmatpush.msra.mxu0 %v1335
    %1627 = vmatpush.msra.mxu0 %v1334
    %1628 = vmatpush.msra.mxu0 %v1333
    %1629 = vmatpush.msra.mxu0 %v1332
    %1630 = vmatpush.msra.mxu0 %v1331
    %1631 = vmatpush.msra.mxu0 %v1330
    %1632 = vmatpush.msra.mxu0 %v1329
    %1633 = vmatpush.msra.mxu0 %v1328
    %1634 = vmatpush.msra.mxu0 %v1327
    %1635 = vmatpush.msra.mxu0 %v1326
    %1636 = vmatpush.msra.mxu0 %v1325
    %1637 = vmatpush.msra.mxu0 %v1324
    %1638 = vmatpush.msra.mxu0 %v1323
    %1639 = vmatpush.msra.mxu0 %v1322
    %1640 = vmatpush.msra.mxu0 %v1321
    %1641 = vmatmul.f32.gmra.mxu0 %v1140
    %v1642 = vpop.f32.mrf.mxu0
    %v1643 = vadd.f32 %v1623, %v1642
    %1644 = vdwg.mxu0
    %1645 = vmatpush.msra.mxu0 %v1352
    %1646 = vmatpush.msra.mxu0 %v1351
    %1647 = vmatpush.msra.mxu0 %v1350
    %1648 = vmatpush.msra.mxu0 %v1349
    %1649 = vmatpush.msra.mxu0 %v1348
    %1650 = vmatpush.msra.mxu0 %v1347
    %1651 = vmatpush.msra.mxu0 %v1346
    %1652 = vmatpush.msra.mxu0 %v1345
    %1653 = vmatpush.msra.mxu0 %v1344
    %1654 = vmatpush.msra.mxu0 %v1343
    %1655 = vmatpush.msra.mxu0 %v1342
    %1656 = vmatpush.msra.mxu0 %v1341
    %1657 = vmatpush.msra.mxu0 %v1340
    %1658 = vmatpush.msra.mxu0 %v1339
    %1659 = vmatpush.msra.mxu0 %v1338
    %1660 = vmatpush.msra.mxu0 %v1337
    %1661 = vmatmul.f32.gmra.mxu0 %v1141
    %v1662 = vpop.f32.mrf.mxu0
    %v1663 = vadd.f32 %v1643, %v1662
    %1664 = vdwg.mxu0
    %1665 = vmatpush.msra.mxu0 %v1368
    %1666 = vmatpush.msra.mxu0 %v1367
    %1667 = vmatpush.msra.mxu0 %v1366
    %1668 = vmatpush.msra.mxu0 %v1365
    %1669 = vmatpush.msra.mxu0 %v1364
    %1670 = vmatpush.msra.mxu0 %v1363
    %1671 = vmatpush.msra.mxu0 %v1362
    %1672 = vmatpush.msra.mxu0 %v1361
    %1673 = vmatpush.msra.mxu0 %v1360
    %1674 = vmatpush.msra.mxu0 %v1359
    %1675 = vmatpush.msra.mxu0 %v1358
    %1676 = vmatpush.msra.mxu0 %v1357
    %1677 = vmatpush.msra.mxu0 %v1356
    %1678 = vmatpush.msra.mxu0 %v1355
    %1679 = vmatpush.msra.mxu0 %v1354
    %1680 = vmatpush.msra.mxu0 %v1353
    %1681 = vmatmul.f32.gmra.mxu0 %v1142
    %v1682 = vpop.f32.mrf.mxu0
    %v1683 = vadd.f32 %v1663, %v1682
    %1684 = vdwg.mxu0
    %1685 = vmatpush.msra.mxu0 %v1384
    %1686 = vmatpush.msra.mxu0 %v1383
    %1687 = vmatpush.msra.mxu0 %v1382
    %1688 = vmatpush.msra.mxu0 %v1381
    %1689 = vmatpush.msra.mxu0 %v1380
    %1690 = vmatpush.msra.mxu0 %v1379
    %1691 = vmatpush.msra.mxu0 %v1378
    %1692 = vmatpush.msra.mxu0 %v1377
    %1693 = vmatpush.msra.mxu0 %v1376
    %1694 = vmatpush.msra.mxu0 %v1375
    %1695 = vmatpush.msra.mxu0 %v1374
    %1696 = vmatpush.msra.mxu0 %v1373
    %1697 = vmatpush.msra.mxu0 %v1372
    %1698 = vmatpush.msra.mxu0 %v1371
    %1699 = vmatpush.msra.mxu0 %v1370
    %1700 = vmatpush.msra.mxu0 %v1369
    %1701 = vmatmul.f32.gmra.mxu0 %v1143
    %v1702 = vpop.f32.mrf.mxu0
    %v1703 = vadd.f32 %v1683, %v1702
    %1704 = vdwg.mxu0
    %1705 = vmatpush.msra.mxu0 %v1400
    %1706 = vmatpush.msra.mxu0 %v1399
    %1707 = vmatpush.msra.mxu0 %v1398
    %1708 = vmatpush.msra.mxu0 %v1397
    %1709 = vmatpush.msra.mxu0 %v1396
    %1710 = vmatpush.msra.mxu0 %v1395
    %1711 = vmatpush.msra.mxu0 %v1394
    %1712 = vmatpush.msra.mxu0 %v1393
    %1713 = vmatpush.msra.mxu0 %v1392
    %1714 = vmatpush.msra.mxu0 %v1391
    %1715 = vmatpush.msra.mxu0 %v1390
    %1716 = vmatpush.msra.mxu0 %v1389
    %1717 = vmatpush.msra.mxu0 %v1388
    %1718 = vmatpush.msra.mxu0 %v1387
    %1719 = vmatpush.msra.mxu0 %v1386
    %1720 = vmatpush.msra.mxu0 %v1385
    %1721 = vmatmul.f32.gmra.mxu0 %v1144
    %v1722 = vpop.f32.mrf.mxu0
    %v1723 = vadd.f32 %v1703, %v1722
    %1724 = vdwg.mxu0
    %1725 = vst [vmem:[#allocation10] sm:$0xff] %v1723
    // Predicated region
    $region38: #{tpu_custom_call.1} parent=1 // pred_check
      _
    $region39: #{tpu_custom_call.1} parent=1 // pred_check_branch
      %1727 = sbr.rel (0) target = $region41
    $region40: #{tpu_custom_call.1} parent=1 // pred_region
      %1729 = vsyncadd [#allocation4], 0
      %s1731 = sshll.u32 [#allocation10], 4
      %s1732 = int_to_ptr.vmem [resolvable:$true] %s1731
      %s1733 = sshll.u32 %s5, 4
      %s1734 = int_to_ptr.hbm [resolvable:$true] %s1733
      %1736 = dma.vmem_to_hbm [thread:$0]  %s1732, 128, %s1734, [#allocation4]
    $region41: #{tpu_custom_call.1} parent=1 // pred_fallthru
      _
    // Predicated region
    $region42: #{tpu_custom_call.1} parent=1 // pred_check
      _
    $region43: #{tpu_custom_call.1} parent=1 // pred_check_branch
      %1738 = sbr.rel (0) target = $region45
    $region44: #{tpu_custom_call.1} parent=1 // pred_region
      %1740 = dma.done [#allocation4], 128
    $region45: #{tpu_custom_call.1} parent=1 // pred_fallthru
      _
    %1741 = vsyncpa [#allocation3], 1
    %1742 = vsyncpa [#allocation6], 1
    %1743 = vsyncpa [#allocation9], 1
    %1744 = vsyncpa [#allocation4], 1

// kernel: tpu_custom_call.1
$region0: #{tpu_custom_call.1}
  #allocation0 [shape = 'u32[]', space=smem, size = 0x4, offset = 0x4, fixed_abs, tag = 'smem constant byte address 0x4 - core index']
  #allocation1 [shape = 'u32[72,128]{1,0:T(1,128)}', space=vmem, size = 0x9000, scoped, tag = 'internal scratch']
  %s0 = inlined_call_operand.hbm [shape: f32[8,32], index: 0, kind: input, shape index: {}]
  %s1 = inlined_call_operand.hbm [shape: f32[32,2048], index: 1, kind: input, shape index: {}]
  %s2 = inlined_call_operand.hbm [shape: f32[1,2048], index: 2, kind: input, shape index: {}]
  %s3 = inlined_call_operand.hbm [shape: f32[2048,128], index: 3, kind: input, shape index: {}]
  %s4 = inlined_call_operand.vmem [shape: f32[1,128], index: 4, kind: input, shape index: {}]
  %s5 = inlined_call_operand.hbm [shape: f32[8,128], index: 5, kind: output, shape index: {}]
  %s6 = sld [smem:[#allocation0]]
  $region46: #{tpu_custom_call.1} parent=0
    _
  %s8 = ssub.s32 1, %s6
  %s9 = scalar_select 0, %s8, %s6
  $region1: #{tpu_custom_call.1} parent=0
    #allocation2 [shape = 'u8[4096]{0}', space=vmem, size = 0x1000, scoped, tag = 'input window, operand 0, single buffered']
    #allocation3 [shape = 's32[1]{0}', space=sflag, size = 0x4, scoped, tag = 'scoped memory for tpu_custom_call.1']
    #allocation4 [shape = 's32[1]{0}', space=sflag, size = 0x4, scoped, tag = 'scoped memory for tpu_custom_call.1']
    #allocation5 [shape = 'u8[262144]{0}', space=vmem, size = 0x40000, scoped, tag = 'input window, operand 1, single buffered']
    #allocation6 [shape = 's32[1]{0}', space=sflag, size = 0x4, scoped, tag = 'scoped memory for tpu_custom_call.1']
    #allocation7 [shape = 'u8[8192]{0}', space=vmem, size = 0x2000, scoped, tag = 'input window, operand 2, single buffered']
    #allocation8 [shape = 'u8[1048576]{0}', space=vmem, size = 0x100000, scoped, tag = 'input window, operand 3, single buffered']
    #allocation9 [shape = 's32[1]{0}', space=sflag, size = 0x4, scoped, tag = 'scoped memory for tpu_custom_call.1']
    #allocation10 [shape = 'u8[4096]{0}', space=vmem, size = 0x1000, scoped, tag = 'output window, operand 0, single buffered']
    %10 = vsyncpa [#allocation3], 0
    %11 = vsyncpa [#allocation6], 0
    %12 = vsyncpa [#allocation9], 0
    %13 = vsyncpa [#allocation4], 0
    // Predicated region
    $region2: #{tpu_custom_call.1} parent=1 // pred_check
      _
    $region3: #{tpu_custom_call.1} parent=1 // pred_check_branch
      %15 = sbr.rel (0) target = $region5
    $region4: #{tpu_custom_call.1} parent=1 // pred_region
      %17 = vsyncadd [#allocation3], 0
      %s19 = sshll.u32 %s0, 4
      %s20 = int_to_ptr.hbm [resolvable:$true] %s19
      %s21 = sshll.u32 [#allocation2], 4
      %s22 = int_to_ptr.vmem [resolvable:$true] %s21
      %24 = dma.hbm_to_vmem [thread:$0]  %s20, 128, %s22, [#allocation3]
    $region5: #{tpu_custom_call.1} parent=1 // pred_fallthru
      _
    // Predicated region
    $region6: #{tpu_custom_call.1} parent=1 // pred_check
      _
    $region7: #{tpu_custom_call.1} parent=1 // pred_check_branch
      %26 = sbr.rel (0) target = $region9
    $region8: #{tpu_custom_call.1} parent=1 // pred_region
      %28 = vsyncadd [#allocation6], 0
      %s29 = sshll.u32 %s1, 4
      %s30 = int_to_ptr.hbm [resolvable:$true] %s29
      %s31 = sshll.u32 [#allocation5], 4
      %s32 = int_to_ptr.vmem [resolvable:$true] %s31
      %37 = dma.hbm_to_vmem [thread:$0]  %s30, 8192, %s32, [#allocation6], 2048, 2048, 128
    $region9: #{tpu_custom_call.1} parent=1 // pred_fallthru
      _
    // Predicated region
    $region10: #{tpu_custom_call.1} parent=1 // pred_check
      _
    $region11: #{tpu_custom_call.1} parent=1 // pred_check_branch
      %39 = sbr.rel (0) target = $region13
    $region12: #{tpu_custom_call.1} parent=1 // pred_region
      %41 = vsyncadd [#allocation6], 0
      %s43 = sshll.u32 %s2, 4
      %s44 = int_to_ptr.hbm [resolvable:$true] %s43
      %s45 = sshll.u32 [#allocation7], 4
      %s46 = int_to_ptr.vmem [resolvable:$true] %s45
      %48 = dma.hbm_to_vmem [thread:$0]  %s44, 256, %s46, [#allocation6]
    $region13: #{tpu_custom_call.1} parent=1 // pred_fallthru
      _
    // Predicated region
    $region14: #{tpu_custom_call.1} parent=1 // pred_check
      _
    $region15: #{tpu_custom_call.1} parent=1 // pred_check_branch
      %50 = sbr.rel (0) target = $region17
    $region16: #{tpu_custom_call.1} parent=1 // pred_region
      %52 = vsyncadd [#allocation9], 0
      %s53 = sshll.u32 %s3, 4
      %s54 = int_to_ptr.hbm [resolvable:$true] %s53
      %s55 = sshll.u32 [#allocation8], 4
      %s56 = int_to_ptr.vmem [resolvable:$true] %s55
      %61 = dma.hbm_to_vmem [thread:$0]  %s54, 32768, %s56, [#allocation9], 128, 128, 8
    $region17: #{tpu_custom_call.1} parent=1 // pred_fallthru
      _
    // Predicated region
    $region18: #{tpu_custom_call.1} parent=1 // pred_check
      _
    $region19: #{tpu_custom_call.1} parent=1 // pred_check_branch
      %63 = sbr.rel (0) target = $region21
    $region20: #{tpu_custom_call.1} parent=1 // pred_region
      _
    $region21: #{tpu_custom_call.1} parent=1 // pred_fallthru
      _
    // Predicated region
    $region22: #{tpu_custom_call.1} parent=1 // pred_check
      _
    $region23: #{tpu_custom_call.1} parent=1 // pred_check_branch
      %65 = sbr.rel (0) target = $region25
    $region24: #{tpu_custom_call.1} parent=1 // pred_region
      %67 = dma.done [#allocation3], 128
    $region25: #{tpu_custom_call.1} parent=1 // pred_fallthru
      _
    // Predicated region
    $region26: #{tpu_custom_call.1} parent=1 // pred_check
      _
    $region27: #{tpu_custom_call.1} parent=1 // pred_check_branch
      %69 = sbr.rel (0) target = $region29
    $region28: #{tpu_custom_call.1} parent=1 // pred_region
      %71 = dma.done [#allocation6], 8192
    $region29: #{tpu_custom_call.1} parent=1 // pred_fallthru
      _
    // Predicated region
    $region30: #{tpu_custom_call.1} parent=1 // pred_check
      _
    $region31: #{tpu_custom_call.1} parent=1 // pred_check_branch
      %73 = sbr.rel (0) target = $region33
    $region32: #{tpu_custom_call.1} parent=1 // pred_region
      %75 = dma.done [#allocation6], 256
    $region33: #{tpu_custom_call.1} parent=1 // pred_fallthru
      _
    // Predicated region
    $region34: #{tpu_custom_call.1} parent=1 // pred_check
      _
    $region35: #{tpu_custom_call.1} parent=1 // pred_check_branch
      %77 = sbr.rel (0) target = $region37
    $region36: #{tpu_custom_call.1} parent=1 // pred_region
      %79 = dma.done [#allocation9], 32768
    $region37: #{tpu_custom_call.1} parent=1 // pred_fallthru
      _
    %v80 = vld [vmem:[#allocation2] sm:$0xff]
    %v81 = vld [vmem:[#allocation5] sm:$0xff]
    %v82 = vld [vmem:[#allocation5 + $0x8] sm:$0xff]
    %v83 = vld [vmem:[#allocation5 + $0x10] sm:$0xff]
    %v84 = vld [vmem:[#allocation5 + $0x18] sm:$0xff]
    %v85 = vld [vmem:[#allocation5 + $0x20] sm:$0xff]
    %v86 = vld [vmem:[#allocation5 + $0x28] sm:$0xff]
    %v87 = vld [vmem:[#allocation5 + $0x30] sm:$0xff]
    %v88 = vld [vmem:[#allocation5 + $0x38] sm:$0xff]
    %v89 = vld [vmem:[#allocation5 + $0x40] sm:$0xff]
    %v90 = vld [vmem:[#allocation5 + $0x48] sm:$0xff]
    %v91 = vld [vmem:[#allocation5 + $0x50] sm:$0xff]
    %v92 = vld [vmem:[#allocation5 + $0x58] sm:$0xff]
    %v93 = vld [vmem:[#allocation5 + $0x60] sm:$0xff]
    %v94 = vld [vmem:[#allocation5 + $0x68] sm:$0xff]
    %v95 = vld [vmem:[#allocation5 + $0x70] sm:$0xff]
    %v96 = vld [vmem:[#allocation5 + $0x78] sm:$0xff]
    %v97 = vld [vmem:[#allocation5 + $0x80] sm:$0xff]
    %v98 = vld [vmem:[#allocation5 + $0x88] sm:$0xff]
    %v99 = vld [vmem:[#allocation5 + $0x90] sm:$0xff]
    %v100 = vld [vmem:[#allocation5 + $0x98] sm:$0xff]
    %v101 = vld [vmem:[#allocation5 + $0xa0] sm:$0xff]
    %v102 = vld [vmem:[#allocation5 + $0xa8] sm:$0xff]
    %v103 = vld [vmem:[#allocation5 + $0xb0] sm:$0xff]
    %v104 = vld [vmem:[#allocation5 + $0xb8] sm:$0xff]
    %v105 = vld [vmem:[#allocation5 + $0xc0] sm:$0xff]
    %v106 = vld [vmem:[#allocation5 + $0xc8] sm:$0xff]
    %v107 = vld [vmem:[#allocation5 + $0xd0] sm:$0xff]
    %v108 = vld [vmem:[#allocation5 + $0xd8] sm:$0xff]
    %v109 = vld [vmem:[#allocation5 + $0xe0] sm:$0xff]
    %v110 = vld [vmem:[#allocation5 + $0xe8] sm:$0xff]
    %v111 = vld [vmem:[#allocation5 + $0xf0] sm:$0xff]
    %v112 = vld [vmem:[#allocation5 + $0xf8] sm:$0xff]
    %v113 = vld [vmem:[#allocation5 + $0x100] sm:$0xff]
    %v114 = vld [vmem:[#allocation5 + $0x108] sm:$0xff]
    %v115 = vld [vmem:[#allocation5 + $0x110] sm:$0xff]
    %v116 = vld [vmem:[#allocation5 + $0x118] sm:$0xff]
    %v117 = vld [vmem:[#allocation5 + $0x120] sm:$0xff]
    %v118 = vld [vmem:[#allocation5 + $0x128] sm:$0xff]
    %v119 = vld [vmem:[#allocation5 + $0x130] sm:$0xff]
    %v120 = vld [vmem:[#allocation5 + $0x138] sm:$0xff]
    %v121 = vld [vmem:[#allocation5 + $0x140] sm:$0xff]
    %v122 = vld [vmem:[#allocation5 + $0x148] sm:$0xff]
    %v123 = vld [vmem:[#allocation5 + $0x150] sm:$0xff]
    %v124 = vld [vmem:[#allocation5 + $0x158] sm:$0xff]
    %v125 = vld [vmem:[#allocation5 + $0x160] sm:$0xff]
    %v126 = vld [vmem:[#allocation5 + $0x168] sm:$0xff]
    %v127 = vld [vmem:[#allocation5 + $0x170] sm:$0xff]
    %v128 = vld [vmem:[#allocation5 + $0x178] sm:$0xff]
    %v129 = vld [vmem:[#allocation5 + $0x180] sm:$0xff]
    %v130 = vld [vmem:[#allocation5 + $0x188] sm:$0xff]
    %v131 = vld [vmem:[#allocation5 + $0x190] sm:$0xff]
    %v132 = vld [vmem:[#allocation5 + $0x198] sm:$0xff]
    %v133 = vld [vmem:[#allocation5 + $0x1a0] sm:$0xff]
    %v134 = vld [vmem:[#allocation5 + $0x1a8] sm:$0xff]
    %v135 = vld [vmem:[#allocation5 + $0x1b0] sm:$0xff]
    %v136 = vld [vmem:[#allocation5 + $0x1b8] sm:$0xff]
    %v137 = vld [vmem:[#allocation5 + $0x1c0] sm:$0xff]
    %v138 = vld [vmem:[#allocation5 + $0x1c8] sm:$0xff]
    %v139 = vld [vmem:[#allocation5 + $0x1d0] sm:$0xff]
    %v140 = vld [vmem:[#allocation5 + $0x1d8] sm:$0xff]
    %v141 = vld [vmem:[#allocation5 + $0x1e0] sm:$0xff]
    %v142 = vld [vmem:[#allocation5 + $0x1e8] sm:$0xff]
    %v143 = vld [vmem:[#allocation5 + $0x1f0] sm:$0xff]
    %v144 = vld [vmem:[#allocation5 + $0x1f8] sm:$0xff]
    %v145 = vld [vmem:[#allocation7] sm:$0xff]
    %v146 = vld [vmem:[#allocation7 + $0x8] sm:$0xff]
    %v149 = vperm.slane %v145, 0
    %v150 = vperm.slane %v145, 1
    %v151 = vperm.slane %v145, 2
    %v152 = vperm.slane %v145, 3
    %v153 = vperm.slane %v145, 4
    %v154 = vperm.slane %v145, 5
    %v155 = vperm.slane %v145, 6
    %v156 = vperm.slane %v145, 7
    %v157 = vperm.slane %v146, 0
    %v158 = vperm.slane %v146, 1
    %v159 = vperm.slane %v146, 2
    %v160 = vperm.slane %v146, 3
    %v161 = vperm.slane %v146, 4
    %v162 = vperm.slane %v146, 5
    %v163 = vperm.slane %v146, 6
    %v164 = vperm.slane %v146, 7
    %vm181 = vcmask 261120
    %v183 = vsel %vm181, %v80, 0
    %185 = vmatpush.msra.mxu0 0.0
    %186 = vmatpush.msra.mxu0 0.0
    %187 = vmatpush.msra.mxu0 0.0
    %188 = vmatpush.msra.mxu0 0.0
    %189 = vmatpush.msra.mxu0 0.0
    %190 = vmatpush.msra.mxu0 0.0
    %191 = vmatpush.msra.mxu0 0.0
    %192 = vmatpush.msra.mxu0 0.0
    %193 = vmatpush.msra.mxu0 0.0
    %194 = vmatpush.msra.mxu0 0.0
    %195 = vmatpush.msra.mxu0 0.0
    %196 = vmatpush.msra.mxu0 0.0
    %197 = vmatpush.msra.mxu0 %v129
    %198 = vmatpush.msra.mxu0 %v113
    %199 = vmatpush.msra.mxu0 %v97
    %200 = vmatpush.msra.mxu0 %v81
    %201 = vmatmul.f32.gmra.mxu0 %v183
    %v202 = vpop.f32.mrf.mxu0
    %v203 = vadd.f32 %v149, %v202
    %204 = vdwg.mxu0
    %205 = vmatpush.msra.mxu0 0.0
    %206 = vmatpush.msra.mxu0 0.0
    %207 = vmatpush.msra.mxu0 0.0
    %208 = vmatpush.msra.mxu0 0.0
    %209 = vmatpush.msra.mxu0 0.0
    %210 = vmatpush.msra.mxu0 0.0
    %211 = vmatpush.msra.mxu0 0.0
    %212 = vmatpush.msra.mxu0 0.0
    %213 = vmatpush.msra.mxu0 0.0
    %214 = vmatpush.msra.mxu0 0.0
    %215 = vmatpush.msra.mxu0 0.0
    %216 = vmatpush.msra.mxu0 0.0
    %217 = vmatpush.msra.mxu0 %v130
    %218 = vmatpush.msra.mxu0 %v114
    %219 = vmatpush.msra.mxu0 %v98
    %220 = vmatpush.msra.mxu0 %v82
    %221 = vmatmul.f32.gmra.mxu0 %v183
    %v222 = vpop.f32.mrf.mxu0
    %v223 = vadd.f32 %v150, %v222
    %224 = vdwg.mxu0
    %225 = vmatpush.msra.mxu0 0.0
    %226 = vmatpush.msra.mxu0 0.0
    %227 = vmatpush.msra.mxu0 0.0
    %228 = vmatpush.msra.mxu0 0.0
    %229 = vmatpush.msra.mxu0 0.0
    %230 = vmatpush.msra.mxu0 0.0
    %231 = vmatpush.msra.mxu0 0.0
    %232 = vmatpush.msra.mxu0 0.0
    %233 = vmatpush.msra.mxu0 0.0
    %234 = vmatpush.msra.mxu0 0.0
    %235 = vmatpush.msra.mxu0 0.0
    %236 = vmatpush.msra.mxu0 0.0
    %237 = vmatpush.msra.mxu0 %v131
    %238 = vmatpush.msra.mxu0 %v115
    %239 = vmatpush.msra.mxu0 %v99
    %240 = vmatpush.msra.mxu0 %v83
    %241 = vmatmul.f32.gmra.mxu0 %v183
    %v242 = vpop.f32.mrf.mxu0
    %v243 = vadd.f32 %v151, %v242
    %244 = vdwg.mxu0
    %245 = vmatpush.msra.mxu0 0.0
    %246 = vmatpush.msra.mxu0 0.0
    %247 = vmatpush.msra.mxu0 0.0
    %248 = vmatpush.msra.mxu0 0.0
    %249 = vmatpush.msra.mxu0 0.0
    %250 = vmatpush.msra.mxu0 0.0
    %251 = vmatpush.msra.mxu0 0.0
    %252 = vmatpush.msra.mxu0 0.0
    %253 = vmatpush.msra.mxu0 0.0
    %254 = vmatpush.msra.mxu0 0.0
    %255 = vmatpush.msra.mxu0 0.0
    %256 = vmatpush.msra.mxu0 0.0
    %257 = vmatpush.msra.mxu0 %v132
    %258 = vmatpush.msra.mxu0 %v116
    %259 = vmatpush.msra.mxu0 %v100
    %260 = vmatpush.msra.mxu0 %v84
    %261 = vmatmul.f32.gmra.mxu0 %v183
    %v262 = vpop.f32.mrf.mxu0
    %v263 = vadd.f32 %v152, %v262
    %264 = vdwg.mxu0
    %265 = vmatpush.msra.mxu0 0.0
    %266 = vmatpush.msra.mxu0 0.0
    %267 = vmatpush.msra.mxu0 0.0
    %268 = vmatpush.msra.mxu0 0.0
    %269 = vmatpush.msra.mxu0 0.0
    %270 = vmatpush.msra.mxu0 0.0
    %271 = vmatpush.msra.mxu0 0.0
    %272 = vmatpush.msra.mxu0 0.0
    %273 = vmatpush.msra.mxu0 0.0
    %274 = vmatpush.msra.mxu0 0.0
    %275 = vmatpush.msra.mxu0 0.0
    %276 = vmatpush.msra.mxu0 0.0
    %277 = vmatpush.msra.mxu0 %v133
    %278 = vmatpush.msra.mxu0 %v117
    %279 = vmatpush.msra.mxu0 %v101
    %280 = vmatpush.msra.mxu0 %v85
    %281 = vmatmul.f32.gmra.mxu0 %v183
    %v282 = vpop.f32.mrf.mxu0
    %v283 = vadd.f32 %v153, %v282
    %284 = vdwg.mxu0
    %285 = vmatpush.msra.mxu0 0.0
    %286 = vmatpush.msra.mxu0 0.0
    %287 = vmatpush.msra.mxu0 0.0
    %288 = vmatpush.msra.mxu0 0.0
    %289 = vmatpush.msra.mxu0 0.0
    %290 = vmatpush.msra.mxu0 0.0
    %291 = vmatpush.msra.mxu0 0.0
    %292 = vmatpush.msra.mxu0 0.0
    %293 = vmatpush.msra.mxu0 0.0
    %294 = vmatpush.msra.mxu0 0.0
    %295 = vmatpush.msra.mxu0 0.0
    %296 = vmatpush.msra.mxu0 0.0
    %297 = vmatpush.msra.mxu0 %v134
    %298 = vmatpush.msra.mxu0 %v118
    %299 = vmatpush.msra.mxu0 %v102
    %300 = vmatpush.msra.mxu0 %v86
    %301 = vmatmul.f32.gmra.mxu0 %v183
    %v302 = vpop.f32.mrf.mxu0
    %v303 = vadd.f32 %v154, %v302
    %304 = vdwg.mxu0
    %305 = vmatpush.msra.mxu0 0.0
    %306 = vmatpush.msra.mxu0 0.0
    %307 = vmatpush.msra.mxu0 0.0
    %308 = vmatpush.msra.mxu0 0.0
    %309 = vmatpush.msra.mxu0 0.0
    %310 = vmatpush.msra.mxu0 0.0
    %311 = vmatpush.msra.mxu0 0.0
    %312 = vmatpush.msra.mxu0 0.0
    %313 = vmatpush.msra.mxu0 0.0
    %314 = vmatpush.msra.mxu0 0.0
    %315 = vmatpush.msra.mxu0 0.0
    %316 = vmatpush.msra.mxu0 0.0
    %317 = vmatpush.msra.mxu0 %v135
    %318 = vmatpush.msra.mxu0 %v119
    %319 = vmatpush.msra.mxu0 %v103
    %320 = vmatpush.msra.mxu0 %v87
    %321 = vmatmul.f32.gmra.mxu0 %v183
    %v322 = vpop.f32.mrf.mxu0
    %v323 = vadd.f32 %v155, %v322
    %324 = vdwg.mxu0
    %325 = vmatpush.msra.mxu0 0.0
    %326 = vmatpush.msra.mxu0 0.0
    %327 = vmatpush.msra.mxu0 0.0
    %328 = vmatpush.msra.mxu0 0.0
    %329 = vmatpush.msra.mxu0 0.0
    %330 = vmatpush.msra.mxu0 0.0
    %331 = vmatpush.msra.mxu0 0.0
    %332 = vmatpush.msra.mxu0 0.0
    %333 = vmatpush.msra.mxu0 0.0
    %334 = vmatpush.msra.mxu0 0.0
    %335 = vmatpush.msra.mxu0 0.0
    %336 = vmatpush.msra.mxu0 0.0
    %337 = vmatpush.msra.mxu0 %v136
    %338 = vmatpush.msra.mxu0 %v120
    %339 = vmatpush.msra.mxu0 %v104
    %340 = vmatpush.msra.mxu0 %v88
    %341 = vmatmul.f32.gmra.mxu0 %v183
    %v342 = vpop.f32.mrf.mxu0
    %v343 = vadd.f32 %v156, %v342
    %344 = vdwg.mxu0
    %345 = vmatpush.msra.mxu0 0.0
    %346 = vmatpush.msra.mxu0 0.0
    %347 = vmatpush.msra.mxu0 0.0
    %348 = vmatpush.msra.mxu0 0.0
    %349 = vmatpush.msra.mxu0 0.0
    %350 = vmatpush.msra.mxu0 0.0
    %351 = vmatpush.msra.mxu0 0.0
    %352 = vmatpush.msra.mxu0 0.0
    %353 = vmatpush.msra.mxu0 0.0
    %354 = vmatpush.msra.mxu0 0.0
    %355 = vmatpush.msra.mxu0 0.0
    %356 = vmatpush.msra.mxu0 0.0
    %357 = vmatpush.msra.mxu0 %v137
    %358 = vmatpush.msra.mxu0 %v121
    %359 = vmatpush.msra.mxu0 %v105
    %360 = vmatpush.msra.mxu0 %v89
    %361 = vmatmul.f32.gmra.mxu0 %v183
    %v362 = vpop.f32.mrf.mxu0
    %v363 = vadd.f32 %v157, %v362
    %364 = vdwg.mxu0
    %365 = vmatpush.msra.mxu0 0.0
    %366 = vmatpush.msra.mxu0 0.0
    %367 = vmatpush.msra.mxu0 0.0
    %368 = vmatpush.msra.mxu0 0.0
    %369 = vmatpush.msra.mxu0 0.0
    %370 = vmatpush.msra.mxu0 0.0
    %371 = vmatpush.msra.mxu0 0.0
    %372 = vmatpush.msra.mxu0 0.0
    %373 = vmatpush.msra.mxu0 0.0
    %374 = vmatpush.msra.mxu0 0.0
    %375 = vmatpush.msra.mxu0 0.0
    %376 = vmatpush.msra.mxu0 0.0
    %377 = vmatpush.msra.mxu0 %v138
    %378 = vmatpush.msra.mxu0 %v122
    %379 = vmatpush.msra.mxu0 %v106
    %380 = vmatpush.msra.mxu0 %v90
    %381 = vmatmul.f32.gmra.mxu0 %v183
    %v382 = vpop.f32.mrf.mxu0
    %v383 = vadd.f32 %v158, %v382
    %384 = vdwg.mxu0
    %385 = vmatpush.msra.mxu0 0.0
    %386 = vmatpush.msra.mxu0 0.0
    %387 = vmatpush.msra.mxu0 0.0
    %388 = vmatpush.msra.mxu0 0.0
    %389 = vmatpush.msra.mxu0 0.0
    %390 = vmatpush.msra.mxu0 0.0
    %391 = vmatpush.msra.mxu0 0.0
    %392 = vmatpush.msra.mxu0 0.0
    %393 = vmatpush.msra.mxu0 0.0
    %394 = vmatpush.msra.mxu0 0.0
    %395 = vmatpush.msra.mxu0 0.0
    %396 = vmatpush.msra.mxu0 0.0
    %397 = vmatpush.msra.mxu0 %v139
    %398 = vmatpush.msra.mxu0 %v123
    %399 = vmatpush.msra.mxu0 %v107
    %400 = vmatpush.msra.mxu0 %v91
    %401 = vmatmul.f32.gmra.mxu0 %v183
    %v402 = vpop.f32.mrf.mxu0
    %v403 = vadd.f32 %v159, %v402
    %404 = vdwg.mxu0
    %405 = vmatpush.msra.mxu0 0.0
    %406 = vmatpush.msra.mxu0 0.0
    %407 = vmatpush.msra.mxu0 0.0
    %408 = vmatpush.msra.mxu0 0.0
    %409 = vmatpush.msra.mxu0 0.0
    %410 = vmatpush.msra.mxu0 0.0
    %411 = vmatpush.msra.mxu0 0.0
    %412 = vmatpush.msra.mxu0 0.0
    %413 = vmatpush.msra.mxu0 0.0
    %414 = vmatpush.msra.mxu0 0.0
    %415 = vmatpush.msra.mxu0 0.0
    %416 = vmatpush.msra.mxu0 0.0
    %417 = vmatpush.msra.mxu0 %v140
    %418 = vmatpush.msra.mxu0 %v124
    %419 = vmatpush.msra.mxu0 %v108
    %420 = vmatpush.msra.mxu0 %v92
    %421 = vmatmul.f32.gmra.mxu0 %v183
    %v422 = vpop.f32.mrf.mxu0
    %v423 = vadd.f32 %v160, %v422
    %424 = vdwg.mxu0
    %425 = vmatpush.msra.mxu0 0.0
    %426 = vmatpush.msra.mxu0 0.0
    %427 = vmatpush.msra.mxu0 0.0
    %428 = vmatpush.msra.mxu0 0.0
    %429 = vmatpush.msra.mxu0 0.0
    %430 = vmatpush.msra.mxu0 0.0
    %431 = vmatpush.msra.mxu0 0.0
    %432 = vmatpush.msra.mxu0 0.0
    %433 = vmatpush.msra.mxu0 0.0
    %434 = vmatpush.msra.mxu0 0.0
    %435 = vmatpush.msra.mxu0 0.0
    %436 = vmatpush.msra.mxu0 0.0
    %437 = vmatpush.msra.mxu0 %v141
    %438 = vmatpush.msra.mxu0 %v125
    %439 = vmatpush.msra.mxu0 %v109
    %440 = vmatpush.msra.mxu0 %v93
    %441 = vmatmul.f32.gmra.mxu0 %v183
    %v442 = vpop.f32.mrf.mxu0
    %v443 = vadd.f32 %v161, %v442
    %444 = vdwg.mxu0
    %445 = vmatpush.msra.mxu0 0.0
    %446 = vmatpush.msra.mxu0 0.0
    %447 = vmatpush.msra.mxu0 0.0
    %448 = vmatpush.msra.mxu0 0.0
    %449 = vmatpush.msra.mxu0 0.0
    %450 = vmatpush.msra.mxu0 0.0
    %451 = vmatpush.msra.mxu0 0.0
    %452 = vmatpush.msra.mxu0 0.0
    %453 = vmatpush.msra.mxu0 0.0
    %454 = vmatpush.msra.mxu0 0.0
    %455 = vmatpush.msra.mxu0 0.0
    %456 = vmatpush.msra.mxu0 0.0
    %457 = vmatpush.msra.mxu0 %v142
    %458 = vmatpush.msra.mxu0 %v126
    %459 = vmatpush.msra.mxu0 %v110
    %460 = vmatpush.msra.mxu0 %v94
    %461 = vmatmul.f32.gmra.mxu0 %v183
    %v462 = vpop.f32.mrf.mxu0
    %v463 = vadd.f32 %v162, %v462
    %464 = vdwg.mxu0
    %465 = vmatpush.msra.mxu0 0.0
    %466 = vmatpush.msra.mxu0 0.0
    %467 = vmatpush.msra.mxu0 0.0
    %468 = vmatpush.msra.mxu0 0.0
    %469 = vmatpush.msra.mxu0 0.0
    %470 = vmatpush.msra.mxu0 0.0
    %471 = vmatpush.msra.mxu0 0.0
    %472 = vmatpush.msra.mxu0 0.0
    %473 = vmatpush.msra.mxu0 0.0
    %474 = vmatpush.msra.mxu0 0.0
    %475 = vmatpush.msra.mxu0 0.0
    %476 = vmatpush.msra.mxu0 0.0
    %477 = vmatpush.msra.mxu0 %v143
    %478 = vmatpush.msra.mxu0 %v127
    %479 = vmatpush.msra.mxu0 %v111
    %480 = vmatpush.msra.mxu0 %v95
    %481 = vmatmul.f32.gmra.mxu0 %v183
    %v482 = vpop.f32.mrf.mxu0
    %v483 = vadd.f32 %v163, %v482
    %484 = vdwg.mxu0
    %485 = vmatpush.msra.mxu0 0.0
    %486 = vmatpush.msra.mxu0 0.0
    %487 = vmatpush.msra.mxu0 0.0
    %488 = vmatpush.msra.mxu0 0.0
    %489 = vmatpush.msra.mxu0 0.0
    %490 = vmatpush.msra.mxu0 0.0
    %491 = vmatpush.msra.mxu0 0.0
    %492 = vmatpush.msra.mxu0 0.0
    %493 = vmatpush.msra.mxu0 0.0
    %494 = vmatpush.msra.mxu0 0.0
    %495 = vmatpush.msra.mxu0 0.0
    %496 = vmatpush.msra.mxu0 0.0
    %497 = vmatpush.msra.mxu0 %v144
    %498 = vmatpush.msra.mxu0 %v128
    %499 = vmatpush.msra.mxu0 %v112
    %500 = vmatpush.msra.mxu0 %v96
    %501 = vmatmul.f32.gmra.mxu0 %v183
    %v502 = vpop.f32.mrf.mxu0
    %v503 = vadd.f32 %v164, %v502
    %504 = vdwg.mxu0
    %v505 = vmul.f32 %v203, 0.5
    %v506 = vmul.f32 %v223, 0.5
    %v507 = vmul.f32 %v243, 0.5
    %v508 = vmul.f32 %v263, 0.5
    %v509 = vmul.f32 %v283, 0.5
    %v510 = vmul.f32 %v303, 0.5
    %v511 = vmul.f32 %v323, 0.5
    %v512 = vmul.f32 %v343, 0.5
    %v513 = vmul.f32 %v363, 0.5
    %v514 = vmul.f32 %v383, 0.5
    %v515 = vmul.f32 %v403, 0.5
    %v516 = vmul.f32 %v423, 0.5
    %v517 = vmul.f32 %v443, 0.5
    %v518 = vmul.f32 %v463, 0.5
    %v519 = vmul.f32 %v483, 0.5
    %v520 = vmul.f32 %v503, 0.5
    %v521 = vmul.f32 %v203, 0.70710677
    %v522 = vmul.f32 %v223, 0.70710677
    %v523 = vmul.f32 %v243, 0.70710677
    %v524 = vmul.f32 %v263, 0.70710677
    %v525 = vmul.f32 %v283, 0.70710677
    %v526 = vmul.f32 %v303, 0.70710677
    %v527 = vmul.f32 %v323, 0.70710677
    %v528 = vmul.f32 %v343, 0.70710677
    %v529 = vmul.f32 %v363, 0.70710677
    %v530 = vmul.f32 %v383, 0.70710677
    %v531 = vmul.f32 %v403, 0.70710677
    %v532 = vmul.f32 %v423, 0.70710677
    %v533 = vmul.f32 %v443, 0.70710677
    %v534 = vmul.f32 %v463, 0.70710677
    %v535 = vmul.f32 %v483, 0.70710677
    %v536 = vmul.f32 %v503, 0.70710677
    %v537 = vand.u32 2147483647, %v521
    %v538 = vand.u32 2147483647, %v522
    %v539 = vand.u32 2147483647, %v523
    %v540 = vand.u32 2147483647, %v524
    %v541 = vand.u32 2147483647, %v525
    %v542 = vand.u32 2147483647, %v526
    %v543 = vand.u32 2147483647, %v527
    %v544 = vand.u32 2147483647, %v528
    %v545 = vand.u32 2147483647, %v529
    %v546 = vand.u32 2147483647, %v530
    %v547 = vand.u32 2147483647, %v531
    %v548 = vand.u32 2147483647, %v532
    %v549 = vand.u32 2147483647, %v533
    %v550 = vand.u32 2147483647, %v534
    %v551 = vand.u32 2147483647, %v535
    %v552 = vand.u32 2147483647, %v536
    %v553 = vmul.f32 %v537, 0.3275911
    %v554 = vmul.f32 %v538, 0.3275911
    %v555 = vmul.f32 %v539, 0.3275911
    %v556 = vmul.f32 %v540, 0.3275911
    %v557 = vmul.f32 %v541, 0.3275911
    %v558 = vmul.f32 %v542, 0.3275911
    %v559 = vmul.f32 %v543, 0.3275911
    %v560 = vmul.f32 %v544, 0.3275911
    %v561 = vmul.f32 %v545, 0.3275911
    %v562 = vmul.f32 %v546, 0.3275911
    %v563 = vmul.f32 %v547, 0.3275911
    %v564 = vmul.f32 %v548, 0.3275911
    %v565 = vmul.f32 %v549, 0.3275911
    %v566 = vmul.f32 %v550, 0.3275911
    %v567 = vmul.f32 %v551, 0.3275911
    %v568 = vmul.f32 %v552, 0.3275911
    %v569 = vadd.f32 %v553, 1.0
    %v570 = vadd.f32 %v554, 1.0
    %v571 = vadd.f32 %v555, 1.0
    %v572 = vadd.f32 %v556, 1.0
    %v573 = vadd.f32 %v557, 1.0
    %v574 = vadd.f32 %v558, 1.0
    %v575 = vadd.f32 %v559, 1.0
    %v576 = vadd.f32 %v560, 1.0
    %v577 = vadd.f32 %v561, 1.0
    %v578 = vadd.f32 %v562, 1.0
    %v579 = vadd.f32 %v563, 1.0
    %v580 = vadd.f32 %v564, 1.0
    %v581 = vadd.f32 %v565, 1.0
    %v582 = vadd.f32 %v566, 1.0
    %v583 = vadd.f32 %v567, 1.0
    %v584 = vadd.f32 %v568, 1.0
    %v585 = vrcp.pop %v569
    %v586 = vmul.f32 %v569, %v585
    %v587 = vsub.f32 1.0, %v586
    %v588 = vmul.f32 %v585, %v587
    %v589 = vadd.f32 %v585, %v588
    %vm590 = vweird.f32 %v569
    %vm591 = vweird.f32 %v585
    %vm592 = vmor %vm590, %vm591
    %v593 = vsel %vm592, %v585, %v589
    %v594 = vand.u32 2147483647, %v569
    %vm595 = vcmp.eq.f32.partialorder %v594, 8.507059e+37
    %v596 = vand.u32 %v569, 2147483648
    %v597 = vor.u32 1.1754944e-38, %v596
    %v598 = vsel %vm595, %v597, %v593
    %v599 = vmul.f32 1.0, %v598
    %v600 = vrcp.pop %v570
    %v601 = vmul.f32 %v570, %v600
    %v602 = vsub.f32 1.0, %v601
    %v603 = vmul.f32 %v600, %v602
    %v604 = vadd.f32 %v600, %v603
    %vm605 = vweird.f32 %v570
    %vm606 = vweird.f32 %v600
    %vm607 = vmor %vm605, %vm606
    %v608 = vsel %vm607, %v600, %v604
    %v609 = vand.u32 2147483647, %v570
    %vm610 = vcmp.eq.f32.partialorder %v609, 8.507059e+37
    %v611 = vand.u32 %v570, 2147483648
    %v612 = vor.u32 1.1754944e-38, %v611
    %v613 = vsel %vm610, %v612, %v608
    %v614 = vmul.f32 1.0, %v613
    %v615 = vrcp.pop %v571
    %v616 = vmul.f32 %v571, %v615
    %v617 = vsub.f32 1.0, %v616
    %v618 = vmul.f32 %v615, %v617
    %v619 = vadd.f32 %v615, %v618
    %vm620 = vweird.f32 %v571
    %vm621 = vweird.f32 %v615
    %vm622 = vmor %vm620, %vm621
    %v623 = vsel %vm622, %v615, %v619
    %v624 = vand.u32 2147483647, %v571
    %vm625 = vcmp.eq.f32.partialorder %v624, 8.507059e+37
    %v626 = vand.u32 %v571, 2147483648
    %v627 = vor.u32 1.1754944e-38, %v626
    %v628 = vsel %vm625, %v627, %v623
    %v629 = vmul.f32 1.0, %v628
    %v630 = vrcp.pop %v572
    %v631 = vmul.f32 %v572, %v630
    %v632 = vsub.f32 1.0, %v631
    %v633 = vmul.f32 %v630, %v632
    %v634 = vadd.f32 %v630, %v633
    %vm635 = vweird.f32 %v572
    %vm636 = vweird.f32 %v630
    %vm637 = vmor %vm635, %vm636
    %v638 = vsel %vm637, %v630, %v634
    %v639 = vand.u32 2147483647, %v572
    %vm640 = vcmp.eq.f32.partialorder %v639, 8.507059e+37
    %v641 = vand.u32 %v572, 2147483648
    %v642 = vor.u32 1.1754944e-38, %v641
    %v643 = vsel %vm640, %v642, %v638
    %v644 = vmul.f32 1.0, %v643
    %v645 = vrcp.pop %v573
    %v646 = vmul.f32 %v573, %v645
    %v647 = vsub.f32 1.0, %v646
    %v648 = vmul.f32 %v645, %v647
    %v649 = vadd.f32 %v645, %v648
    %vm650 = vweird.f32 %v573
    %vm651 = vweird.f32 %v645
    %vm652 = vmor %vm650, %vm651
    %v653 = vsel %vm652, %v645, %v649
    %v654 = vand.u32 2147483647, %v573
    %vm655 = vcmp.eq.f32.partialorder %v654, 8.507059e+37
    %v656 = vand.u32 %v573, 2147483648
    %v657 = vor.u32 1.1754944e-38, %v656
    %v658 = vsel %vm655, %v657, %v653
    %v659 = vmul.f32 1.0, %v658
    %v660 = vrcp.pop %v574
    %v661 = vmul.f32 %v574, %v660
    %v662 = vsub.f32 1.0, %v661
    %v663 = vmul.f32 %v660, %v662
    %v664 = vadd.f32 %v660, %v663
    %vm665 = vweird.f32 %v574
    %vm666 = vweird.f32 %v660
    %vm667 = vmor %vm665, %vm666
    %v668 = vsel %vm667, %v660, %v664
    %v669 = vand.u32 2147483647, %v574
    %vm670 = vcmp.eq.f32.partialorder %v669, 8.507059e+37
    %v671 = vand.u32 %v574, 2147483648
    %v672 = vor.u32 1.1754944e-38, %v671
    %v673 = vsel %vm670, %v672, %v668
    %v674 = vmul.f32 1.0, %v673
    %v675 = vrcp.pop %v575
    %v676 = vmul.f32 %v575, %v675
    %v677 = vsub.f32 1.0, %v676
    %v678 = vmul.f32 %v675, %v677
    %v679 = vadd.f32 %v675, %v678
    %vm680 = vweird.f32 %v575
    %vm681 = vweird.f32 %v675
    %vm682 = vmor %vm680, %vm681
    %v683 = vsel %vm682, %v675, %v679
    %v684 = vand.u32 2147483647, %v575
    %vm685 = vcmp.eq.f32.partialorder %v684, 8.507059e+37
    %v686 = vand.u32 %v575, 2147483648
    %v687 = vor.u32 1.1754944e-38, %v686
    %v688 = vsel %vm685, %v687, %v683
    %v689 = vmul.f32 1.0, %v688
    %v690 = vrcp.pop %v576
    %v691 = vmul.f32 %v576, %v690
    %v692 = vsub.f32 1.0, %v691
    %v693 = vmul.f32 %v690, %v692
    %v694 = vadd.f32 %v690, %v693
    %vm695 = vweird.f32 %v576
    %vm696 = vweird.f32 %v690
    %vm697 = vmor %vm695, %vm696
    %v698 = vsel %vm697, %v690, %v694
    %v699 = vand.u32 2147483647, %v576
    %vm700 = vcmp.eq.f32.partialorder %v699, 8.507059e+37
    %v701 = vand.u32 %v576, 2147483648
    %v702 = vor.u32 1.1754944e-38, %v701
    %v703 = vsel %vm700, %v702, %v698
    %v704 = vmul.f32 1.0, %v703
    %v705 = vrcp.pop %v577
    %v706 = vmul.f32 %v577, %v705
    %v707 = vsub.f32 1.0, %v706
    %v708 = vmul.f32 %v705, %v707
    %v709 = vadd.f32 %v705, %v708
    %vm710 = vweird.f32 %v577
    %vm711 = vweird.f32 %v705
    %vm712 = vmor %vm710, %vm711
    %v713 = vsel %vm712, %v705, %v709
    %v714 = vand.u32 2147483647, %v577
    %vm715 = vcmp.eq.f32.partialorder %v714, 8.507059e+37
    %v716 = vand.u32 %v577, 2147483648
    %v717 = vor.u32 1.1754944e-38, %v716
    %v718 = vsel %vm715, %v717, %v713
    %v719 = vmul.f32 1.0, %v718
    %v720 = vrcp.pop %v578
    %v721 = vmul.f32 %v578, %v720
    %v722 = vsub.f32 1.0, %v721
    %v723 = vmul.f32 %v720, %v722
    %v724 = vadd.f32 %v720, %v723
    %vm725 = vweird.f32 %v578
    %vm726 = vweird.f32 %v720
    %vm727 = vmor %vm725, %vm726
    %v728 = vsel %vm727, %v720, %v724
    %v729 = vand.u32 2147483647, %v578
    %vm730 = vcmp.eq.f32.partialorder %v729, 8.507059e+37
    %v731 = vand.u32 %v578, 2147483648
    %v732 = vor.u32 1.1754944e-38, %v731
    %v733 = vsel %vm730, %v732, %v728
    %v734 = vmul.f32 1.0, %v733
    %v735 = vrcp.pop %v579
    %v736 = vmul.f32 %v579, %v735
    %v737 = vsub.f32 1.0, %v736
    %v738 = vmul.f32 %v735, %v737
    %v739 = vadd.f32 %v735, %v738
    %vm740 = vweird.f32 %v579
    %vm741 = vweird.f32 %v735
    %vm742 = vmor %vm740, %vm741
    %v743 = vsel %vm742, %v735, %v739
    %v744 = vand.u32 2147483647, %v579
    %vm745 = vcmp.eq.f32.partialorder %v744, 8.507059e+37
    %v746 = vand.u32 %v579, 2147483648
    %v747 = vor.u32 1.1754944e-38, %v746
    %v748 = vsel %vm745, %v747, %v743
    %v749 = vmul.f32 1.0, %v748
    %v750 = vrcp.pop %v580
    %v751 = vmul.f32 %v580, %v750
    %v752 = vsub.f32 1.0, %v751
    %v753 = vmul.f32 %v750, %v752
    %v754 = vadd.f32 %v750, %v753
    %vm755 = vweird.f32 %v580
    %vm756 = vweird.f32 %v750
    %vm757 = vmor %vm755, %vm756
    %v758 = vsel %vm757, %v750, %v754
    %v759 = vand.u32 2147483647, %v580
    %vm760 = vcmp.eq.f32.partialorder %v759, 8.507059e+37
    %v761 = vand.u32 %v580, 2147483648
    %v762 = vor.u32 1.1754944e-38, %v761
    %v763 = vsel %vm760, %v762, %v758
    %v764 = vmul.f32 1.0, %v763
    %v765 = vrcp.pop %v581
    %v766 = vmul.f32 %v581, %v765
    %v767 = vsub.f32 1.0, %v766
    %v768 = vmul.f32 %v765, %v767
    %v769 = vadd.f32 %v765, %v768
    %vm770 = vweird.f32 %v581
    %vm771 = vweird.f32 %v765
    %vm772 = vmor %vm770, %vm771
    %v773 = vsel %vm772, %v765, %v769
    %v774 = vand.u32 2147483647, %v581
    %vm775 = vcmp.eq.f32.partialorder %v774, 8.507059e+37
    %v776 = vand.u32 %v581, 2147483648
    %v777 = vor.u32 1.1754944e-38, %v776
    %v778 = vsel %vm775, %v777, %v773
    %v779 = vmul.f32 1.0, %v778
    %v780 = vrcp.pop %v582
    %v781 = vmul.f32 %v582, %v780
    %v782 = vsub.f32 1.0, %v781
    %v783 = vmul.f32 %v780, %v782
    %v784 = vadd.f32 %v780, %v783
    %vm785 = vweird.f32 %v582
    %vm786 = vweird.f32 %v780
    %vm787 = vmor %vm785, %vm786
    %v788 = vsel %vm787, %v780, %v784
    %v789 = vand.u32 2147483647, %v582
    %vm790 = vcmp.eq.f32.partialorder %v789, 8.507059e+37
    %v791 = vand.u32 %v582, 2147483648
    %v792 = vor.u32 1.1754944e-38, %v791
    %v793 = vsel %vm790, %v792, %v788
    %v794 = vmul.f32 1.0, %v793
    %v795 = vrcp.pop %v583
    %v796 = vmul.f32 %v583, %v795
    %v797 = vsub.f32 1.0, %v796
    %v798 = vmul.f32 %v795, %v797
    %v799 = vadd.f32 %v795, %v798
    %vm800 = vweird.f32 %v583
    %vm801 = vweird.f32 %v795
    %vm802 = vmor %vm800, %vm801
    %v803 = vsel %vm802, %v795, %v799
    %v804 = vand.u32 2147483647, %v583
    %vm805 = vcmp.eq.f32.partialorder %v804, 8.507059e+37
    %v806 = vand.u32 %v583, 2147483648
    %v807 = vor.u32 1.1754944e-38, %v806
    %v808 = vsel %vm805, %v807, %v803
    %v809 = vmul.f32 1.0, %v808
    %v810 = vrcp.pop %v584
    %v811 = vmul.f32 %v584, %v810
    %v812 = vsub.f32 1.0, %v811
    %v813 = vmul.f32 %v810, %v812
    %v814 = vadd.f32 %v810, %v813
    %vm815 = vweird.f32 %v584
    %vm816 = vweird.f32 %v810
    %vm817 = vmor %vm815, %vm816
    %v818 = vsel %vm817, %v810, %v814
    %v819 = vand.u32 2147483647, %v584
    %vm820 = vcmp.eq.f32.partialorder %v819, 8.507059e+37
    %v821 = vand.u32 %v584, 2147483648
    %v822 = vor.u32 1.1754944e-38, %v821
    %v823 = vsel %vm820, %v822, %v818
    %v824 = vmul.f32 1.0, %v823
    %v825 = vmul.f32 %v599, 1.0614054
    %v826 = vmul.f32 %v614, 1.0614054
    %v827 = vmul.f32 %v629, 1.0614054
    %v828 = vmul.f32 %v644, 1.0614054
    %v829 = vmul.f32 %v659, 1.0614054
    %v830 = vmul.f32 %v674, 1.0614054
    %v831 = vmul.f32 %v689, 1.0614054
    %v832 = vmul.f32 %v704, 1.0614054
    %v833 = vmul.f32 %v719, 1.0614054
    %v834 = vmul.f32 %v734, 1.0614054
    %v835 = vmul.f32 %v749, 1.0614054
    %v836 = vmul.f32 %v764, 1.0614054
    %v837 = vmul.f32 %v779, 1.0614054
    %v838 = vmul.f32 %v794, 1.0614054
    %v839 = vmul.f32 %v809, 1.0614054
    %v840 = vmul.f32 %v824, 1.0614054
    %v841 = vadd.f32 %v825, -1.4531521
    %v842 = vadd.f32 %v826, -1.4531521
    %v843 = vadd.f32 %v827, -1.4531521
    %v844 = vadd.f32 %v828, -1.4531521
    %v845 = vadd.f32 %v829, -1.4531521
    %v846 = vadd.f32 %v830, -1.4531521
    %v847 = vadd.f32 %v831, -1.4531521
    %v848 = vadd.f32 %v832, -1.4531521
    %v849 = vadd.f32 %v833, -1.4531521
    %v850 = vadd.f32 %v834, -1.4531521
    %v851 = vadd.f32 %v835, -1.4531521
    %v852 = vadd.f32 %v836, -1.4531521
    %v853 = vadd.f32 %v837, -1.4531521
    %v854 = vadd.f32 %v838, -1.4531521
    %v855 = vadd.f32 %v839, -1.4531521
    %v856 = vadd.f32 %v840, -1.4531521
    %v857 = vmul.f32 %v841, %v599
    %v858 = vmul.f32 %v842, %v614
    %v859 = vmul.f32 %v843, %v629
    %v860 = vmul.f32 %v844, %v644
    %v861 = vmul.f32 %v845, %v659
    %v862 = vmul.f32 %v846, %v674
    %v863 = vmul.f32 %v847, %v689
    %v864 = vmul.f32 %v848, %v704
    %v865 = vmul.f32 %v849, %v719
    %v866 = vmul.f32 %v850, %v734
    %v867 = vmul.f32 %v851, %v749
    %v868 = vmul.f32 %v852, %v764
    %v869 = vmul.f32 %v853, %v779
    %v870 = vmul.f32 %v854, %v794
    %v871 = vmul.f32 %v855, %v809
    %v872 = vmul.f32 %v856, %v824
    %v873 = vadd.f32 %v857, 1.4214138
    %v874 = vadd.f32 %v858, 1.4214138
    %v875 = vadd.f32 %v859, 1.4214138
    %v876 = vadd.f32 %v860, 1.4214138
    %v877 = vadd.f32 %v861, 1.4214138
    %v878 = vadd.f32 %v862, 1.4214138
    %v879 = vadd.f32 %v863, 1.4214138
    %v880 = vadd.f32 %v864, 1.4214138
    %v881 = vadd.f32 %v865, 1.4214138
    %v882 = vadd.f32 %v866, 1.4214138
    %v883 = vadd.f32 %v867, 1.4214138
    %v884 = vadd.f32 %v868, 1.4214138
    %v885 = vadd.f32 %v869, 1.4214138
    %v886 = vadd.f32 %v870, 1.4214138
    %v887 = vadd.f32 %v871, 1.4214138
    %v888 = vadd.f32 %v872, 1.4214138
    %v889 = vmul.f32 %v873, %v599
    %v890 = vmul.f32 %v874, %v614
    %v891 = vmul.f32 %v875, %v629
    %v892 = vmul.f32 %v876, %v644
    %v893 = vmul.f32 %v877, %v659
    %v894 = vmul.f32 %v878, %v674
    %v895 = vmul.f32 %v879, %v689
    %v896 = vmul.f32 %v880, %v704
    %v897 = vmul.f32 %v881, %v719
    %v898 = vmul.f32 %v882, %v734
    %v899 = vmul.f32 %v883, %v749
    %v900 = vmul.f32 %v884, %v764
    %v901 = vmul.f32 %v885, %v779
    %v902 = vmul.f32 %v886, %v794
    %v903 = vmul.f32 %v887, %v809
    %v904 = vmul.f32 %v888, %v824
    %v905 = vadd.f32 %v889, -0.28449672
    %v906 = vadd.f32 %v890, -0.28449672
    %v907 = vadd.f32 %v891, -0.28449672
    %v908 = vadd.f32 %v892, -0.28449672
    %v909 = vadd.f32 %v893, -0.28449672
    %v910 = vadd.f32 %v894, -0.28449672
    %v911 = vadd.f32 %v895, -0.28449672
    %v912 = vadd.f32 %v896, -0.28449672
    %v913 = vadd.f32 %v897, -0.28449672
    %v914 = vadd.f32 %v898, -0.28449672
    %v915 = vadd.f32 %v899, -0.28449672
    %v916 = vadd.f32 %v900, -0.28449672
    %v917 = vadd.f32 %v901, -0.28449672
    %v918 = vadd.f32 %v902, -0.28449672
    %v919 = vadd.f32 %v903, -0.28449672
    %v920 = vadd.f32 %v904, -0.28449672
    %v921 = vmul.f32 %v905, %v599
    %v922 = vmul.f32 %v906, %v614
    %v923 = vmul.f32 %v907, %v629
    %v924 = vmul.f32 %v908, %v644
    %v925 = vmul.f32 %v909, %v659
    %v926 = vmul.f32 %v910, %v674
    %v927 = vmul.f32 %v911, %v689
    %v928 = vmul.f32 %v912, %v704
    %v929 = vmul.f32 %v913, %v719
    %v930 = vmul.f32 %v914, %v734
    %v931 = vmul.f32 %v915, %v749
    %v932 = vmul.f32 %v916, %v764
    %v933 = vmul.f32 %v917, %v779
    %v934 = vmul.f32 %v918, %v794
    %v935 = vmul.f32 %v919, %v809
    %v936 = vmul.f32 %v920, %v824
    %v937 = vadd.f32 %v921, 0.2548296
    %v938 = vadd.f32 %v922, 0.2548296
    %v939 = vadd.f32 %v923, 0.2548296
    %v940 = vadd.f32 %v924, 0.2548296
    %v941 = vadd.f32 %v925, 0.2548296
    %v942 = vadd.f32 %v926, 0.2548296
    %v943 = vadd.f32 %v927, 0.2548296
    %v944 = vadd.f32 %v928, 0.2548296
    %v945 = vadd.f32 %v929, 0.2548296
    %v946 = vadd.f32 %v930, 0.2548296
    %v947 = vadd.f32 %v931, 0.2548296
    %v948 = vadd.f32 %v932, 0.2548296
    %v949 = vadd.f32 %v933, 0.2548296
    %v950 = vadd.f32 %v934, 0.2548296
    %v951 = vadd.f32 %v935, 0.2548296
    %v952 = vadd.f32 %v936, 0.2548296
    %v953 = vmul.f32 %v937, %v599
    %v954 = vmul.f32 %v938, %v614
    %v955 = vmul.f32 %v939, %v629
    %v956 = vmul.f32 %v940, %v644
    %v957 = vmul.f32 %v941, %v659
    %v958 = vmul.f32 %v942, %v674
    %v959 = vmul.f32 %v943, %v689
    %v960 = vmul.f32 %v944, %v704
    %v961 = vmul.f32 %v945, %v719
    %v962 = vmul.f32 %v946, %v734
    %v963 = vmul.f32 %v947, %v749
    %v964 = vmul.f32 %v948, %v764
    %v965 = vmul.f32 %v949, %v779
    %v966 = vmul.f32 %v950, %v794
    %v967 = vmul.f32 %v951, %v809
    %v968 = vmul.f32 %v952, %v824
    %v969 = vmul.f32 %v537, %v537
    %v970 = vmul.f32 %v538, %v538
    %v971 = vmul.f32 %v539, %v539
    %v972 = vmul.f32 %v540, %v540
    %v973 = vmul.f32 %v541, %v541
    %v974 = vmul.f32 %v542, %v542
    %v975 = vmul.f32 %v543, %v543
    %v976 = vmul.f32 %v544, %v544
    %v977 = vmul.f32 %v545, %v545
    %v978 = vmul.f32 %v546, %v546
    %v979 = vmul.f32 %v547, %v547
    %v980 = vmul.f32 %v548, %v548
    %v981 = vmul.f32 %v549, %v549
    %v982 = vmul.f32 %v550, %v550
    %v983 = vmul.f32 %v551, %v551
    %v984 = vmul.f32 %v552, %v552
    %v985 = vsub.f32 0.0, %v969
    %v986 = vsub.f32 0.0, %v970
    %v987 = vsub.f32 0.0, %v971
    %v988 = vsub.f32 0.0, %v972
    %v989 = vsub.f32 0.0, %v973
    %v990 = vsub.f32 0.0, %v974
    %v991 = vsub.f32 0.0, %v975
    %v992 = vsub.f32 0.0, %v976
    %v993 = vsub.f32 0.0, %v977
    %v994 = vsub.f32 0.0, %v978
    %v995 = vsub.f32 0.0, %v979
    %v996 = vsub.f32 0.0, %v980
    %v997 = vsub.f32 0.0, %v981
    %v998 = vsub.f32 0.0, %v982
    %v999 = vsub.f32 0.0, %v983
    %v1000 = vsub.f32 0.0, %v984
    %v1001 = vmul.f32 %v985, 1.442695
    %v1002 = vpow.pop %v1001
    %v1003 = vmul.f32 %v986, 1.442695
    %v1004 = vpow.pop %v1003
    %v1005 = vmul.f32 %v987, 1.442695
    %v1006 = vpow.pop %v1005
    %v1007 = vmul.f32 %v988, 1.442695
    %v1008 = vpow.pop %v1007
    %v1009 = vmul.f32 %v989, 1.442695
    %v1010 = vpow.pop %v1009
    %v1011 = vmul.f32 %v990, 1.442695
    %v1012 = vpow.pop %v1011
    %v1013 = vmul.f32 %v991, 1.442695
    %v1014 = vpow.pop %v1013
    %v1015 = vmul.f32 %v992, 1.442695
    %v1016 = vpow.pop %v1015
    %v1017 = vmul.f32 %v993, 1.442695
    %v1018 = vpow.pop %v1017
    %v1019 = vmul.f32 %v994, 1.442695
    %v1020 = vpow.pop %v1019
    %v1021 = vmul.f32 %v995, 1.442695
    %v1022 = vpow.pop %v1021
    %v1023 = vmul.f32 %v996, 1.442695
    %v1024 = vpow.pop %v1023
    %v1025 = vmul.f32 %v997, 1.442695
    %v1026 = vpow.pop %v1025
    %v1027 = vmul.f32 %v998, 1.442695
    %v1028 = vpow.pop %v1027
    %v1029 = vmul.f32 %v999, 1.442695
    %v1030 = vpow.pop %v1029
    %v1031 = vmul.f32 %v1000, 1.442695
    %v1032 = vpow.pop %v1031
    %v1033 = vmul.f32 %v953, %v1002
    %v1034 = vmul.f32 %v954, %v1004
    %v1035 = vmul.f32 %v955, %v1006
    %v1036 = vmul.f32 %v956, %v1008
    %v1037 = vmul.f32 %v957, %v1010
    %v1038 = vmul.f32 %v958, %v1012
    %v1039 = vmul.f32 %v959, %v1014
    %v1040 = vmul.f32 %v960, %v1016
    %v1041 = vmul.f32 %v961, %v1018
    %v1042 = vmul.f32 %v962, %v1020
    %v1043 = vmul.f32 %v963, %v1022
    %v1044 = vmul.f32 %v964, %v1024
    %v1045 = vmul.f32 %v965, %v1026
    %v1046 = vmul.f32 %v966, %v1028
    %v1047 = vmul.f32 %v967, %v1030
    %v1048 = vmul.f32 %v968, %v1032
    %v1049 = vsub.f32 1.0, %v1033
    %v1050 = vsub.f32 1.0, %v1034
    %v1051 = vsub.f32 1.0, %v1035
    %v1052 = vsub.f32 1.0, %v1036
    %v1053 = vsub.f32 1.0, %v1037
    %v1054 = vsub.f32 1.0, %v1038
    %v1055 = vsub.f32 1.0, %v1039
    %v1056 = vsub.f32 1.0, %v1040
    %v1057 = vsub.f32 1.0, %v1041
    %v1058 = vsub.f32 1.0, %v1042
    %v1059 = vsub.f32 1.0, %v1043
    %v1060 = vsub.f32 1.0, %v1044
    %v1061 = vsub.f32 1.0, %v1045
    %v1062 = vsub.f32 1.0, %v1046
    %v1063 = vsub.f32 1.0, %v1047
    %v1064 = vsub.f32 1.0, %v1048
    %vm1065 = vcmp.lt.f32.partialorder %v521, 0.0
    %vm1066 = vcmp.lt.f32.partialorder %v522, 0.0
    %vm1067 = vcmp.lt.f32.partialorder %v523, 0.0
    %vm1068 = vcmp.lt.f32.partialorder %v524, 0.0
    %vm1069 = vcmp.lt.f32.partialorder %v525, 0.0
    %vm1070 = vcmp.lt.f32.partialorder %v526, 0.0
    %vm1071 = vcmp.lt.f32.partialorder %v527, 0.0
    %vm1072 = vcmp.lt.f32.partialorder %v528, 0.0
    %vm1073 = vcmp.lt.f32.partialorder %v529, 0.0
    %vm1074 = vcmp.lt.f32.partialorder %v530, 0.0
    %vm1075 = vcmp.lt.f32.partialorder %v531, 0.0
    %vm1076 = vcmp.lt.f32.partialorder %v532, 0.0
    %vm1077 = vcmp.lt.f32.partialorder %v533, 0.0
    %vm1078 = vcmp.lt.f32.partialorder %v534, 0.0
    %vm1079 = vcmp.lt.f32.partialorder %v535, 0.0
    %vm1080 = vcmp.lt.f32.partialorder %v536, 0.0
    %v1081 = vsub.f32 0.0, %v1049
    %v1082 = vsub.f32 0.0, %v1050
    %v1083 = vsub.f32 0.0, %v1051
    %v1084 = vsub.f32 0.0, %v1052
    %v1085 = vsub.f32 0.0, %v1053
    %v1086 = vsub.f32 0.0, %v1054
    %v1087 = vsub.f32 0.0, %v1055
    %v1088 = vsub.f32 0.0, %v1056
    %v1089 = vsub.f32 0.0, %v1057
    %v1090 = vsub.f32 0.0, %v1058
    %v1091 = vsub.f32 0.0, %v1059
    %v1092 = vsub.f32 0.0, %v1060
    %v1093 = vsub.f32 0.0, %v1061
    %v1094 = vsub.f32 0.0, %v1062
    %v1095 = vsub.f32 0.0, %v1063
    %v1096 = vsub.f32 0.0, %v1064
    %v1097 = vsel %vm1065, %v1081, %v1049
    %v1098 = vsel %vm1066, %v1082, %v1050
    %v1099 = vsel %vm1067, %v1083, %v1051
    %v1100 = vsel %vm1068, %v1084, %v1052
    %v1101 = vsel %vm1069, %v1085, %v1053
    %v1102 = vsel %vm1070, %v1086, %v1054
    %v1103 = vsel %vm1071, %v1087, %v1055
    %v1104 = vsel %vm1072, %v1088, %v1056
    %v1105 = vsel %vm1073, %v1089, %v1057
    %v1106 = vsel %vm1074, %v1090, %v1058
    %v1107 = vsel %vm1075, %v1091, %v1059
    %v1108 = vsel %vm1076, %v1092, %v1060
    %v1109 = vsel %vm1077, %v1093, %v1061
    %v1110 = vsel %vm1078, %v1094, %v1062
    %v1111 = vsel %vm1079, %v1095, %v1063
    %v1112 = vsel %vm1080, %v1096, %v1064
    %v1113 = vadd.f32 %v1097, 1.0
    %v1114 = vadd.f32 %v1098, 1.0
    %v1115 = vadd.f32 %v1099, 1.0
    %v1116 = vadd.f32 %v1100, 1.0
    %v1117 = vadd.f32 %v1101, 1.0
    %v1118 = vadd.f32 %v1102, 1.0
    %v1119 = vadd.f32 %v1103, 1.0
    %v1120 = vadd.f32 %v1104, 1.0
    %v1121 = vadd.f32 %v1105, 1.0
    %v1122 = vadd.f32 %v1106, 1.0
    %v1123 = vadd.f32 %v1107, 1.0
    %v1124 = vadd.f32 %v1108, 1.0
    %v1125 = vadd.f32 %v1109, 1.0
    %v1126 = vadd.f32 %v1110, 1.0
    %v1127 = vadd.f32 %v1111, 1.0
    %v1128 = vadd.f32 %v1112, 1.0
    %v1129 = vmul.f32 %v505, %v1113
    %v1130 = vmul.f32 %v506, %v1114
    %v1131 = vmul.f32 %v507, %v1115
    %v1132 = vmul.f32 %v508, %v1116
    %v1133 = vmul.f32 %v509, %v1117
    %v1134 = vmul.f32 %v510, %v1118
    %v1135 = vmul.f32 %v511, %v1119
    %v1136 = vmul.f32 %v512, %v1120
    %v1137 = vmul.f32 %v513, %v1121
    %v1138 = vmul.f32 %v514, %v1122
    %v1139 = vmul.f32 %v515, %v1123
    %v1140 = vmul.f32 %v516, %v1124
    %v1141 = vmul.f32 %v517, %v1125
    %v1142 = vmul.f32 %v518, %v1126
    %v1143 = vmul.f32 %v519, %v1127
    %v1144 = vmul.f32 %v520, %v1128
    %v1145 = vld [vmem:[#allocation8] sm:$0xff]
    %v1146 = vld [vmem:[#allocation8 + $0x8] sm:$0xff]
    %v1147 = vld [vmem:[#allocation8 + $0x10] sm:$0xff]
    %v1148 = vld [vmem:[#allocation8 + $0x18] sm:$0xff]
    %v1149 = vld [vmem:[#allocation8 + $0x20] sm:$0xff]
    %v1150 = vld [vmem:[#allocation8 + $0x28] sm:$0xff]
    %v1151 = vld [vmem:[#allocation8 + $0x30] sm:$0xff]
    %v1152 = vld [vmem:[#allocation8 + $0x38] sm:$0xff]
    %v1153 = vld [vmem:[#allocation8 + $0x40] sm:$0xff]
    %v1154 = vld [vmem:[#allocation8 + $0x48] sm:$0xff]
    %v1155 = vld [vmem:[#allocation8 + $0x50] sm:$0xff]
    %v1156 = vld [vmem:[#allocation8 + $0x58] sm:$0xff]
    %v1157 = vld [vmem:[#allocation8 + $0x60] sm:$0xff]
    %v1158 = vld [vmem:[#allocation8 + $0x68] sm:$0xff]
    %v1159 = vld [vmem:[#allocation8 + $0x70] sm:$0xff]
    %v1160 = vld [vmem:[#allocation8 + $0x78] sm:$0xff]
    %v1161 = vld [vmem:[#allocation8 + $0x80] sm:$0xff]
    %v1162 = vld [vmem:[#allocation8 + $0x88] sm:$0xff]
    %v1163 = vld [vmem:[#allocation8 + $0x90] sm:$0xff]
    %v1164 = vld [vmem:[#allocation8 + $0x98] sm:$0xff]
    %v1165 = vld [vmem:[#allocation8 + $0xa0] sm:$0xff]
    %v1166 = vld [vmem:[#allocation8 + $0xa8] sm:$0xff]
    %v1167 = vld [vmem:[#allocation8 + $0xb0] sm:$0xff]
    %v1168 = vld [vmem:[#allocation8 + $0xb8] sm:$0xff]
    %v1169 = vld [vmem:[#allocation8 + $0xc0] sm:$0xff]
    %v1170 = vld [vmem:[#allocation8 + $0xc8] sm:$0xff]
    %v1171 = vld [vmem:[#allocation8 + $0xd0] sm:$0xff]
    %v1172 = vld [vmem:[#allocation8 + $0xd8] sm:$0xff]
    %v1173 = vld [vmem:[#allocation8 + $0xe0] sm:$0xff]
    %v1174 = vld [vmem:[#allocation8 + $0xe8] sm:$0xff]
    %v1175 = vld [vmem:[#allocation8 + $0xf0] sm:$0xff]
    %v1176 = vld [vmem:[#allocation8 + $0xf8] sm:$0xff]
    %v1177 = vld [vmem:[#allocation8 + $0x100] sm:$0xff]
    %v1178 = vld [vmem:[#allocation8 + $0x108] sm:$0xff]
    %v1179 = vld [vmem:[#allocation8 + $0x110] sm:$0xff]
    %v1180 = vld [vmem:[#allocation8 + $0x118] sm:$0xff]
    %v1181 = vld [vmem:[#allocation8 + $0x120] sm:$0xff]
    %v1182 = vld [vmem:[#allocation8 + $0x128] sm:$0xff]
    %v1183 = vld [vmem:[#allocation8 + $0x130] sm:$0xff]
    %v1184 = vld [vmem:[#allocation8 + $0x138] sm:$0xff]
    %v1185 = vld [vmem:[#allocation8 + $0x140] sm:$0xff]
    %v1186 = vld [vmem:[#allocation8 + $0x148] sm:$0xff]
    %v1187 = vld [vmem:[#allocation8 + $0x150] sm:$0xff]
    %v1188 = vld [vmem:[#allocation8 + $0x158] sm:$0xff]
    %v1189 = vld [vmem:[#allocation8 + $0x160] sm:$0xff]
    %v1190 = vld [vmem:[#allocation8 + $0x168] sm:$0xff]
    %v1191 = vld [vmem:[#allocation8 + $0x170] sm:$0xff]
    %v1192 = vld [vmem:[#allocation8 + $0x178] sm:$0xff]
    %v1193 = vld [vmem:[#allocation8 + $0x180] sm:$0xff]
    %v1194 = vld [vmem:[#allocation8 + $0x188] sm:$0xff]
    %v1195 = vld [vmem:[#allocation8 + $0x190] sm:$0xff]
    %v1196 = vld [vmem:[#allocation8 + $0x198] sm:$0xff]
    %v1197 = vld [vmem:[#allocation8 + $0x1a0] sm:$0xff]
    %v1198 = vld [vmem:[#allocation8 + $0x1a8] sm:$0xff]
    %v1199 = vld [vmem:[#allocation8 + $0x1b0] sm:$0xff]
    %v1200 = vld [vmem:[#allocation8 + $0x1b8] sm:$0xff]
    %v1201 = vld [vmem:[#allocation8 + $0x1c0] sm:$0xff]
    %v1202 = vld [vmem:[#allocation8 + $0x1c8] sm:$0xff]
    %v1203 = vld [vmem:[#allocation8 + $0x1d0] sm:$0xff]
    %v1204 = vld [vmem:[#allocation8 + $0x1d8] sm:$0xff]
    %v1205 = vld [vmem:[#allocation8 + $0x1e0] sm:$0xff]
    %v1206 = vld [vmem:[#allocation8 + $0x1e8] sm:$0xff]
    %v1207 = vld [vmem:[#allocation8 + $0x1f0] sm:$0xff]
    %v1208 = vld [vmem:[#allocation8 + $0x1f8] sm:$0xff]
    %v1209 = vld [vmem:[#allocation8 + $0x200] sm:$0xff]
    %v1210 = vld [vmem:[#allocation8 + $0x208] sm:$0xff]
    %v1211 = vld [vmem:[#allocation8 + $0x210] sm:$0xff]
    %v1212 = vld [vmem:[#allocation8 + $0x218] sm:$0xff]
    %v1213 = vld [vmem:[#allocation8 + $0x220] sm:$0xff]
    %v1214 = vld [vmem:[#allocation8 + $0x228] sm:$0xff]
    %v1215 = vld [vmem:[#allocation8 + $0x230] sm:$0xff]
    %v1216 = vld [vmem:[#allocation8 + $0x238] sm:$0xff]
    %v1217 = vld [vmem:[#allocation8 + $0x240] sm:$0xff]
    %v1218 = vld [vmem:[#allocation8 + $0x248] sm:$0xff]
    %v1219 = vld [vmem:[#allocation8 + $0x250] sm:$0xff]
    %v1220 = vld [vmem:[#allocation8 + $0x258] sm:$0xff]
    %v1221 = vld [vmem:[#allocation8 + $0x260] sm:$0xff]
    %v1222 = vld [vmem:[#allocation8 + $0x268] sm:$0xff]
    %v1223 = vld [vmem:[#allocation8 + $0x270] sm:$0xff]
    %v1224 = vld [vmem:[#allocation8 + $0x278] sm:$0xff]
    %v1225 = vld [vmem:[#allocation8 + $0x280] sm:$0xff]
    %v1226 = vld [vmem:[#allocation8 + $0x288] sm:$0xff]
    %v1227 = vld [vmem:[#allocation8 + $0x290] sm:$0xff]
    %v1228 = vld [vmem:[#allocation8 + $0x298] sm:$0xff]
    %v1229 = vld [vmem:[#allocation8 + $0x2a0] sm:$0xff]
    %v1230 = vld [vmem:[#allocation8 + $0x2a8] sm:$0xff]
    %v1231 = vld [vmem:[#allocation8 + $0x2b0] sm:$0xff]
    %v1232 = vld [vmem:[#allocation8 + $0x2b8] sm:$0xff]
    %v1233 = vld [vmem:[#allocation8 + $0x2c0] sm:$0xff]
    %v1234 = vld [vmem:[#allocation8 + $0x2c8] sm:$0xff]
    %v1235 = vld [vmem:[#allocation8 + $0x2d0] sm:$0xff]
    %v1236 = vld [vmem:[#allocation8 + $0x2d8] sm:$0xff]
    %v1237 = vld [vmem:[#allocation8 + $0x2e0] sm:$0xff]
    %v1238 = vld [vmem:[#allocation8 + $0x2e8] sm:$0xff]
    %v1239 = vld [vmem:[#allocation8 + $0x2f0] sm:$0xff]
    %v1240 = vld [vmem:[#allocation8 + $0x2f8] sm:$0xff]
    %v1241 = vld [vmem:[#allocation8 + $0x300] sm:$0xff]
    %v1242 = vld [vmem:[#allocation8 + $0x308] sm:$0xff]
    %v1243 = vld [vmem:[#allocation8 + $0x310] sm:$0xff]
    %v1244 = vld [vmem:[#allocation8 + $0x318] sm:$0xff]
    %v1245 = vld [vmem:[#allocation8 + $0x320] sm:$0xff]
    %v1246 = vld [vmem:[#allocation8 + $0x328] sm:$0xff]
    %v1247 = vld [vmem:[#allocation8 + $0x330] sm:$0xff]
    %v1248 = vld [vmem:[#allocation8 + $0x338] sm:$0xff]
    %v1249 = vld [vmem:[#allocation8 + $0x340] sm:$0xff]
    %v1250 = vld [vmem:[#allocation8 + $0x348] sm:$0xff]
    %v1251 = vld [vmem:[#allocation8 + $0x350] sm:$0xff]
    %v1252 = vld [vmem:[#allocation8 + $0x358] sm:$0xff]
    %v1253 = vld [vmem:[#allocation8 + $0x360] sm:$0xff]
    %v1254 = vld [vmem:[#allocation8 + $0x368] sm:$0xff]
    %v1255 = vld [vmem:[#allocation8 + $0x370] sm:$0xff]
    %v1256 = vld [vmem:[#allocation8 + $0x378] sm:$0xff]
    %v1257 = vld [vmem:[#allocation8 + $0x380] sm:$0xff]
    %v1258 = vld [vmem:[#allocation8 + $0x388] sm:$0xff]
    %v1259 = vld [vmem:[#allocation8 + $0x390] sm:$0xff]
    %v1260 = vld [vmem:[#allocation8 + $0x398] sm:$0xff]
    %v1261 = vld [vmem:[#allocation8 + $0x3a0] sm:$0xff]
    %v1262 = vld [vmem:[#allocation8 + $0x3a8] sm:$0xff]
    %v1263 = vld [vmem:[#allocation8 + $0x3b0] sm:$0xff]
    %v1264 = vld [vmem:[#allocation8 + $0x3b8] sm:$0xff]
    %v1265 = vld [vmem:[#allocation8 + $0x3c0] sm:$0xff]
    %v1266 = vld [vmem:[#allocation8 + $0x3c8] sm:$0xff]
    %v1267 = vld [vmem:[#allocation8 + $0x3d0] sm:$0xff]
    %v1268 = vld [vmem:[#allocation8 + $0x3d8] sm:$0xff]
    %v1269 = vld [vmem:[#allocation8 + $0x3e0] sm:$0xff]
    %v1270 = vld [vmem:[#allocation8 + $0x3e8] sm:$0xff]
    %v1271 = vld [vmem:[#allocation8 + $0x3f0] sm:$0xff]
    %v1272 = vld [vmem:[#allocation8 + $0x3f8] sm:$0xff]
    %v1273 = vld [vmem:[#allocation8 + $0x400] sm:$0xff]
    %v1274 = vld [vmem:[#allocation8 + $0x408] sm:$0xff]
    %v1275 = vld [vmem:[#allocation8 + $0x410] sm:$0xff]
    %v1276 = vld [vmem:[#allocation8 + $0x418] sm:$0xff]
    %v1277 = vld [vmem:[#allocation8 + $0x420] sm:$0xff]
    %v1278 = vld [vmem:[#allocation8 + $0x428] sm:$0xff]
    %v1279 = vld [vmem:[#allocation8 + $0x430] sm:$0xff]
    %v1280 = vld [vmem:[#allocation8 + $0x438] sm:$0xff]
    %v1281 = vld [vmem:[#allocation8 + $0x440] sm:$0xff]
    %v1282 = vld [vmem:[#allocation8 + $0x448] sm:$0xff]
    %v1283 = vld [vmem:[#allocation8 + $0x450] sm:$0xff]
    %v1284 = vld [vmem:[#allocation8 + $0x458] sm:$0xff]
    %v1285 = vld [vmem:[#allocation8 + $0x460] sm:$0xff]
    %v1286 = vld [vmem:[#allocation8 + $0x468] sm:$0xff]
    %v1287 = vld [vmem:[#allocation8 + $0x470] sm:$0xff]
    %v1288 = vld [vmem:[#allocation8 + $0x478] sm:$0xff]
    %v1289 = vld [vmem:[#allocation8 + $0x480] sm:$0xff]
    %v1290 = vld [vmem:[#allocation8 + $0x488] sm:$0xff]
    %v1291 = vld [vmem:[#allocation8 + $0x490] sm:$0xff]
    %v1292 = vld [vmem:[#allocation8 + $0x498] sm:$0xff]
    %v1293 = vld [vmem:[#allocation8 + $0x4a0] sm:$0xff]
    %v1294 = vld [vmem:[#allocation8 + $0x4a8] sm:$0xff]
    %v1295 = vld [vmem:[#allocation8 + $0x4b0] sm:$0xff]
    %v1296 = vld [vmem:[#allocation8 + $0x4b8] sm:$0xff]
    %v1297 = vld [vmem:[#allocation8 + $0x4c0] sm:$0xff]
    %v1298 = vld [vmem:[#allocation8 + $0x4c8] sm:$0xff]
    %v1299 = vld [vmem:[#allocation8 + $0x4d0] sm:$0xff]
    %v1300 = vld [vmem:[#allocation8 + $0x4d8] sm:$0xff]
    %v1301 = vld [vmem:[#allocation8 + $0x4e0] sm:$0xff]
    %v1302 = vld [vmem:[#allocation8 + $0x4e8] sm:$0xff]
    %v1303 = vld [vmem:[#allocation8 + $0x4f0] sm:$0xff]
    %v1304 = vld [vmem:[#allocation8 + $0x4f8] sm:$0xff]
    %v1305 = vld [vmem:[#allocation8 + $0x500] sm:$0xff]
    %v1306 = vld [vmem:[#allocation8 + $0x508] sm:$0xff]
    %v1307 = vld [vmem:[#allocation8 + $0x510] sm:$0xff]
    %v1308 = vld [vmem:[#allocation8 + $0x518] sm:$0xff]
    %v1309 = vld [vmem:[#allocation8 + $0x520] sm:$0xff]
    %v1310 = vld [vmem:[#allocation8 + $0x528] sm:$0xff]
    %v1311 = vld [vmem:[#allocation8 + $0x530] sm:$0xff]
    %v1312 = vld [vmem:[#allocation8 + $0x538] sm:$0xff]
    %v1313 = vld [vmem:[#allocation8 + $0x540] sm:$0xff]
    %v1314 = vld [vmem:[#allocation8 + $0x548] sm:$0xff]
    %v1315 = vld [vmem:[#allocation8 + $0x550] sm:$0xff]
    %v1316 = vld [vmem:[#allocation8 + $0x558] sm:$0xff]
    %v1317 = vld [vmem:[#allocation8 + $0x560] sm:$0xff]
    %v1318 = vld [vmem:[#allocation8 + $0x568] sm:$0xff]
    %v1319 = vld [vmem:[#allocation8 + $0x570] sm:$0xff]
    %v1320 = vld [vmem:[#allocation8 + $0x578] sm:$0xff]
    %v1321 = vld [vmem:[#allocation8 + $0x580] sm:$0xff]
    %v1322 = vld [vmem:[#allocation8 + $0x588] sm:$0xff]
    %v1323 = vld [vmem:[#allocation8 + $0x590] sm:$0xff]
    %v1324 = vld [vmem:[#allocation8 + $0x598] sm:$0xff]
    %v1325 = vld [vmem:[#allocation8 + $0x5a0] sm:$0xff]
    %v1326 = vld [vmem:[#allocation8 + $0x5a8] sm:$0xff]
    %v1327 = vld [vmem:[#allocation8 + $0x5b0] sm:$0xff]
    %v1328 = vld [vmem:[#allocation8 + $0x5b8] sm:$0xff]
    %v1329 = vld [vmem:[#allocation8 + $0x5c0] sm:$0xff]
    %v1330 = vld [vmem:[#allocation8 + $0x5c8] sm:$0xff]
    %v1331 = vld [vmem:[#allocation8 + $0x5d0] sm:$0xff]
    %v1332 = vld [vmem:[#allocation8 + $0x5d8] sm:$0xff]
    %v1333 = vld [vmem:[#allocation8 + $0x5e0] sm:$0xff]
    %v1334 = vld [vmem:[#allocation8 + $0x5e8] sm:$0xff]
    %v1335 = vld [vmem:[#allocation8 + $0x5f0] sm:$0xff]
    %v1336 = vld [vmem:[#allocation8 + $0x5f8] sm:$0xff]
    %v1337 = vld [vmem:[#allocation8 + $0x600] sm:$0xff]
    %v1338 = vld [vmem:[#allocation8 + $0x608] sm:$0xff]
    %v1339 = vld [vmem:[#allocation8 + $0x610] sm:$0xff]
    %v1340 = vld [vmem:[#allocation8 + $0x618] sm:$0xff]
    %v1341 = vld [vmem:[#allocation8 + $0x620] sm:$0xff]
    %v1342 = vld [vmem:[#allocation8 + $0x628] sm:$0xff]
    %v1343 = vld [vmem:[#allocation8 + $0x630] sm:$0xff]
    %v1344 = vld [vmem:[#allocation8 + $0x638] sm:$0xff]
    %v1345 = vld [vmem:[#allocation8 + $0x640] sm:$0xff]
    %v1346 = vld [vmem:[#allocation8 + $0x648] sm:$0xff]
    %v1347 = vld [vmem:[#allocation8 + $0x650] sm:$0xff]
    %v1348 = vld [vmem:[#allocation8 + $0x658] sm:$0xff]
    %v1349 = vld [vmem:[#allocation8 + $0x660] sm:$0xff]
    %v1350 = vld [vmem:[#allocation8 + $0x668] sm:$0xff]
    %v1351 = vld [vmem:[#allocation8 + $0x670] sm:$0xff]
    %v1352 = vld [vmem:[#allocation8 + $0x678] sm:$0xff]
    %v1353 = vld [vmem:[#allocation8 + $0x680] sm:$0xff]
    %v1354 = vld [vmem:[#allocation8 + $0x688] sm:$0xff]
    %v1355 = vld [vmem:[#allocation8 + $0x690] sm:$0xff]
    %v1356 = vld [vmem:[#allocation8 + $0x698] sm:$0xff]
    %v1357 = vld [vmem:[#allocation8 + $0x6a0] sm:$0xff]
    %v1358 = vld [vmem:[#allocation8 + $0x6a8] sm:$0xff]
    %v1359 = vld [vmem:[#allocation8 + $0x6b0] sm:$0xff]
    %v1360 = vld [vmem:[#allocation8 + $0x6b8] sm:$0xff]
    %v1361 = vld [vmem:[#allocation8 + $0x6c0] sm:$0xff]
    %v1362 = vld [vmem:[#allocation8 + $0x6c8] sm:$0xff]
    %v1363 = vld [vmem:[#allocation8 + $0x6d0] sm:$0xff]
    %v1364 = vld [vmem:[#allocation8 + $0x6d8] sm:$0xff]
    %v1365 = vld [vmem:[#allocation8 + $0x6e0] sm:$0xff]
    %v1366 = vld [vmem:[#allocation8 + $0x6e8] sm:$0xff]
    %v1367 = vld [vmem:[#allocation8 + $0x6f0] sm:$0xff]
    %v1368 = vld [vmem:[#allocation8 + $0x6f8] sm:$0xff]
    %v1369 = vld [vmem:[#allocation8 + $0x700] sm:$0xff]
    %v1370 = vld [vmem:[#allocation8 + $0x708] sm:$0xff]
    %v1371 = vld [vmem:[#allocation8 + $0x710] sm:$0xff]
    %v1372 = vld [vmem:[#allocation8 + $0x718] sm:$0xff]
    %v1373 = vld [vmem:[#allocation8 + $0x720] sm:$0xff]
    %v1374 = vld [vmem:[#allocation8 + $0x728] sm:$0xff]
    %v1375 = vld [vmem:[#allocation8 + $0x730] sm:$0xff]
    %v1376 = vld [vmem:[#allocation8 + $0x738] sm:$0xff]
    %v1377 = vld [vmem:[#allocation8 + $0x740] sm:$0xff]
    %v1378 = vld [vmem:[#allocation8 + $0x748] sm:$0xff]
    %v1379 = vld [vmem:[#allocation8 + $0x750] sm:$0xff]
    %v1380 = vld [vmem:[#allocation8 + $0x758] sm:$0xff]
    %v1381 = vld [vmem:[#allocation8 + $0x760] sm:$0xff]
    %v1382 = vld [vmem:[#allocation8 + $0x768] sm:$0xff]
    %v1383 = vld [vmem:[#allocation8 + $0x770] sm:$0xff]
    %v1384 = vld [vmem:[#allocation8 + $0x778] sm:$0xff]
    %v1385 = vld [vmem:[#allocation8 + $0x780] sm:$0xff]
    %v1386 = vld [vmem:[#allocation8 + $0x788] sm:$0xff]
    %v1387 = vld [vmem:[#allocation8 + $0x790] sm:$0xff]
    %v1388 = vld [vmem:[#allocation8 + $0x798] sm:$0xff]
    %v1389 = vld [vmem:[#allocation8 + $0x7a0] sm:$0xff]
    %v1390 = vld [vmem:[#allocation8 + $0x7a8] sm:$0xff]
    %v1391 = vld [vmem:[#allocation8 + $0x7b0] sm:$0xff]
    %v1392 = vld [vmem:[#allocation8 + $0x7b8] sm:$0xff]
    %v1393 = vld [vmem:[#allocation8 + $0x7c0] sm:$0xff]
    %v1394 = vld [vmem:[#allocation8 + $0x7c8] sm:$0xff]
    %v1395 = vld [vmem:[#allocation8 + $0x7d0] sm:$0xff]
    %v1396 = vld [vmem:[#allocation8 + $0x7d8] sm:$0xff]
    %v1397 = vld [vmem:[#allocation8 + $0x7e0] sm:$0xff]
    %v1398 = vld [vmem:[#allocation8 + $0x7e8] sm:$0xff]
    %v1399 = vld [vmem:[#allocation8 + $0x7f0] sm:$0xff]
    %v1400 = vld [vmem:[#allocation8 + $0x7f8] sm:$0xff]
    %v1401 = vld [vmem:[%s4] sm:$0x1]
    %v1403 = vperm.slane %v1401, 0
    %1405 = vmatpush.msra.mxu0 %v1160
    %1406 = vmatpush.msra.mxu0 %v1159
    %1407 = vmatpush.msra.mxu0 %v1158
    %1408 = vmatpush.msra.mxu0 %v1157
    %1409 = vmatpush.msra.mxu0 %v1156
    %1410 = vmatpush.msra.mxu0 %v1155
    %1411 = vmatpush.msra.mxu0 %v1154
    %1412 = vmatpush.msra.mxu0 %v1153
    %1413 = vmatpush.msra.mxu0 %v1152
    %1414 = vmatpush.msra.mxu0 %v1151
    %1415 = vmatpush.msra.mxu0 %v1150
    %1416 = vmatpush.msra.mxu0 %v1149
    %1417 = vmatpush.msra.mxu0 %v1148
    %1418 = vmatpush.msra.mxu0 %v1147
    %1419 = vmatpush.msra.mxu0 %v1146
    %1420 = vmatpush.msra.mxu0 %v1145
    %1421 = vmatmul.f32.gmra.mxu0 %v1129
    %v1422 = vpop.f32.mrf.mxu0
    %v1423 = vadd.f32 %v1403, %v1422
    %1424 = vdwg.mxu0
    %1425 = vmatpush.msra.mxu0 %v1176
    %1426 = vmatpush.msra.mxu0 %v1175
    %1427 = vmatpush.msra.mxu0 %v1174
    %1428 = vmatpush.msra.mxu0 %v1173
    %1429 = vmatpush.msra.mxu0 %v1172
    %1430 = vmatpush.msra.mxu0 %v1171
    %1431 = vmatpush.msra.mxu0 %v1170
    %1432 = vmatpush.msra.mxu0 %v1169
    %1433 = vmatpush.msra.mxu0 %v1168
    %1434 = vmatpush.msra.mxu0 %v1167
    %1435 = vmatpush.msra.mxu0 %v1166
    %1436 = vmatpush.msra.mxu0 %v1165
    %1437 = vmatpush.msra.mxu0 %v1164
    %1438 = vmatpush.msra.mxu0 %v1163
    %1439 = vmatpush.msra.mxu0 %v1162
    %1440 = vmatpush.msra.mxu0 %v1161
    %1441 = vmatmul.f32.gmra.mxu0 %v1130
    %v1442 = vpop.f32.mrf.mxu0
    %v1443 = vadd.f32 %v1423, %v1442
    %1444 = vdwg.mxu0
    %1445 = vmatpush.msra.mxu0 %v1192
    %1446 = vmatpush.msra.mxu0 %v1191
    %1447 = vmatpush.msra.mxu0 %v1190
    %1448 = vmatpush.msra.mxu0 %v1189
    %1449 = vmatpush.msra.mxu0 %v1188
    %1450 = vmatpush.msra.mxu0 %v1187
    %1451 = vmatpush.msra.mxu0 %v1186
    %1452 = vmatpush.msra.mxu0 %v1185
    %1453 = vmatpush.msra.mxu0 %v1184
    %1454 = vmatpush.msra.mxu0 %v1183
    %1455 = vmatpush.msra.mxu0 %v1182
    %1456 = vmatpush.msra.mxu0 %v1181
    %1457 = vmatpush.msra.mxu0 %v1180
    %1458 = vmatpush.msra.mxu0 %v1179
    %1459 = vmatpush.msra.mxu0 %v1178
    %1460 = vmatpush.msra.mxu0 %v1177
    %1461 = vmatmul.f32.gmra.mxu0 %v1131
    %v1462 = vpop.f32.mrf.mxu0
    %v1463 = vadd.f32 %v1443, %v1462
    %1464 = vdwg.mxu0
    %1465 = vmatpush.msra.mxu0 %v1208
    %1466 = vmatpush.msra.mxu0 %v1207
    %1467 = vmatpush.msra.mxu0 %v1206
    %1468 = vmatpush.msra.mxu0 %v1205
    %1469 = vmatpush.msra.mxu0 %v1204
    %1470 = vmatpush.msra.mxu0 %v1203
    %1471 = vmatpush.msra.mxu0 %v1202
    %1472 = vmatpush.msra.mxu0 %v1201
    %1473 = vmatpush.msra.mxu0 %v1200
    %1474 = vmatpush.msra.mxu0 %v1199
    %1475 = vmatpush.msra.mxu0 %v1198
    %1476 = vmatpush.msra.mxu0 %v1197
    %1477 = vmatpush.msra.mxu0 %v1196
    %1478 = vmatpush.msra.mxu0 %v1195
    %1479 = vmatpush.msra.mxu0 %v1194
    %1480 = vmatpush.msra.mxu0 %v1193
    %1481 = vmatmul.f32.gmra.mxu0 %v1132
    %v1482 = vpop.f32.mrf.mxu0
    %v1483 = vadd.f32 %v1463, %v1482
    %1484 = vdwg.mxu0
    %1485 = vmatpush.msra.mxu0 %v1224
    %1486 = vmatpush.msra.mxu0 %v1223
    %1487 = vmatpush.msra.mxu0 %v1222
    %1488 = vmatpush.msra.mxu0 %v1221
    %1489 = vmatpush.msra.mxu0 %v1220
    %1490 = vmatpush.msra.mxu0 %v1219
    %1491 = vmatpush.msra.mxu0 %v1218
    %1492 = vmatpush.msra.mxu0 %v1217
    %1493 = vmatpush.msra.mxu0 %v1216
    %1494 = vmatpush.msra.mxu0 %v1215
    %1495 = vmatpush.msra.mxu0 %v1214
    %1496 = vmatpush.msra.mxu0 %v1213
    %1497 = vmatpush.msra.mxu0 %v1212
    %1498 = vmatpush.msra.mxu0 %v1211
    %1499 = vmatpush.msra.mxu0 %v1210
    %1500 = vmatpush.msra.mxu0 %v1209
    %1501 = vmatmul.f32.gmra.mxu0 %v1133
    %v1502 = vpop.f32.mrf.mxu0
    %v1503 = vadd.f32 %v1483, %v1502
    %1504 = vdwg.mxu0
    %1505 = vmatpush.msra.mxu0 %v1240
    %1506 = vmatpush.msra.mxu0 %v1239
    %1507 = vmatpush.msra.mxu0 %v1238
    %1508 = vmatpush.msra.mxu0 %v1237
    %1509 = vmatpush.msra.mxu0 %v1236
    %1510 = vmatpush.msra.mxu0 %v1235
    %1511 = vmatpush.msra.mxu0 %v1234
    %1512 = vmatpush.msra.mxu0 %v1233
    %1513 = vmatpush.msra.mxu0 %v1232
    %1514 = vmatpush.msra.mxu0 %v1231
    %1515 = vmatpush.msra.mxu0 %v1230
    %1516 = vmatpush.msra.mxu0 %v1229
    %1517 = vmatpush.msra.mxu0 %v1228
    %1518 = vmatpush.msra.mxu0 %v1227
    %1519 = vmatpush.msra.mxu0 %v1226
    %1520 = vmatpush.msra.mxu0 %v1225
    %1521 = vmatmul.f32.gmra.mxu0 %v1134
    %v1522 = vpop.f32.mrf.mxu0
    %v1523 = vadd.f32 %v1503, %v1522
    %1524 = vdwg.mxu0
    %1525 = vmatpush.msra.mxu0 %v1256
    %1526 = vmatpush.msra.mxu0 %v1255
    %1527 = vmatpush.msra.mxu0 %v1254
    %1528 = vmatpush.msra.mxu0 %v1253
    %1529 = vmatpush.msra.mxu0 %v1252
    %1530 = vmatpush.msra.mxu0 %v1251
    %1531 = vmatpush.msra.mxu0 %v1250
    %1532 = vmatpush.msra.mxu0 %v1249
    %1533 = vmatpush.msra.mxu0 %v1248
    %1534 = vmatpush.msra.mxu0 %v1247
    %1535 = vmatpush.msra.mxu0 %v1246
    %1536 = vmatpush.msra.mxu0 %v1245
    %1537 = vmatpush.msra.mxu0 %v1244
    %1538 = vmatpush.msra.mxu0 %v1243
    %1539 = vmatpush.msra.mxu0 %v1242
    %1540 = vmatpush.msra.mxu0 %v1241
    %1541 = vmatmul.f32.gmra.mxu0 %v1135
    %v1542 = vpop.f32.mrf.mxu0
    %v1543 = vadd.f32 %v1523, %v1542
    %1544 = vdwg.mxu0
    %1545 = vmatpush.msra.mxu0 %v1272
    %1546 = vmatpush.msra.mxu0 %v1271
    %1547 = vmatpush.msra.mxu0 %v1270
    %1548 = vmatpush.msra.mxu0 %v1269
    %1549 = vmatpush.msra.mxu0 %v1268
    %1550 = vmatpush.msra.mxu0 %v1267
    %1551 = vmatpush.msra.mxu0 %v1266
    %1552 = vmatpush.msra.mxu0 %v1265
    %1553 = vmatpush.msra.mxu0 %v1264
    %1554 = vmatpush.msra.mxu0 %v1263
    %1555 = vmatpush.msra.mxu0 %v1262
    %1556 = vmatpush.msra.mxu0 %v1261
    %1557 = vmatpush.msra.mxu0 %v1260
    %1558 = vmatpush.msra.mxu0 %v1259
    %1559 = vmatpush.msra.mxu0 %v1258
    %1560 = vmatpush.msra.mxu0 %v1257
    %1561 = vmatmul.f32.gmra.mxu0 %v1136
    %v1562 = vpop.f32.mrf.mxu0
    %v1563 = vadd.f32 %v1543, %v1562
    %1564 = vdwg.mxu0
    %1565 = vmatpush.msra.mxu0 %v1288
    %1566 = vmatpush.msra.mxu0 %v1287
    %1567 = vmatpush.msra.mxu0 %v1286
    %1568 = vmatpush.msra.mxu0 %v1285
    %1569 = vmatpush.msra.mxu0 %v1284
    %1570 = vmatpush.msra.mxu0 %v1283
    %1571 = vmatpush.msra.mxu0 %v1282
    %1572 = vmatpush.msra.mxu0 %v1281
    %1573 = vmatpush.msra.mxu0 %v1280
    %1574 = vmatpush.msra.mxu0 %v1279
    %1575 = vmatpush.msra.mxu0 %v1278
    %1576 = vmatpush.msra.mxu0 %v1277
    %1577 = vmatpush.msra.mxu0 %v1276
    %1578 = vmatpush.msra.mxu0 %v1275
    %1579 = vmatpush.msra.mxu0 %v1274
    %1580 = vmatpush.msra.mxu0 %v1273
    %1581 = vmatmul.f32.gmra.mxu0 %v1137
    %v1582 = vpop.f32.mrf.mxu0
    %v1583 = vadd.f32 %v1563, %v1582
    %1584 = vdwg.mxu0
    %1585 = vmatpush.msra.mxu0 %v1304
    %1586 = vmatpush.msra.mxu0 %v1303
    %1587 = vmatpush.msra.mxu0 %v1302
    %1588 = vmatpush.msra.mxu0 %v1301
    %1589 = vmatpush.msra.mxu0 %v1300
    %1590 = vmatpush.msra.mxu0 %v1299
    %1591 = vmatpush.msra.mxu0 %v1298
    %1592 = vmatpush.msra.mxu0 %v1297
    %1593 = vmatpush.msra.mxu0 %v1296
    %1594 = vmatpush.msra.mxu0 %v1295
    %1595 = vmatpush.msra.mxu0 %v1294
    %1596 = vmatpush.msra.mxu0 %v1293
    %1597 = vmatpush.msra.mxu0 %v1292
    %1598 = vmatpush.msra.mxu0 %v1291
    %1599 = vmatpush.msra.mxu0 %v1290
    %1600 = vmatpush.msra.mxu0 %v1289
    %1601 = vmatmul.f32.gmra.mxu0 %v1138
    %v1602 = vpop.f32.mrf.mxu0
    %v1603 = vadd.f32 %v1583, %v1602
    %1604 = vdwg.mxu0
    %1605 = vmatpush.msra.mxu0 %v1320
    %1606 = vmatpush.msra.mxu0 %v1319
    %1607 = vmatpush.msra.mxu0 %v1318
    %1608 = vmatpush.msra.mxu0 %v1317
    %1609 = vmatpush.msra.mxu0 %v1316
    %1610 = vmatpush.msra.mxu0 %v1315
    %1611 = vmatpush.msra.mxu0 %v1314
    %1612 = vmatpush.msra.mxu0 %v1313
    %1613 = vmatpush.msra.mxu0 %v1312
    %1614 = vmatpush.msra.mxu0 %v1311
    %1615 = vmatpush.msra.mxu0 %v1310
    %1616 = vmatpush.msra.mxu0 %v1309
    %1617 = vmatpush.msra.mxu0 %v1308
    %1618 = vmatpush.msra.mxu0 %v1307
    %1619 = vmatpush.msra.mxu0 %v1306
    %1620 = vmatpush.msra.mxu0 %v1305
    %1621 = vmatmul.f32.gmra.mxu0 %v1139
    %v1622 = vpop.f32.mrf.mxu0
    %v1623 = vadd.f32 %v1603, %v1622
    %1624 = vdwg.mxu0
    %1625 = vmatpush.msra.mxu0 %v1336
    %1626 = vmatpush.msra.mxu0 %v1335
    %1627 = vmatpush.msra.mxu0 %v1334
    %1628 = vmatpush.msra.mxu0 %v1333
    %1629 = vmatpush.msra.mxu0 %v1332
    %1630 = vmatpush.msra.mxu0 %v1331
    %1631 = vmatpush.msra.mxu0 %v1330
    %1632 = vmatpush.msra.mxu0 %v1329
    %1633 = vmatpush.msra.mxu0 %v1328
    %1634 = vmatpush.msra.mxu0 %v1327
    %1635 = vmatpush.msra.mxu0 %v1326
    %1636 = vmatpush.msra.mxu0 %v1325
    %1637 = vmatpush.msra.mxu0 %v1324
    %1638 = vmatpush.msra.mxu0 %v1323
    %1639 = vmatpush.msra.mxu0 %v1322
    %1640 = vmatpush.msra.mxu0 %v1321
    %1641 = vmatmul.f32.gmra.mxu0 %v1140
    %v1642 = vpop.f32.mrf.mxu0
    %v1643 = vadd.f32 %v1623, %v1642
    %1644 = vdwg.mxu0
    %1645 = vmatpush.msra.mxu0 %v1352
    %1646 = vmatpush.msra.mxu0 %v1351
    %1647 = vmatpush.msra.mxu0 %v1350
    %1648 = vmatpush.msra.mxu0 %v1349
    %1649 = vmatpush.msra.mxu0 %v1348
    %1650 = vmatpush.msra.mxu0 %v1347
    %1651 = vmatpush.msra.mxu0 %v1346
    %1652 = vmatpush.msra.mxu0 %v1345
    %1653 = vmatpush.msra.mxu0 %v1344
    %1654 = vmatpush.msra.mxu0 %v1343
    %1655 = vmatpush.msra.mxu0 %v1342
    %1656 = vmatpush.msra.mxu0 %v1341
    %1657 = vmatpush.msra.mxu0 %v1340
    %1658 = vmatpush.msra.mxu0 %v1339
    %1659 = vmatpush.msra.mxu0 %v1338
    %1660 = vmatpush.msra.mxu0 %v1337
    %1661 = vmatmul.f32.gmra.mxu0 %v1141
    %v1662 = vpop.f32.mrf.mxu0
    %v1663 = vadd.f32 %v1643, %v1662
    %1664 = vdwg.mxu0
    %1665 = vmatpush.msra.mxu0 %v1368
    %1666 = vmatpush.msra.mxu0 %v1367
    %1667 = vmatpush.msra.mxu0 %v1366
    %1668 = vmatpush.msra.mxu0 %v1365
    %1669 = vmatpush.msra.mxu0 %v1364
    %1670 = vmatpush.msra.mxu0 %v1363
    %1671 = vmatpush.msra.mxu0 %v1362
    %1672 = vmatpush.msra.mxu0 %v1361
    %1673 = vmatpush.msra.mxu0 %v1360
    %1674 = vmatpush.msra.mxu0 %v1359
    %1675 = vmatpush.msra.mxu0 %v1358
    %1676 = vmatpush.msra.mxu0 %v1357
    %1677 = vmatpush.msra.mxu0 %v1356
    %1678 = vmatpush.msra.mxu0 %v1355
    %1679 = vmatpush.msra.mxu0 %v1354
    %1680 = vmatpush.msra.mxu0 %v1353
    %1681 = vmatmul.f32.gmra.mxu0 %v1142
    %v1682 = vpop.f32.mrf.mxu0
    %v1683 = vadd.f32 %v1663, %v1682
    %1684 = vdwg.mxu0
    %1685 = vmatpush.msra.mxu0 %v1384
    %1686 = vmatpush.msra.mxu0 %v1383
    %1687 = vmatpush.msra.mxu0 %v1382
    %1688 = vmatpush.msra.mxu0 %v1381
    %1689 = vmatpush.msra.mxu0 %v1380
    %1690 = vmatpush.msra.mxu0 %v1379
    %1691 = vmatpush.msra.mxu0 %v1378
    %1692 = vmatpush.msra.mxu0 %v1377
    %1693 = vmatpush.msra.mxu0 %v1376
    %1694 = vmatpush.msra.mxu0 %v1375
    %1695 = vmatpush.msra.mxu0 %v1374
    %1696 = vmatpush.msra.mxu0 %v1373
    %1697 = vmatpush.msra.mxu0 %v1372
    %1698 = vmatpush.msra.mxu0 %v1371
    %1699 = vmatpush.msra.mxu0 %v1370
    %1700 = vmatpush.msra.mxu0 %v1369
    %1701 = vmatmul.f32.gmra.mxu0 %v1143
    %v1702 = vpop.f32.mrf.mxu0
    %v1703 = vadd.f32 %v1683, %v1702
    %1704 = vdwg.mxu0
    %1705 = vmatpush.msra.mxu0 %v1400
    %1706 = vmatpush.msra.mxu0 %v1399
    %1707 = vmatpush.msra.mxu0 %v1398
    %1708 = vmatpush.msra.mxu0 %v1397
    %1709 = vmatpush.msra.mxu0 %v1396
    %1710 = vmatpush.msra.mxu0 %v1395
    %1711 = vmatpush.msra.mxu0 %v1394
    %1712 = vmatpush.msra.mxu0 %v1393
    %1713 = vmatpush.msra.mxu0 %v1392
    %1714 = vmatpush.msra.mxu0 %v1391
    %1715 = vmatpush.msra.mxu0 %v1390
    %1716 = vmatpush.msra.mxu0 %v1389
    %1717 = vmatpush.msra.mxu0 %v1388
    %1718 = vmatpush.msra.mxu0 %v1387
    %1719 = vmatpush.msra.mxu0 %v1386
    %1720 = vmatpush.msra.mxu0 %v1385
    %1721 = vmatmul.f32.gmra.mxu0 %v1144
    %v1722 = vpop.f32.mrf.mxu0
    %v1723 = vadd.f32 %v1703, %v1722
    %1724 = vdwg.mxu0
    %1725 = vst [vmem:[#allocation10] sm:$0xff] %v1723
    // Predicated region
    $region38: #{tpu_custom_call.1} parent=1 // pred_check
      _
    $region39: #{tpu_custom_call.1} parent=1 // pred_check_branch
      %1727 = sbr.rel (0) target = $region41
    $region40: #{tpu_custom_call.1} parent=1 // pred_region
      %1729 = vsyncadd [#allocation4], 0
      %s1731 = sshll.u32 [#allocation10], 4
      %s1732 = int_to_ptr.vmem [resolvable:$true] %s1731
      %s1733 = sshll.u32 %s5, 4
      %s1734 = int_to_ptr.hbm [resolvable:$true] %s1733
      %1736 = dma.vmem_to_hbm [thread:$0]  %s1732, 128, %s1734, [#allocation4]
    $region41: #{tpu_custom_call.1} parent=1 // pred_fallthru
      _
    // Predicated region
    $region42: #{tpu_custom_call.1} parent=1 // pred_check
      _
    $region43: #{tpu_custom_call.1} parent=1 // pred_check_branch
      %1738 = sbr.rel (0) target = $region45
    $region44: #{tpu_custom_call.1} parent=1 // pred_region
      %1740 = dma.done [#allocation4], 128
    $region45: #{tpu_custom_call.1} parent=1 // pred_fallthru
      _
    %1741 = vsyncpa [#allocation3], 1
    %1742 = vsyncpa [#allocation6], 1
    %1743 = vsyncpa [#allocation9], 1
    %1744 = vsyncpa [#allocation4], 1

</llo_original>
